<compile_context>
chip_gen: v7x
topology: tpu7x:2x2x1
jax: 0.10.0
libtpu: 0.0.40
codegen_flags: <defaults>
</compile_context>

<pallas_src>
import math

import jax
import jax.numpy as jnp
from jax import lax
from jax.experimental import pallas as pl
from jax.experimental.pallas import tpu as pltpu

B, S, H = 2, 128, 128
NUM_HEADS = 4
HEAD_DIM = H // NUM_HEADS
FFN = 4 * H
NUM_LAYERS = 2
HEAD_HIDDEN = 256
NUM_LABELS = 3
LABELS_PAD = 128            # lane-dense padded classifier output width
OUT_ROWS = 8                # sublane-dense padded classifier output rows (row 0 = CLS)
LN_EPS = 1e-5

# Row layout of the packed per-layer vector-parameter slab (8, FFN):
(_VEC_BQKV, _VEC_B1, _VEC_BO, _VEC_LN1G,
 _VEC_LN1B, _VEC_B2, _VEC_LN2G, _VEC_LN2B) = range(8)


def _layer_norm(x, gamma, beta):
    mean = jnp.mean(x, axis=-1, keepdims=True)
    var = jnp.mean((x - mean) ** 2, axis=-1, keepdims=True)
    return (x - mean) * lax.rsqrt(var + LN_EPS) * gamma + beta


def _gelu(x):
    # TODO(synk): HF roberta uses exact erf GELU; erf has no clean Mosaic lowering,
    # so the (numerically very close) tanh approximation is used instead.
    c = math.sqrt(2.0 / math.pi)
    return 0.5 * x * (1.0 + jnp.tanh(c * (x + 0.044715 * x * x * x)))


def encoder_stack_kernel(x_ref,
                         wqkv_ref, wo_ref, w1_ref, w2_ref, vec_ref,
                         hw1_ref, hb1_ref, hw2_ref, hb2_ref,
                         out_ref, x_scratch):
    """One grid step == one post-LN encoder layer for one batch element.

    grid = (batch, layer); layer is innermost so x_scratch carries the activation
    across layers; the classifier head is fused into the last layer iteration.
    """
    layer = pl.program_id(1)

    @pl.when(layer == 0)
    def _init():
        x_scratch[...] = x_ref[...]               # load this batch's embeddings once

    x = x_scratch[...]                            # (S, H) f32, VMEM-resident
    xb = x.astype(jnp.bfloat16)

    # Packed per-layer bias / LayerNorm vectors: ONE (8, FFN) f32 DMA per layer.
    vec = vec_ref[...]
    b_qkv = vec[_VEC_BQKV:_VEC_BQKV + 1, :3 * H]  # (1, 3H)  (q part pre-scaled)
    b1 = vec[_VEC_B1:_VEC_B1 + 1, :]              # (1, FFN)
    bo = vec[_VEC_BO:_VEC_BO + 1, :H]
    ln1g = vec[_VEC_LN1G:_VEC_LN1G + 1, :H]
    ln1b = vec[_VEC_LN1B:_VEC_LN1B + 1, :H]
    b2 = vec[_VEC_B2:_VEC_B2 + 1, :H]
    ln2g = vec[_VEC_LN2G:_VEC_LN2G + 1, :H]
    ln2b = vec[_VEC_LN2B:_VEC_LN2B + 1, :H]

    # ---- self-attention ----
    # Fused QKV: one lane-dense N=3H MXU dot (softmax scale folded into W_q/b_q).
    qkv = jnp.dot(xb, wqkv_ref[...],
                  preferred_element_type=jnp.float32) + b_qkv      # (S, 3H) f32

    q = qkv[:, :H].astype(jnp.bfloat16)           # (S, H): 128-lane-aligned slice
    # K and V transposed ONCE (2-D XLU transpose); per-head splits below become
    # cheap sublane slices instead of 32-lane slices.
    kvT = qkv[:, H:].T.astype(jnp.bfloat16)       # (2H, S)

    attn = jnp.zeros((S, H), jnp.float32)
    # NOTE: no attention mask — the PyTorch module never forwards `mask`.
    for h in range(NUM_HEADS):                    # static unroll (4 heads)
        r = h * HEAD_DIM
        q_h = q[:, r:r + HEAD_DIM]                # (S, D)
        kT_h = kvT[r:r + HEAD_DIM, :]             # (D, S)  sublane slice
        vT_h = kvT[H + r:H + r + HEAD_DIM, :]     # (D, S)  sublane slice

        s = jnp.dot(q_h, kT_h, preferred_element_type=jnp.float32)   # (S, S)
        s = s - jnp.max(s, axis=-1, keepdims=True)
        p = jnp.exp(s)
        p = p * pl.reciprocal(jnp.sum(p, axis=-1, keepdims=True), approx=True)

        # context: contract over keys (last dim of both operands)  -> (S, D)
        ctx = lax.dot_general(p.astype(jnp.bfloat16), vT_h,
                              (((1,), (1,)), ((), ())),
                              preferred_element_type=jnp.float32)
        # Fold W_o per head (no lane-axis concat of head contexts):
        #   sum_h ctx_h @ Wo[h*D:(h+1)*D, :] == concat_h(ctx_h) @ Wo
        attn = attn + jnp.dot(ctx.astype(jnp.bfloat16),
                              wo_ref[r:r + HEAD_DIM, :],
                              preferred_element_type=jnp.float32)

    x1 = _layer_norm(x + attn + bo, ln1g, ln1b)

    # ---- feed-forward ----
    hmid = _gelu(jnp.dot(x1.astype(jnp.bfloat16), w1_ref[...],
                         preferred_element_type=jnp.float32) + b1)
    ff = jnp.dot(hmid.astype(jnp.bfloat16), w2_ref[...],
                 preferred_element_type=jnp.float32) + b2
    x2 = _layer_norm(x1 + ff, ln2g, ln2b)
    x_scratch[...] = x2                           # carry to the next layer

    # ---- classifier head, fused into the last layer iteration ----
    @pl.when(layer == pl.num_programs(1) - 1)
    def _head():
        # Compute on the first 8 tokens (sublane-dense 8x128 output block); only
        # row 0 (the CLS token) is consumed outside.
        cls_rows = x2[:OUT_ROWS, :].astype(jnp.bfloat16)            # (8, H)
        h1 = jnp.dot(cls_rows, hw1_ref[...],
                     preferred_element_type=jnp.float32) + hb1_ref[...]
        out_ref[...] = jnp.dot(h1.astype(jnp.bfloat16), hw2_ref[...],
                               preferred_element_type=jnp.float32) + hb2_ref[...]


def encoder_stack_forward(inputs_embeds, layer_params, head_params):
    wqkv, wo, w1, w2, vec = layer_params
    hw1, hb1, hw2, hb2 = head_params

    def lspec(*shape):
        """Per-layer stacked parameter: leading layer axis selected by grid index l."""
        return pl.BlockSpec((None,) + shape, lambda b, l: (l,) + (0,) * len(shape))

    def cspec(*shape):
        """Grid-invariant parameter: constant block, fetched once."""
        return pl.BlockSpec(shape, lambda b, l: (0,) * len(shape))

    grid_spec = pltpu.PrefetchScalarGridSpec(
        num_scalar_prefetch=0,
        grid=(B, NUM_LAYERS),
        in_specs=[
            pl.BlockSpec((None, S, H), lambda b, l: (b, 0, 0)),   # embeddings / batch
            lspec(H, 3 * H),          # fused QKV weight
            lspec(H, H),              # attention output projection
            lspec(H, FFN),            # FFN w1
            lspec(FFN, H),            # FFN w2
            lspec(8, FFN),            # packed biases + LayerNorm params
            cspec(H, HEAD_HIDDEN), cspec(1, HEAD_HIDDEN),         # linear1
            cspec(HEAD_HIDDEN, LABELS_PAD), cspec(1, LABELS_PAD), # linear2 (padded)
        ],
        out_specs=pl.BlockSpec((None, OUT_ROWS, LABELS_PAD), lambda b, l: (b, 0, 0)),
        scratch_shapes=[pltpu.VMEM((S, H), jnp.float32)],
    )
    out = pl.pallas_call(
        encoder_stack_kernel,
        out_shape=jax.ShapeDtypeStruct((B, OUT_ROWS, LABELS_PAD), jnp.float32),
        grid_spec=grid_spec,
        compiler_params=pltpu.CompilerParams(
            # batch axis parallel (v7x megacore), layer axis carries the activation.
            # Footprint ~1 MiB: no vmem_limit override (v7x has only 64 MiB/TC).
            dimension_semantics=("parallel", "arbitrary"),
        ),
    )(inputs_embeds, wqkv, wo, w1, w2, vec, hw1, hb1, hw2, hb2)
    return out[:, 0, :NUM_LABELS]


def init_params(key):
    """Deterministic synthetic parameters (bf16 matmul weights, f32 bias/LN)."""
    def wmat(k, fan_in, fan_out):
        return 0.02 * jax.random.normal(k, (fan_in, fan_out), jnp.float32)

    def bvec(k, fan_out):
        return 0.02 * jax.random.normal(k, (fan_out,), jnp.float32)

    scale = 1.0 / math.sqrt(HEAD_DIM)
    keys = jax.random.split(key, NUM_LAYERS + 1)

    wqkv_l, wo_l, w1_l, w2_l, vec_l = [], [], [], [], []
    for lk in keys[:-1]:
        ks = jax.random.split(lk, 12)
        wq = wmat(ks[0], H, H) * scale            # fold softmax scale into Q proj
        bq = bvec(ks[1], H) * scale
        wk, bk = wmat(ks[2], H, H), bvec(ks[3], H)
        wv, bv = wmat(ks[4], H, H), bvec(ks[5], H)
        wo, bo = wmat(ks[6], H, H), bvec(ks[7], H)
        w1, b1 = wmat(ks[8], H, FFN), bvec(ks[9], FFN)
        w2, b2 = wmat(ks[10], FFN, H), bvec(ks[11], H)

        wqkv_l.append(jnp.concatenate([wq, wk, wv], axis=1).astype(jnp.bfloat16))
        wo_l.append(wo.astype(jnp.bfloat16))
        w1_l.append(w1.astype(jnp.bfloat16))
        w2_l.append(w2.astype(jnp.bfloat16))

        vec = jnp.zeros((8, FFN), jnp.float32)
        vec = vec.at[_VEC_BQKV, :3 * H].set(jnp.concatenate([bq, bk, bv]))
        vec = vec.at[_VEC_B1, :].set(b1)
        vec = vec.at[_VEC_BO, :H].set(bo)
        vec = vec.at[_VEC_LN1G, :H].set(jnp.ones((H,), jnp.float32))
        vec = vec.at[_VEC_LN1B, :H].set(jnp.zeros((H,), jnp.float32))
        vec = vec.at[_VEC_B2, :H].set(b2)
        vec = vec.at[_VEC_LN2G, :H].set(jnp.ones((H,), jnp.float32))
        vec = vec.at[_VEC_LN2B, :H].set(jnp.zeros((H,), jnp.float32))
        vec_l.append(vec)

    layer_params = (jnp.stack(wqkv_l), jnp.stack(wo_l), jnp.stack(w1_l),
                    jnp.stack(w2_l), jnp.stack(vec_l))

    kh1, kh2, kh3, kh4 = jax.random.split(keys[-1], 4)
    hw1 = wmat(kh1, H, HEAD_HIDDEN).astype(jnp.bfloat16)
    hb1 = 0.02 * jax.random.normal(kh2, (1, HEAD_HIDDEN), jnp.float32)
    # Lane-dense padding of the classifier output to 128 cols (sliced back outside).
    hw2 = jnp.zeros((HEAD_HIDDEN, LABELS_PAD), jnp.float32
                    ).at[:, :NUM_LABELS].set(
                        wmat(kh3, HEAD_HIDDEN, NUM_LABELS)).astype(jnp.bfloat16)
    hb2 = jnp.zeros((1, LABELS_PAD), jnp.float32).at[:, :NUM_LABELS].set(
        0.02 * jax.random.normal(kh4, (1, NUM_LABELS), jnp.float32))
    return layer_params, (hw1, hb1, hw2, hb2)


def custom_bert_forward(ids, mask, inputs_embeds, layer_params, head_params):
    # `ids` / `mask` are unused, exactly as in the PyTorch forward (the mask is
    # never forwarded to the encoder call).
    del ids, mask
    x = inputs_embeds.astype(jnp.float32)
    return encoder_stack_forward(x, layer_params, head_params)


if __name__ == "__main__":
    key = jax.random.PRNGKey(0)
    k_params, k_emb = jax.random.split(key)

    layer_params, head_params = init_params(k_params)

    inputs_embeds = jax.random.normal(k_emb, (B, S, H), jnp.float32)
    ids = jnp.zeros((B, S), jnp.int32)          # unused by the forward pass
    mask = jnp.ones((B, S), jnp.float32)        # unused by the forward pass

    out = custom_bert_forward(ids, mask, inputs_embeds, layer_params, head_params)
    out = jax.block_until_ready(out)
    assert out.shape == (B, NUM_LABELS), out.shape
    print("KERNEL_OK")
</pallas_src>

<mosaic_0001>
module attributes {stable_mosaic.version = 11 : i64} {
  func.func @encoder_stack_kernel(%arg0: i32, %arg1: i32, %arg2: memref<1x128x128xf32, #tpu.memory_space<vmem>>, %arg3: memref<1x128x384xbf16, #tpu.memory_space<vmem>>, %arg4: memref<1x128x128xbf16, #tpu.memory_space<vmem>>, %arg5: memref<1x128x512xbf16, #tpu.memory_space<vmem>>, %arg6: memref<1x512x128xbf16, #tpu.memory_space<vmem>>, %arg7: memref<1x8x512xf32, #tpu.memory_space<vmem>>, %arg8: memref<128x256xbf16, #tpu.memory_space<vmem>>, %arg9: memref<1x256xf32, #tpu.memory_space<vmem>>, %arg10: memref<256x128xbf16, #tpu.memory_space<vmem>>, %arg11: memref<1x128xf32, #tpu.memory_space<vmem>>, %arg12: memref<1x8x128xf32, #tpu.memory_space<vmem>>, %arg13: memref<128x128xf32, #tpu.memory_space<vmem>>) attributes {dimension_semantics = [#tpu.dimension_semantics<parallel>, #tpu.dimension_semantics<arbitrary>], iteration_bounds = array<i64: 2, 2>, scalar_prefetch = 0 : i64, scratch_operands = 1 : i64, tpu.core_type = #tpu.core_type<tc>, window_params = [{transform_indices = @transform_0, window_bounds = array<i64: 1, 128, 128>}, {transform_indices = @transform_1, window_bounds = array<i64: 1, 128, 384>}, {transform_indices = @transform_2, window_bounds = array<i64: 1, 128, 128>}, {transform_indices = @transform_3, window_bounds = array<i64: 1, 128, 512>}, {transform_indices = @transform_4, window_bounds = array<i64: 1, 512, 128>}, {transform_indices = @transform_5, window_bounds = array<i64: 1, 8, 512>}, {pipeline_mode = #tpu.pipeline_mode<synchronous>, transform_indices = @transform_6, window_bounds = array<i64: 128, 256>}, {pipeline_mode = #tpu.pipeline_mode<synchronous>, transform_indices = @transform_7, window_bounds = array<i64: 1, 256>}, {pipeline_mode = #tpu.pipeline_mode<synchronous>, transform_indices = @transform_8, window_bounds = array<i64: 256, 128>}, {pipeline_mode = #tpu.pipeline_mode<synchronous>, transform_indices = @transform_9, window_bounds = array<i64: 1, 128>}, {transform_indices = @transform_10, window_bounds = array<i64: 1, 8, 128>}]} {
    %c0_i32 = arith.constant 0 : i32
    %0 = arith.cmpi eq, %arg1, %c0_i32 : i32
    %1 = arith.extui %0 : i1 to i32
    %c0_i32_0 = arith.constant 0 : i32
    %2 = arith.cmpi ne, %1, %c0_i32_0 : i32
    scf.if %2 {
      %c0_63 = arith.constant 0 : index
      %c0_64 = arith.constant 0 : index
      %c0_65 = arith.constant 0 : index
      %187 = vector.load %arg2[%c0_63, %c0_64, %c0_65] : memref<1x128x128xf32, #tpu.memory_space<vmem>>, vector<1x128x128xf32>
      %188 = vector.shape_cast %187 : vector<1x128x128xf32> to vector<128x128xf32>
      %c0_66 = arith.constant 0 : index
      %c0_67 = arith.constant 0 : index
      %189 = vector.load %arg13[%c0_66, %c0_67] : memref<128x128xf32, #tpu.memory_space<vmem>>, vector<128x128xf32>
      tpu.vector_store %arg13[%c0_66, %c0_67], %188 {strides = array<i32>} : memref<128x128xf32, #tpu.memory_space<vmem>>, vector<128x128xf32>,
    } else {
    }
    %c0 = arith.constant 0 : index
    %c0_1 = arith.constant 0 : index
    %3 = vector.load %arg13[%c0, %c0_1] : memref<128x128xf32, #tpu.memory_space<vmem>>, vector<128x128xf32>
    %4 = arith.truncf %3 : vector<128x128xf32> to vector<128x128xbf16>
    %c0_2 = arith.constant 0 : index
    %c0_3 = arith.constant 0 : index
    %c0_4 = arith.constant 0 : index
    %5 = vector.load %arg7[%c0_2, %c0_3, %c0_4] : memref<1x8x512xf32, #tpu.memory_space<vmem>>, vector<1x8x512xf32>
    %6 = vector.shape_cast %5 : vector<1x8x512xf32> to vector<8x512xf32>
    %7 = vector.extract_strided_slice %6 {offsets = [0, 0], sizes = [1, 384], strides = [1, 1]} : vector<8x512xf32> to vector<1x384xf32>
    %8 = vector.extract_strided_slice %6 {offsets = [1, 0], sizes = [1, 512], strides = [1, 1]} : vector<8x512xf32> to vector<1x512xf32>
    %9 = vector.extract_strided_slice %6 {offsets = [2, 0], sizes = [1, 128], strides = [1, 1]} : vector<8x512xf32> to vector<1x128xf32>
    %10 = vector.extract_strided_slice %6 {offsets = [3, 0], sizes = [1, 128], strides = [1, 1]} : vector<8x512xf32> to vector<1x128xf32>
    %11 = vector.extract_strided_slice %6 {offsets = [4, 0], sizes = [1, 128], strides = [1, 1]} : vector<8x512xf32> to vector<1x128xf32>
    %12 = vector.extract_strided_slice %6 {offsets = [5, 0], sizes = [1, 128], strides = [1, 1]} : vector<8x512xf32> to vector<1x128xf32>
    %13 = vector.extract_strided_slice %6 {offsets = [6, 0], sizes = [1, 128], strides = [1, 1]} : vector<8x512xf32> to vector<1x128xf32>
    %14 = vector.extract_strided_slice %6 {offsets = [7, 0], sizes = [1, 128], strides = [1, 1]} : vector<8x512xf32> to vector<1x128xf32>
    %c0_5 = arith.constant 0 : index
    %c0_6 = arith.constant 0 : index
    %c0_7 = arith.constant 0 : index
    %15 = vector.load %arg3[%c0_5, %c0_6, %c0_7] : memref<1x128x384xbf16, #tpu.memory_space<vmem>>, vector<1x128x384xbf16>
    %16 = vector.shape_cast %15 : vector<1x128x384xbf16> to vector<128x384xbf16>
    %cst = arith.constant dense<0.000000e+00> : vector<128x384xf32>
    %17 = tpu.matmul %4, %16, %cst {dimension_numbers = #tpu.dot_dimension_numbers<[1], [0], [0], [1], [0, 0, 1, 1], [], []>} : vector<128x128xbf16>, vector<128x384xbf16>, vector<128x384xf32> -> vector<128x384xf32>
    %18 = vector.broadcast %7 : vector<1x384xf32> to vector<128x384xf32>
    %19 = arith.addf %17, %18 : vector<128x384xf32>
    %20 = vector.extract_strided_slice %19 {offsets = [0, 0], sizes = [128, 128], strides = [1, 1]} : vector<128x384xf32> to vector<128x128xf32>
    %21 = arith.truncf %20 : vector<128x128xf32> to vector<128x128xbf16>
    %22 = vector.extract_strided_slice %19 {offsets = [0, 128], sizes = [128, 256], strides = [1, 1]} : vector<128x384xf32> to vector<128x256xf32>
    %23 = tpu.transpose %22, [1, 0] : vector<128x256xf32> -> vector<256x128xf32>
    %24 = arith.truncf %23 : vector<256x128xf32> to vector<256x128xbf16>
    %cst_8 = arith.constant 0.000000e+00 : f32
    %25 = vector.broadcast %cst_8 : f32 to vector<128x128xf32>
    %26 = vector.extract_strided_slice %21 {offsets = [0, 0], sizes = [128, 32], strides = [1, 1]} : vector<128x128xbf16> to vector<128x32xbf16>
    %27 = vector.extract_strided_slice %24 {offsets = [0, 0], sizes = [32, 128], strides = [1, 1]} : vector<256x128xbf16> to vector<32x128xbf16>
    %28 = vector.extract_strided_slice %24 {offsets = [128, 0], sizes = [32, 128], strides = [1, 1]} : vector<256x128xbf16> to vector<32x128xbf16>
    %cst_9 = arith.constant dense<0.000000e+00> : vector<128x128xf32>
    %29 = tpu.matmul %26, %27, %cst_9 {dimension_numbers = #tpu.dot_dimension_numbers<[1], [0], [0], [1], [0, 0, 1, 1], [], []>} : vector<128x32xbf16>, vector<32x128xbf16>, vector<128x128xf32> -> vector<128x128xf32>
    %cst_10 = arith.constant dense<0xFF800000> : vector<128xf32>
    %30 = vector.multi_reduction <maximumf>, %29, %cst_10 [1] : vector<128x128xf32> to vector<128xf32>
    %31 = vector.shape_cast %30 : vector<128xf32> to vector<128x1xf32>
    %32 = vector.broadcast %31 : vector<128x1xf32> to vector<128x128xf32>
    %33 = arith.subf %29, %32 : vector<128x128xf32>
    %34 = math.exp %33 : vector<128x128xf32>
    %cst_11 = arith.constant dense<0.000000e+00> : vector<128xf32>
    %35 = vector.multi_reduction <add>, %34, %cst_11 [1] : vector<128x128xf32> to vector<128xf32>
    %36 = vector.shape_cast %35 : vector<128xf32> to vector<128x1xf32>
    %37 = tpu.reciprocal %36 {approx = true} : vector<128x1xf32> -> vector<128x1xf32>
    %38 = vector.broadcast %37 : vector<128x1xf32> to vector<128x128xf32>
    %39 = arith.mulf %34, %38 : vector<128x128xf32>
    %40 = arith.truncf %39 : vector<128x128xf32> to vector<128x128xbf16>
    %cst_12 = arith.constant dense<0.000000e+00> : vector<128x32xf32>
    %41 = tpu.matmul %40, %28, %cst_12 {dimension_numbers = #tpu.dot_dimension_numbers<[1], [1], [0], [0], [0, 0, 1, 0], [], []>} : vector<128x128xbf16>, vector<32x128xbf16>, vector<128x32xf32> -> vector<128x32xf32>
    %42 = arith.truncf %41 : vector<128x32xf32> to vector<128x32xbf16>
    %c0_13 = arith.constant 0 : index
    %c0_14 = arith.constant 0 : index
    %c0_15 = arith.constant 0 : index
    %43 = vector.load %arg4[%c0_13, %c0_14, %c0_15] : memref<1x128x128xbf16, #tpu.memory_space<vmem>>, vector<1x32x128xbf16>
    %44 = vector.shape_cast %43 : vector<1x32x128xbf16> to vector<32x128xbf16>
    %cst_16 = arith.constant dense<0.000000e+00> : vector<128x128xf32>
    %45 = tpu.matmul %42, %44, %cst_16 {dimension_numbers = #tpu.dot_dimension_numbers<[1], [0], [0], [1], [0, 0, 1, 1], [], []>} : vector<128x32xbf16>, vector<32x128xbf16>, vector<128x128xf32> -> vector<128x128xf32>
    %46 = arith.addf %25, %45 : vector<128x128xf32>
    %47 = vector.extract_strided_slice %21 {offsets = [0, 32], sizes = [128, 32], strides = [1, 1]} : vector<128x128xbf16> to vector<128x32xbf16>
    %48 = vector.extract_strided_slice %24 {offsets = [32, 0], sizes = [32, 128], strides = [1, 1]} : vector<256x128xbf16> to vector<32x128xbf16>
    %49 = vector.extract_strided_slice %24 {offsets = [160, 0], sizes = [32, 128], strides = [1, 1]} : vector<256x128xbf16> to vector<32x128xbf16>
    %cst_17 = arith.constant dense<0.000000e+00> : vector<128x128xf32>
    %50 = tpu.matmul %47, %48, %cst_17 {dimension_numbers = #tpu.dot_dimension_numbers<[1], [0], [0], [1], [0, 0, 1, 1], [], []>} : vector<128x32xbf16>, vector<32x128xbf16>, vector<128x128xf32> -> vector<128x128xf32>
    %cst_18 = arith.constant dense<0xFF800000> : vector<128xf32>
    %51 = vector.multi_reduction <maximumf>, %50, %cst_18 [1] : vector<128x128xf32> to vector<128xf32>
    %52 = vector.shape_cast %51 : vector<128xf32> to vector<128x1xf32>
    %53 = vector.broadcast %52 : vector<128x1xf32> to vector<128x128xf32>
    %54 = arith.subf %50, %53 : vector<128x128xf32>
    %55 = math.exp %54 : vector<128x128xf32>
    %cst_19 = arith.constant dense<0.000000e+00> : vector<128xf32>
    %56 = vector.multi_reduction <add>, %55, %cst_19 [1] : vector<128x128xf32> to vector<128xf32>
    %57 = vector.shape_cast %56 : vector<128xf32> to vector<128x1xf32>
    %58 = tpu.reciprocal %57 {approx = true} : vector<128x1xf32> -> vector<128x1xf32>
    %59 = vector.broadcast %58 : vector<128x1xf32> to vector<128x128xf32>
    %60 = arith.mulf %55, %59 : vector<128x128xf32>
    %61 = arith.truncf %60 : vector<128x128xf32> to vector<128x128xbf16>
    %cst_20 = arith.constant dense<0.000000e+00> : vector<128x32xf32>
    %62 = tpu.matmul %61, %49, %cst_20 {dimension_numbers = #tpu.dot_dimension_numbers<[1], [1], [0], [0], [0, 0, 1, 0], [], []>} : vector<128x128xbf16>, vector<32x128xbf16>, vector<128x32xf32> -> vector<128x32xf32>
    %63 = arith.truncf %62 : vector<128x32xf32> to vector<128x32xbf16>
    %c0_21 = arith.constant 0 : index
    %c32 = arith.constant 32 : index
    %c0_22 = arith.constant 0 : index
    %64 = vector.load %arg4[%c0_21, %c32, %c0_22] : memref<1x128x128xbf16, #tpu.memory_space<vmem>>, vector<1x32x128xbf16>
    %65 = vector.shape_cast %64 : vector<1x32x128xbf16> to vector<32x128xbf16>
    %cst_23 = arith.constant dense<0.000000e+00> : vector<128x128xf32>
    %66 = tpu.matmul %63, %65, %cst_23 {dimension_numbers = #tpu.dot_dimension_numbers<[1], [0], [0], [1], [0, 0, 1, 1], [], []>} : vector<128x32xbf16>, vector<32x128xbf16>, vector<128x128xf32> -> vector<128x128xf32>
    %67 = arith.addf %46, %66 : vector<128x128xf32>
    %68 = vector.extract_strided_slice %21 {offsets = [0, 64], sizes = [128, 32], strides = [1, 1]} : vector<128x128xbf16> to vector<128x32xbf16>
    %69 = vector.extract_strided_slice %24 {offsets = [64, 0], sizes = [32, 128], strides = [1, 1]} : vector<256x128xbf16> to vector<32x128xbf16>
    %70 = vector.extract_strided_slice %24 {offsets = [192, 0], sizes = [32, 128], strides = [1, 1]} : vector<256x128xbf16> to vector<32x128xbf16>
    %cst_24 = arith.constant dense<0.000000e+00> : vector<128x128xf32>
    %71 = tpu.matmul %68, %69, %cst_24 {dimension_numbers = #tpu.dot_dimension_numbers<[1], [0], [0], [1], [0, 0, 1, 1], [], []>} : vector<128x32xbf16>, vector<32x128xbf16>, vector<128x128xf32> -> vector<128x128xf32>
    %cst_25 = arith.constant dense<0xFF800000> : vector<128xf32>
    %72 = vector.multi_reduction <maximumf>, %71, %cst_25 [1] : vector<128x128xf32> to vector<128xf32>
    %73 = vector.shape_cast %72 : vector<128xf32> to vector<128x1xf32>
    %74 = vector.broadcast %73 : vector<128x1xf32> to vector<128x128xf32>
    %75 = arith.subf %71, %74 : vector<128x128xf32>
    %76 = math.exp %75 : vector<128x128xf32>
    %cst_26 = arith.constant dense<0.000000e+00> : vector<128xf32>
    %77 = vector.multi_reduction <add>, %76, %cst_26 [1] : vector<128x128xf32> to vector<128xf32>
    %78 = vector.shape_cast %77 : vector<128xf32> to vector<128x1xf32>
    %79 = tpu.reciprocal %78 {approx = true} : vector<128x1xf32> -> vector<128x1xf32>
    %80 = vector.broadcast %79 : vector<128x1xf32> to vector<128x128xf32>
    %81 = arith.mulf %76, %80 : vector<128x128xf32>
    %82 = arith.truncf %81 : vector<128x128xf32> to vector<128x128xbf16>
    %cst_27 = arith.constant dense<0.000000e+00> : vector<128x32xf32>
    %83 = tpu.matmul %82, %70, %cst_27 {dimension_numbers = #tpu.dot_dimension_numbers<[1], [1], [0], [0], [0, 0, 1, 0], [], []>} : vector<128x128xbf16>, vector<32x128xbf16>, vector<128x32xf32> -> vector<128x32xf32>
    %84 = arith.truncf %83 : vector<128x32xf32> to vector<128x32xbf16>
    %c0_28 = arith.constant 0 : index
    %c64 = arith.constant 64 : index
    %c0_29 = arith.constant 0 : index
    %85 = vector.load %arg4[%c0_28, %c64, %c0_29] : memref<1x128x128xbf16, #tpu.memory_space<vmem>>, vector<1x32x128xbf16>
    %86 = vector.shape_cast %85 : vector<1x32x128xbf16> to vector<32x128xbf16>
    %cst_30 = arith.constant dense<0.000000e+00> : vector<128x128xf32>
    %87 = tpu.matmul %84, %86, %cst_30 {dimension_numbers = #tpu.dot_dimension_numbers<[1], [0], [0], [1], [0, 0, 1, 1], [], []>} : vector<128x32xbf16>, vector<32x128xbf16>, vector<128x128xf32> -> vector<128x128xf32>
    %88 = arith.addf %67, %87 : vector<128x128xf32>
    %89 = vector.extract_strided_slice %21 {offsets = [0, 96], sizes = [128, 32], strides = [1, 1]} : vector<128x128xbf16> to vector<128x32xbf16>
    %90 = vector.extract_strided_slice %24 {offsets = [96, 0], sizes = [32, 128], strides = [1, 1]} : vector<256x128xbf16> to vector<32x128xbf16>
    %91 = vector.extract_strided_slice %24 {offsets = [224, 0], sizes = [32, 128], strides = [1, 1]} : vector<256x128xbf16> to vector<32x128xbf16>
    %cst_31 = arith.constant dense<0.000000e+00> : vector<128x128xf32>
    %92 = tpu.matmul %89, %90, %cst_31 {dimension_numbers = #tpu.dot_dimension_numbers<[1], [0], [0], [1], [0, 0, 1, 1], [], []>} : vector<128x32xbf16>, vector<32x128xbf16>, vector<128x128xf32> -> vector<128x128xf32>
    %cst_32 = arith.constant dense<0xFF800000> : vector<128xf32>
    %93 = vector.multi_reduction <maximumf>, %92, %cst_32 [1] : vector<128x128xf32> to vector<128xf32>
    %94 = vector.shape_cast %93 : vector<128xf32> to vector<128x1xf32>
    %95 = vector.broadcast %94 : vector<128x1xf32> to vector<128x128xf32>
    %96 = arith.subf %92, %95 : vector<128x128xf32>
    %97 = math.exp %96 : vector<128x128xf32>
    %cst_33 = arith.constant dense<0.000000e+00> : vector<128xf32>
    %98 = vector.multi_reduction <add>, %97, %cst_33 [1] : vector<128x128xf32> to vector<128xf32>
    %99 = vector.shape_cast %98 : vector<128xf32> to vector<128x1xf32>
    %100 = tpu.reciprocal %99 {approx = true} : vector<128x1xf32> -> vector<128x1xf32>
    %101 = vector.broadcast %100 : vector<128x1xf32> to vector<128x128xf32>
    %102 = arith.mulf %97, %101 : vector<128x128xf32>
    %103 = arith.truncf %102 : vector<128x128xf32> to vector<128x128xbf16>
    %cst_34 = arith.constant dense<0.000000e+00> : vector<128x32xf32>
    %104 = tpu.matmul %103, %91, %cst_34 {dimension_numbers = #tpu.dot_dimension_numbers<[1], [1], [0], [0], [0, 0, 1, 0], [], []>} : vector<128x128xbf16>, vector<32x128xbf16>, vector<128x32xf32> -> vector<128x32xf32>
    %105 = arith.truncf %104 : vector<128x32xf32> to vector<128x32xbf16>
    %c0_35 = arith.constant 0 : index
    %c96 = arith.constant 96 : index
    %c0_36 = arith.constant 0 : index
    %106 = vector.load %arg4[%c0_35, %c96, %c0_36] : memref<1x128x128xbf16, #tpu.memory_space<vmem>>, vector<1x32x128xbf16>
    %107 = vector.shape_cast %106 : vector<1x32x128xbf16> to vector<32x128xbf16>
    %cst_37 = arith.constant dense<0.000000e+00> : vector<128x128xf32>
    %108 = tpu.matmul %105, %107, %cst_37 {dimension_numbers = #tpu.dot_dimension_numbers<[1], [0], [0], [1], [0, 0, 1, 1], [], []>} : vector<128x32xbf16>, vector<32x128xbf16>, vector<128x128xf32> -> vector<128x128xf32>
    %109 = arith.addf %88, %108 : vector<128x128xf32>
    %110 = arith.addf %3, %109 : vector<128x128xf32>
    %111 = vector.broadcast %9 : vector<1x128xf32> to vector<128x128xf32>
    %112 = arith.addf %110, %111 : vector<128x128xf32>
    %cst_38 = arith.constant dense<0.000000e+00> : vector<128xf32>
    %113 = vector.multi_reduction <add>, %112, %cst_38 [1] : vector<128x128xf32> to vector<128xf32>
    %114 = vector.shape_cast %113 : vector<128xf32> to vector<128x1xf32>
    %cst_39 = arith.constant 1.280000e+02 : f32
    %115 = vector.broadcast %cst_39 : f32 to vector<128x1xf32>
    %116 = arith.divf %114, %115 : vector<128x1xf32>
    %117 = vector.broadcast %116 : vector<128x1xf32> to vector<128x128xf32>
    %118 = arith.subf %112, %117 : vector<128x128xf32>
    %119 = arith.mulf %118, %118 : vector<128x128xf32>
    %cst_40 = arith.constant dense<0.000000e+00> : vector<128xf32>
    %120 = vector.multi_reduction <add>, %119, %cst_40 [1] : vector<128x128xf32> to vector<128xf32>
    %121 = vector.shape_cast %120 : vector<128xf32> to vector<128x1xf32>
    %cst_41 = arith.constant 1.280000e+02 : f32
    %122 = vector.broadcast %cst_41 : f32 to vector<128x1xf32>
    %123 = arith.divf %121, %122 : vector<128x1xf32>
    %124 = vector.broadcast %116 : vector<128x1xf32> to vector<128x128xf32>
    %125 = arith.subf %112, %124 : vector<128x128xf32>
    %cst_42 = arith.constant 9.99999974E-6 : f32
    %126 = vector.broadcast %cst_42 : f32 to vector<128x1xf32>
    %127 = arith.addf %123, %126 : vector<128x1xf32>
    %128 = math.rsqrt %127 : vector<128x1xf32>
    %129 = vector.broadcast %128 : vector<128x1xf32> to vector<128x128xf32>
    %130 = arith.mulf %125, %129 : vector<128x128xf32>
    %131 = vector.broadcast %10 : vector<1x128xf32> to vector<128x128xf32>
    %132 = arith.mulf %130, %131 : vector<128x128xf32>
    %133 = vector.broadcast %11 : vector<1x128xf32> to vector<128x128xf32>
    %134 = arith.addf %132, %133 : vector<128x128xf32>
    %135 = arith.truncf %134 : vector<128x128xf32> to vector<128x128xbf16>
    %c0_43 = arith.constant 0 : index
    %c0_44 = arith.constant 0 : index
    %c0_45 = arith.constant 0 : index
    %136 = vector.load %arg5[%c0_43, %c0_44, %c0_45] : memref<1x128x512xbf16, #tpu.memory_space<vmem>>, vector<1x128x512xbf16>
    %137 = vector.shape_cast %136 : vector<1x128x512xbf16> to vector<128x512xbf16>
    %cst_46 = arith.constant dense<0.000000e+00> : vector<128x512xf32>
    %138 = tpu.matmul %135, %137, %cst_46 {dimension_numbers = #tpu.dot_dimension_numbers<[1], [0], [0], [1], [0, 0, 1, 1], [], []>} : vector<128x128xbf16>, vector<128x512xbf16>, vector<128x512xf32> -> vector<128x512xf32>
    %139 = vector.broadcast %8 : vector<1x512xf32> to vector<128x512xf32>
    %140 = arith.addf %138, %139 : vector<128x512xf32>
    %cst_47 = arith.constant 5.000000e-01 : f32
    %141 = vector.broadcast %cst_47 : f32 to vector<128x512xf32>
    %142 = arith.mulf %141, %140 : vector<128x512xf32>
    %cst_48 = arith.constant 4.471500e-02 : f32
    %143 = vector.broadcast %cst_48 : f32 to vector<128x512xf32>
    %144 = arith.mulf %143, %140 : vector<128x512xf32>
    %145 = arith.mulf %144, %140 : vector<128x512xf32>
    %146 = arith.mulf %145, %140 : vector<128x512xf32>
    %147 = arith.addf %140, %146 : vector<128x512xf32>
    %cst_49 = arith.constant 0.797884583 : f32
    %148 = vector.broadcast %cst_49 : f32 to vector<128x512xf32>
    %149 = arith.mulf %148, %147 : vector<128x512xf32>
    %150 = math.tanh %149 : vector<128x512xf32>
    %cst_50 = arith.constant 1.000000e+00 : f32
    %151 = vector.broadcast %cst_50 : f32 to vector<128x512xf32>
    %152 = arith.addf %151, %150 : vector<128x512xf32>
    %153 = arith.mulf %142, %152 : vector<128x512xf32>
    %154 = arith.truncf %153 : vector<128x512xf32> to vector<128x512xbf16>
    %c0_51 = arith.constant 0 : index
    %c0_52 = arith.constant 0 : index
    %c0_53 = arith.constant 0 : index
    %155 = vector.load %arg6[%c0_51, %c0_52, %c0_53] : memref<1x512x128xbf16, #tpu.memory_space<vmem>>, vector<1x512x128xbf16>
    %156 = vector.shape_cast %155 : vector<1x512x128xbf16> to vector<512x128xbf16>
    %cst_54 = arith.constant dense<0.000000e+00> : vector<128x128xf32>
    %157 = tpu.matmul %154, %156, %cst_54 {dimension_numbers = #tpu.dot_dimension_numbers<[1], [0], [0], [1], [0, 0, 1, 1], [], []>} : vector<128x512xbf16>, vector<512x128xbf16>, vector<128x128xf32> -> vector<128x128xf32>
    %158 = vector.broadcast %12 : vector<1x128xf32> to vector<128x128xf32>
    %159 = arith.addf %157, %158 : vector<128x128xf32>
    %160 = arith.addf %134, %159 : vector<128x128xf32>
    %cst_55 = arith.constant dense<0.000000e+00> : vector<128xf32>
    %161 = vector.multi_reduction <add>, %160, %cst_55 [1] : vector<128x128xf32> to vector<128xf32>
    %162 = vector.shape_cast %161 : vector<128xf32> to vector<128x1xf32>
    %cst_56 = arith.constant 1.280000e+02 : f32
    %163 = vector.broadcast %cst_56 : f32 to vector<128x1xf32>
    %164 = arith.divf %162, %163 : vector<128x1xf32>
    %165 = vector.broadcast %164 : vector<128x1xf32> to vector<128x128xf32>
    %166 = arith.subf %160, %165 : vector<128x128xf32>
    %167 = arith.mulf %166, %166 : vector<128x128xf32>
    %cst_57 = arith.constant dense<0.000000e+00> : vector<128xf32>
    %168 = vector.multi_reduction <add>, %167, %cst_57 [1] : vector<128x128xf32> to vector<128xf32>
    %169 = vector.shape_cast %168 : vector<128xf32> to vector<128x1xf32>
    %cst_58 = arith.constant 1.280000e+02 : f32
    %170 = vector.broadcast %cst_58 : f32 to vector<128x1xf32>
    %171 = arith.divf %169, %170 : vector<128x1xf32>
    %172 = vector.broadcast %164 : vector<128x1xf32> to vector<128x128xf32>
    %173 = arith.subf %160, %172 : vector<128x128xf32>
    %cst_59 = arith.constant 9.99999974E-6 : f32
    %174 = vector.broadcast %cst_59 : f32 to vector<128x1xf32>
    %175 = arith.addf %171, %174 : vector<128x1xf32>
    %176 = math.rsqrt %175 : vector<128x1xf32>
    %177 = vector.broadcast %176 : vector<128x1xf32> to vector<128x128xf32>
    %178 = arith.mulf %173, %177 : vector<128x128xf32>
    %179 = vector.broadcast %13 : vector<1x128xf32> to vector<128x128xf32>
    %180 = arith.mulf %178, %179 : vector<128x128xf32>
    %181 = vector.broadcast %14 : vector<1x128xf32> to vector<128x128xf32>
    %182 = arith.addf %180, %181 : vector<128x128xf32>
    %c0_60 = arith.constant 0 : index
    %c0_61 = arith.constant 0 : index
    %183 = vector.load %arg13[%c0_60, %c0_61] : memref<128x128xf32, #tpu.memory_space<vmem>>, vector<128x128xf32>
    tpu.vector_store %arg13[%c0_60, %c0_61], %182 {strides = array<i32>} : memref<128x128xf32, #tpu.memory_space<vmem>>, vector<128x128xf32>,
    %c1_i32 = arith.constant 1 : i32
    %184 = arith.cmpi eq, %arg1, %c1_i32 : i32
    %185 = arith.extui %184 : i1 to i32
    %c0_i32_62 = arith.constant 0 : i32
    %186 = arith.cmpi ne, %185, %c0_i32_62 : i32
    scf.if %186 {
      %187 = vector.extract_strided_slice %182 {offsets = [0, 0], sizes = [8, 128], strides = [1, 1]} : vector<128x128xf32> to vector<8x128xf32>
      %188 = arith.truncf %187 : vector<8x128xf32> to vector<8x128xbf16>
      %c0_63 = arith.constant 0 : index
      %c0_64 = arith.constant 0 : index
      %189 = vector.load %arg8[%c0_63, %c0_64] : memref<128x256xbf16, #tpu.memory_space<vmem>>, vector<128x256xbf16>
      %cst_65 = arith.constant dense<0.000000e+00> : vector<8x256xf32>
      %190 = tpu.matmul %188, %189, %cst_65 {dimension_numbers = #tpu.dot_dimension_numbers<[1], [0], [0], [1], [0, 0, 1, 1], [], []>} : vector<8x128xbf16>, vector<128x256xbf16>, vector<8x256xf32> -> vector<8x256xf32>
      %c0_66 = arith.constant 0 : index
      %c0_67 = arith.constant 0 : index
      %191 = vector.load %arg9[%c0_66, %c0_67] : memref<1x256xf32, #tpu.memory_space<vmem>>, vector<1x256xf32>
      %192 = vector.broadcast %191 : vector<1x256xf32> to vector<8x256xf32>
      %193 = arith.addf %190, %192 : vector<8x256xf32>
      %194 = arith.truncf %193 : vector<8x256xf32> to vector<8x256xbf16>
      %c0_68 = arith.constant 0 : index
      %c0_69 = arith.constant 0 : index
      %195 = vector.load %arg10[%c0_68, %c0_69] : memref<256x128xbf16, #tpu.memory_space<vmem>>, vector<256x128xbf16>
      %cst_70 = arith.constant dense<0.000000e+00> : vector<8x128xf32>
      %196 = tpu.matmul %194, %195, %cst_70 {dimension_numbers = #tpu.dot_dimension_numbers<[1], [0], [0], [1], [0, 0, 1, 1], [], []>} : vector<8x256xbf16>, vector<256x128xbf16>, vector<8x128xf32> -> vector<8x128xf32>
      %c0_71 = arith.constant 0 : index
      %c0_72 = arith.constant 0 : index
      %197 = vector.load %arg11[%c0_71, %c0_72] : memref<1x128xf32, #tpu.memory_space<vmem>>, vector<1x128xf32>
      %198 = vector.broadcast %197 : vector<1x128xf32> to vector<8x128xf32>
      %199 = arith.addf %196, %198 : vector<8x128xf32>
      %c0_73 = arith.constant 0 : index
      %c0_74 = arith.constant 0 : index
      %c0_75 = arith.constant 0 : index
      %200 = vector.load %arg12[%c0_73, %c0_74, %c0_75] : memref<1x8x128xf32, #tpu.memory_space<vmem>>, vector<1x8x128xf32>
      %201 = vector.shape_cast %200 : vector<1x8x128xf32> to vector<8x128xf32>
      %202 = vector.shape_cast %199 : vector<8x128xf32> to vector<1x8x128xf32>
      tpu.vector_store %arg12[%c0_73, %c0_74, %c0_75], %202 {strides = array<i32>} : memref<1x8x128xf32, #tpu.memory_space<vmem>>, vector<1x8x128xf32>,
    } else {
    }
    return
  }
  func.func @transform_0(%arg0: i32, %arg1: i32) -> (i32, i32, i32) {
    %c0_i32 = arith.constant 0 : i32
    %c0_i32_0 = arith.constant 0 : i32
    %c0_i32_1 = arith.constant 0 : i32
    return %arg0, %c0_i32, %c0_i32_0 : i32, i32, i32
  }
  func.func @transform_1(%arg0: i32, %arg1: i32) -> (i32, i32, i32) {
    %c0_i32 = arith.constant 0 : i32
    %c0_i32_0 = arith.constant 0 : i32
    %c0_i32_1 = arith.constant 0 : i32
    return %arg1, %c0_i32, %c0_i32_0 : i32, i32, i32
  }
  func.func @transform_2(%arg0: i32, %arg1: i32) -> (i32, i32, i32) {
    %c0_i32 = arith.constant 0 : i32
    %c0_i32_0 = arith.constant 0 : i32
    %c0_i32_1 = arith.constant 0 : i32
    return %arg1, %c0_i32, %c0_i32_0 : i32, i32, i32
  }
  func.func @transform_3(%arg0: i32, %arg1: i32) -> (i32, i32, i32) {
    %c0_i32 = arith.constant 0 : i32
    %c0_i32_0 = arith.constant 0 : i32
    %c0_i32_1 = arith.constant 0 : i32
    return %arg1, %c0_i32, %c0_i32_0 : i32, i32, i32
  }
  func.func @transform_4(%arg0: i32, %arg1: i32) -> (i32, i32, i32) {
    %c0_i32 = arith.constant 0 : i32
    %c0_i32_0 = arith.constant 0 : i32
    %c0_i32_1 = arith.constant 0 : i32
    return %arg1, %c0_i32, %c0_i32_0 : i32, i32, i32
  }
  func.func @transform_5(%arg0: i32, %arg1: i32) -> (i32, i32, i32) {
    %c0_i32 = arith.constant 0 : i32
    %c0_i32_0 = arith.constant 0 : i32
    %c0_i32_1 = arith.constant 0 : i32
    return %arg1, %c0_i32, %c0_i32_0 : i32, i32, i32
  }
  func.func @transform_6(%arg0: i32, %arg1: i32) -> (i32, i32) {
    %c0_i32 = arith.constant 0 : i32
    %c0_i32_0 = arith.constant 0 : i32
    %c0_i32_1 = arith.constant 0 : i32
    return %c0_i32, %c0_i32_0 : i32, i32
  }
  func.func @transform_7(%arg0: i32, %arg1: i32) -> (i32, i32) {
    %c0_i32 = arith.constant 0 : i32
    %c0_i32_0 = arith.constant 0 : i32
    %c0_i32_1 = arith.constant 0 : i32
    return %c0_i32, %c0_i32_0 : i32, i32
  }
  func.func @transform_8(%arg0: i32, %arg1: i32) -> (i32, i32) {
    %c0_i32 = arith.constant 0 : i32
    %c0_i32_0 = arith.constant 0 : i32
    %c0_i32_1 = arith.constant 0 : i32
    return %c0_i32, %c0_i32_0 : i32, i32
  }
  func.func @transform_9(%arg0: i32, %arg1: i32) -> (i32, i32) {
    %c0_i32 = arith.constant 0 : i32
    %c0_i32_0 = arith.constant 0 : i32
    %c0_i32_1 = arith.constant 0 : i32
    return %c0_i32, %c0_i32_0 : i32, i32
  }
  func.func @transform_10(%arg0: i32, %arg1: i32) -> (i32, i32, i32) {
    %c0_i32 = arith.constant 0 : i32
    %c0_i32_0 = arith.constant 0 : i32
    %c0_i32_1 = arith.constant 0 : i32
    return %arg0, %c0_i32, %c0_i32_0 : i32, i32, i32
  }
}

</mosaic_0001>

<llo_original>
// kernel: tpu_custom_call.1
$region0: #{tpu_custom_call.1}
  #allocation0 [shape = 'u32[]', space=smem, size = 0x4, offset = 0x4, fixed_abs, tag = 'smem constant byte address 0x4 - core index']
  #allocation1 [shape = 'u32[144,128]{1,0:T(1,128)}', space=vmem, size = 0x12000, scoped, tag = 'internal scratch']
  #allocation2 [shape = 'f32[128,128]{1,0:T(8,128)}', space=vmem, size = 0x10000, scoped, tag = 'scratch operand']
  %s0 = inlined_call_operand.hbm [shape: f32[2,128,128], index: 0, kind: input, shape index: {}]
  %s1 = inlined_call_operand.hbm [shape: bf16[2,128,384], index: 1, kind: input, shape index: {}]
  %s2 = inlined_call_operand.hbm [shape: bf16[2,128,128], index: 2, kind: input, shape index: {}]
  %s3 = inlined_call_operand.hbm [shape: bf16[2,128,512], index: 3, kind: input, shape index: {}]
  %s4 = inlined_call_operand.hbm [shape: bf16[2,512,128], index: 4, kind: input, shape index: {}]
  %s5 = inlined_call_operand.hbm [shape: f32[2,8,512], index: 5, kind: input, shape index: {}]
  %s6 = inlined_call_operand.hbm [shape: bf16[128,256], index: 6, kind: input, shape index: {}]
  %s7 = inlined_call_operand.vmem [shape: f32[1,256], index: 7, kind: input, shape index: {}]
  %s8 = inlined_call_operand.hbm [shape: bf16[256,128], index: 8, kind: input, shape index: {}]
  %s9 = inlined_call_operand.vmem [shape: f32[1,128], index: 9, kind: input, shape index: {}]
  %s10 = inlined_call_operand.hbm [shape: f32[2,8,128], index: 10, kind: output, shape index: {}]
  %s11 = sld [smem:[#allocation0]]
  $region113: #{tpu_custom_call.1} parent=0
    _
  %s13 = ssub.s32 1, %s11
  %s14 = scalar_select 0, %s13, %s11
  $region1: #{tpu_custom_call.1} parent=0
    #allocation3 [shape = 'u8[131072]{0}', space=vmem, size = 0x20000, scoped, tag = 'input window, operand 0']
    #allocation4 [shape = 's32[2]{0}', space=sflag, size = 0x8, scoped, tag = 'scoped memory for tpu_custom_call.1']
    #allocation5 [shape = 's32[2]{0}', space=sflag, size = 0x8, scoped, tag = 'scoped memory for tpu_custom_call.1']
    #allocation6 [shape = 'u8[196608]{0}', space=vmem, size = 0x30000, scoped, tag = 'input window, operand 1']
    #allocation7 [shape = 's32[2]{0}', space=sflag, size = 0x8, scoped, tag = 'scoped memory for tpu_custom_call.1']
    #allocation8 [shape = 'u8[65536]{0}', space=vmem, size = 0x10000, scoped, tag = 'input window, operand 2']
    #allocation9 [shape = 'u8[262144]{0}', space=vmem, size = 0x40000, scoped, tag = 'input window, operand 3']
    #allocation10 [shape = 's32[2]{0}', space=sflag, size = 0x8, scoped, tag = 'scoped memory for tpu_custom_call.1']
    #allocation11 [shape = 'u8[262144]{0}', space=vmem, size = 0x40000, scoped, tag = 'input window, operand 4']
    #allocation12 [shape = 'u8[32768]{0}', space=vmem, size = 0x8000, scoped, tag = 'input window, operand 5']
    #allocation13 [shape = 's32[2]{0}', space=sflag, size = 0x8, scoped, tag = 'scoped memory for tpu_custom_call.1']
    #allocation14 [shape = 'u8[65536]{0}', space=vmem, size = 0x10000, scoped, tag = 'input window, operand 6, single buffered']
    #allocation15 [shape = 'u8[65536]{0}', space=vmem, size = 0x10000, scoped, tag = 'input window, operand 8, single buffered']
    #allocation16 [shape = 's32[1]{0}', space=sflag, size = 0x4, scoped, tag = 'scoped memory for tpu_custom_call.1']
    #allocation17 [shape = 'u8[8192]{0}', space=vmem, size = 0x2000, scoped, tag = 'output window, operand 0']
    %15 = vsyncpa [#allocation4], 0
    %s16 = scalar_lea.sflag [#allocation4], 1
    %17 = vsyncpa %s16, 0
    %18 = vsyncpa [#allocation7], 0
    %s19 = scalar_lea.sflag [#allocation7], 1
    %20 = vsyncpa %s19, 0
    %21 = vsyncpa [#allocation10], 0
    %s22 = scalar_lea.sflag [#allocation10], 1
    %23 = vsyncpa %s22, 0
    %24 = vsyncpa [#allocation13], 0
    %s25 = scalar_lea.sflag [#allocation13], 1
    %26 = vsyncpa %s25, 0
    %27 = vsyncpa [#allocation16], 0
    %28 = vsyncpa [#allocation5], 0
    %s29 = scalar_lea.sflag [#allocation5], 1
    %30 = vsyncpa %s29, 0
    loop: start=0, step=1, limit=6
    $region2: #{tpu_custom_call.1} parent=1 // loop_pre_header
      _
    $region3: #{tpu_custom_call.1} parent=1 // loop_header
      %s32 = sphi 0, %s36
      %p33 = scmp.ge.s32.totalorder %s32, 6
      %s39 = sphi 0, %s51
      %s40 = sphi 0, %s47
      %s41 = sphi 0, %s39
      %s42 = sphi 0, %s40
      %s43 = sphi 0, %s41
      %s44 = sphi 0, %s42
      %s54 = sphi 0, %s56
      %s57 = sphi 0, %s54
      %s58 = sphi 0, %s57
      %s74 = sphi 0, %s58
      %s80 = sphi 0, %s82
      %s83 = sphi 0, %s80
      %s84 = sphi 0, %s83
      %s100 = sphi 0, %s84
      %s106 = sphi 0, %s108
      %s109 = sphi 0, %s106
      %s110 = sphi 0, %s109
      %s126 = sphi 0, %s110
      %s132 = sphi 0, %s134
      %s135 = sphi 0, %s132
      %s136 = sphi 0, %s135
      %s152 = sphi 0, %s136
      %s158 = sphi 0, %s160
      %s161 = sphi 0, %s158
      %s162 = sphi 0, %s161
      %s178 = sphi 0, %s162
      %s184 = sphi 0, %s186
      %s187 = sphi 0, %s184
      %s188 = sphi 0, %s187
      %s204 = sphi 0, %s188
      %s208 = sphi 0, %s208
      %s210 = sphi 0, %s208
      %s211 = sphi 0, %s210
      %s225 = sphi 0, %s211
      %s229 = sphi 0, %s229
      %s231 = sphi 0, %s229
      %s232 = sphi 0, %s231
      %s246 = sphi 0, %s232
      %s250 = sphi 0, %s250
      %s252 = sphi 0, %s250
      %s253 = sphi 0, %s252
      %s267 = sphi 0, %s253
      %s271 = sphi 0, %s271
      %s273 = sphi 0, %s271
      %s274 = sphi 0, %s273
      %s288 = sphi 0, %s274
      %s294 = sphi 0, %s296
      %s297 = sphi 0, %s294
      %s298 = sphi 0, %s297
      %s314 = sphi 0, %s298
    $region4: #{tpu_custom_call.1} parent=1 // loop_header_branch
      %35 = sbr.rel (%p33) target = $region8
    $region5: #{tpu_custom_call.1} parent=1 // loop_body
      %s37 = ssub.s32 %s32, 1
      %s38 = ssub.s32 %s32, 2
      %s45 = sadd.s32 1, %s40
      %p46 = scmp.ge.s32.totalorder %s45, 2
      %s47 = scalar_select %p46, 0, %s45
      %s48 = sadd.s32 1, %s39
      %s49 = scalar_select %p46, %s48, %s39
      %p50 = scmp.ge.s32.totalorder %s49, 2
      %s51 = scalar_select %p50, 0, %s49
      %s52 = ssub.s32 %s39, %s51
      %p53 = scmp.eq.s32.totalorder %s52, 0
      %s55 = sadd.s32 %s54, 1
      %s56 = scalar_select %p53, %s54, %s55
      %p59 = pneg %p53
      %p60 = scmp.eq.s32.totalorder %s32, 3
      %p61 = por %p59, %p60
      %p62 = scmp.ne.s32.totalorder %s54, %s57
      %p63 = scmp.eq.s32.totalorder %s32, 0
      %p64 = por %p62, %p63
      %p65 = scmp.ne.s32.totalorder %s54, %s57
      %p66 = scmp.eq.s32.totalorder %s37, 3
      %p67 = por %p65, %p66
      %p68 = scmp.ne.s32.totalorder %s57, %s58
      %p69 = scmp.eq.s32.totalorder %s37, 0
      %p70 = por %p68, %p69
      %p71 = scmp.ne.s32.totalorder %s57, %s58
      %p72 = scmp.eq.s32.totalorder %s38, 3
      %p73 = por %p71, %p72
      %p75 = scmp.ne.s32.totalorder %s58, %s74
      %p76 = scmp.eq.s32.totalorder %s38, 0
      %p77 = por %p75, %p76
      %s78 = ssub.s32 %s40, %s47
      %p79 = scmp.eq.s32.totalorder %s78, 0
      %s81 = sadd.s32 %s80, 1
      %s82 = scalar_select %p79, %s80, %s81
      %p85 = pneg %p79
      %p86 = scmp.eq.s32.totalorder %s32, 3
      %p87 = por %p85, %p86
      %p88 = scmp.ne.s32.totalorder %s80, %s83
      %p89 = scmp.eq.s32.totalorder %s32, 0
      %p90 = por %p88, %p89
      %p91 = scmp.ne.s32.totalorder %s80, %s83
      %p92 = scmp.eq.s32.totalorder %s37, 3
      %p93 = por %p91, %p92
      %p94 = scmp.ne.s32.totalorder %s83, %s84
      %p95 = scmp.eq.s32.totalorder %s37, 0
      %p96 = por %p94, %p95
      %p97 = scmp.ne.s32.totalorder %s83, %s84
      %p98 = scmp.eq.s32.totalorder %s38, 3
      %p99 = por %p97, %p98
      %p101 = scmp.ne.s32.totalorder %s84, %s100
      %p102 = scmp.eq.s32.totalorder %s38, 0
      %p103 = por %p101, %p102
      %s104 = ssub.s32 %s40, %s47
      %p105 = scmp.eq.s32.totalorder %s104, 0
      %s107 = sadd.s32 %s106, 1
      %s108 = scalar_select %p105, %s106, %s107
      %p111 = pneg %p105
      %p112 = scmp.eq.s32.totalorder %s32, 3
      %p113 = por %p111, %p112
      %p114 = scmp.ne.s32.totalorder %s106, %s109
      %p115 = scmp.eq.s32.totalorder %s32, 0
      %p116 = por %p114, %p115
      %p117 = scmp.ne.s32.totalorder %s106, %s109
      %p118 = scmp.eq.s32.totalorder %s37, 3
      %p119 = por %p117, %p118
      %p120 = scmp.ne.s32.totalorder %s109, %s110
      %p121 = scmp.eq.s32.totalorder %s37, 0
      %p122 = por %p120, %p121
      %p123 = scmp.ne.s32.totalorder %s109, %s110
      %p124 = scmp.eq.s32.totalorder %s38, 3
      %p125 = por %p123, %p124
      %p127 = scmp.ne.s32.totalorder %s110, %s126
      %p128 = scmp.eq.s32.totalorder %s38, 0
      %p129 = por %p127, %p128
      %s130 = ssub.s32 %s40, %s47
      %p131 = scmp.eq.s32.totalorder %s130, 0
      %s133 = sadd.s32 %s132, 1
      %s134 = scalar_select %p131, %s132, %s133
      %p137 = pneg %p131
      %p138 = scmp.eq.s32.totalorder %s32, 3
      %p139 = por %p137, %p138
      %p140 = scmp.ne.s32.totalorder %s132, %s135
      %p141 = scmp.eq.s32.totalorder %s32, 0
      %p142 = por %p140, %p141
      %p143 = scmp.ne.s32.totalorder %s132, %s135
      %p144 = scmp.eq.s32.totalorder %s37, 3
      %p145 = por %p143, %p144
      %p146 = scmp.ne.s32.totalorder %s135, %s136
      %p147 = scmp.eq.s32.totalorder %s37, 0
      %p148 = por %p146, %p147
      %p149 = scmp.ne.s32.totalorder %s135, %s136
      %p150 = scmp.eq.s32.totalorder %s38, 3
      %p151 = por %p149, %p150
      %p153 = scmp.ne.s32.totalorder %s136, %s152
      %p154 = scmp.eq.s32.totalorder %s38, 0
      %p155 = por %p153, %p154
      %s156 = ssub.s32 %s40, %s47
      %p157 = scmp.eq.s32.totalorder %s156, 0
      %s159 = sadd.s32 %s158, 1
      %s160 = scalar_select %p157, %s158, %s159
      %p163 = pneg %p157
      %p164 = scmp.eq.s32.totalorder %s32, 3
      %p165 = por %p163, %p164
      %p166 = scmp.ne.s32.totalorder %s158, %s161
      %p167 = scmp.eq.s32.totalorder %s32, 0
      %p168 = por %p166, %p167
      %p169 = scmp.ne.s32.totalorder %s158, %s161
      %p170 = scmp.eq.s32.totalorder %s37, 3
      %p171 = por %p169, %p170
      %p172 = scmp.ne.s32.totalorder %s161, %s162
      %p173 = scmp.eq.s32.totalorder %s37, 0
      %p174 = por %p172, %p173
      %p175 = scmp.ne.s32.totalorder %s161, %s162
      %p176 = scmp.eq.s32.totalorder %s38, 3
      %p177 = por %p175, %p176
      %p179 = scmp.ne.s32.totalorder %s162, %s178
      %p180 = scmp.eq.s32.totalorder %s38, 0
      %p181 = por %p179, %p180
      %s182 = ssub.s32 %s40, %s47
      %p183 = scmp.eq.s32.totalorder %s182, 0
      %s185 = sadd.s32 %s184, 1
      %s186 = scalar_select %p183, %s184, %s185
      %p189 = pneg %p183
      %p190 = scmp.eq.s32.totalorder %s32, 3
      %p191 = por %p189, %p190
      %p192 = scmp.ne.s32.totalorder %s184, %s187
      %p193 = scmp.eq.s32.totalorder %s32, 0
      %p194 = por %p192, %p193
      %p195 = scmp.ne.s32.totalorder %s184, %s187
      %p196 = scmp.eq.s32.totalorder %s37, 3
      %p197 = por %p195, %p196
      %p198 = scmp.ne.s32.totalorder %s187, %s188
      %p199 = scmp.eq.s32.totalorder %s37, 0
      %p200 = por %p198, %p199
      %p201 = scmp.ne.s32.totalorder %s187, %s188
      %p202 = scmp.eq.s32.totalorder %s38, 3
      %p203 = por %p201, %p202
      %p205 = scmp.ne.s32.totalorder %s188, %s204
      %p206 = scmp.eq.s32.totalorder %s38, 0
      %p207 = por %p205, %p206
      %s209 = sadd.s32 %s208, 1
      %p212 = scmp.eq.s32.totalorder %s32, 3
      %p213 = scmp.ne.s32.totalorder %s208, %s210
      %p214 = scmp.eq.s32.totalorder %s32, 0
      %p215 = por %p213, %p214
      %p216 = scmp.ne.s32.totalorder %s208, %s210
      %p217 = scmp.eq.s32.totalorder %s37, 3
      %p218 = por %p216, %p217
      %p219 = scmp.ne.s32.totalorder %s210, %s211
      %p220 = scmp.eq.s32.totalorder %s37, 0
      %p221 = por %p219, %p220
      %p222 = scmp.ne.s32.totalorder %s210, %s211
      %p223 = scmp.eq.s32.totalorder %s38, 3
      %p224 = por %p222, %p223
      %p226 = scmp.ne.s32.totalorder %s211, %s225
      %p227 = scmp.eq.s32.totalorder %s38, 0
      %p228 = por %p226, %p227
      %s230 = sadd.s32 %s229, 1
      %p233 = scmp.eq.s32.totalorder %s32, 3
      %p234 = scmp.ne.s32.totalorder %s229, %s231
      %p235 = scmp.eq.s32.totalorder %s32, 0
      %p236 = por %p234, %p235
      %p237 = scmp.ne.s32.totalorder %s229, %s231
      %p238 = scmp.eq.s32.totalorder %s37, 3
      %p239 = por %p237, %p238
      %p240 = scmp.ne.s32.totalorder %s231, %s232
      %p241 = scmp.eq.s32.totalorder %s37, 0
      %p242 = por %p240, %p241
      %p243 = scmp.ne.s32.totalorder %s231, %s232
      %p244 = scmp.eq.s32.totalorder %s38, 3
      %p245 = por %p243, %p244
      %p247 = scmp.ne.s32.totalorder %s232, %s246
      %p248 = scmp.eq.s32.totalorder %s38, 0
      %p249 = por %p247, %p248
      %s251 = sadd.s32 %s250, 1
      %p254 = scmp.eq.s32.totalorder %s32, 3
      %p255 = scmp.ne.s32.totalorder %s250, %s252
      %p256 = scmp.eq.s32.totalorder %s32, 0
      %p257 = por %p255, %p256
      %p258 = scmp.ne.s32.totalorder %s250, %s252
      %p259 = scmp.eq.s32.totalorder %s37, 3
      %p260 = por %p258, %p259
      %p261 = scmp.ne.s32.totalorder %s252, %s253
      %p262 = scmp.eq.s32.totalorder %s37, 0
      %p263 = por %p261, %p262
      %p264 = scmp.ne.s32.totalorder %s252, %s253
      %p265 = scmp.eq.s32.totalorder %s38, 3
      %p266 = por %p264, %p265
      %p268 = scmp.ne.s32.totalorder %s253, %s267
      %p269 = scmp.eq.s32.totalorder %s38, 0
      %p270 = por %p268, %p269
      %s272 = sadd.s32 %s271, 1
      %p275 = scmp.eq.s32.totalorder %s32, 3
      %p276 = scmp.ne.s32.totalorder %s271, %s273
      %p277 = scmp.eq.s32.totalorder %s32, 0
      %p278 = por %p276, %p277
      %p279 = scmp.ne.s32.totalorder %s271, %s273
      %p280 = scmp.eq.s32.totalorder %s37, 3
      %p281 = por %p279, %p280
      %p282 = scmp.ne.s32.totalorder %s273, %s274
      %p283 = scmp.eq.s32.totalorder %s37, 0
      %p284 = por %p282, %p283
      %p285 = scmp.ne.s32.totalorder %s273, %s274
      %p286 = scmp.eq.s32.totalorder %s38, 3
      %p287 = por %p285, %p286
      %p289 = scmp.ne.s32.totalorder %s274, %s288
      %p290 = scmp.eq.s32.totalorder %s38, 0
      %p291 = por %p289, %p290
      %s292 = ssub.s32 %s39, %s51
      %p293 = scmp.eq.s32.totalorder %s292, 0
      %s295 = sadd.s32 %s294, 1
      %s296 = scalar_select %p293, %s294, %s295
      %p299 = pneg %p293
      %p300 = scmp.eq.s32.totalorder %s32, 3
      %p301 = por %p299, %p300
      %p302 = scmp.ne.s32.totalorder %s294, %s297
      %p303 = scmp.eq.s32.totalorder %s32, 0
      %p304 = por %p302, %p303
      %p305 = scmp.ne.s32.totalorder %s294, %s297
      %p306 = scmp.eq.s32.totalorder %s37, 3
      %p307 = por %p305, %p306
      %p308 = scmp.ne.s32.totalorder %s297, %s298
      %p309 = scmp.eq.s32.totalorder %s37, 0
      %p310 = por %p308, %p309
      %p311 = scmp.ne.s32.totalorder %s297, %s298
      %p312 = scmp.eq.s32.totalorder %s38, 3
      %p313 = por %p311, %p312
      %p315 = scmp.ne.s32.totalorder %s298, %s314
      %p316 = scmp.eq.s32.totalorder %s38, 0
      %p317 = por %p315, %p316
      %p318 = scmp.le.s32.totalorder 1, %s32
      %p319 = scmp.lt.s32.totalorder %s32, 5
      %p320 = pnand %p318, %p319
      %p321 = pneg %p320
      // Predicated region
      $region9: #{tpu_custom_call.1} parent=5 // pred_check
        _
      $region10: #{tpu_custom_call.1} parent=5 // pred_check_branch
        %323 = sbr.rel (%p320) target = $region12
      $region11: #{tpu_custom_call.1} parent=5 // pred_region
        %s324 = ssub.s32 %s32, 1
        // Predicated region
        $region13: #{tpu_custom_call.1} parent=11 // pred_check
          %p325 = pneg %p221
        $region14: #{tpu_custom_call.1} parent=11 // pred_check_branch
          %327 = sbr.rel (%p325) target = $region16
        $region15: #{tpu_custom_call.1} parent=11 // pred_region
          %s329 = ssub.s32 2048, 2048
          %330 = vsyncadd [#allocation13], %s329
          %s331 = sshll.u32 [#allocation14], 4
          %s332 = int_to_ptr.vmem [resolvable:$true] %s331
          %337 = dma.hbm_to_vmem [thread:$0]  %s6, 2048, %s332, [#allocation13], 128, 128, 8
        $region16: #{tpu_custom_call.1} parent=11 // pred_fallthru
          _
        // Predicated region
        $region17: #{tpu_custom_call.1} parent=11 // pred_check
          %p338 = pneg %p242
        $region18: #{tpu_custom_call.1} parent=11 // pred_check_branch
          %340 = sbr.rel (%p338) target = $region20
        $region19: #{tpu_custom_call.1} parent=11 // pred_region
          _
        $region20: #{tpu_custom_call.1} parent=11 // pred_fallthru
          _
        // Predicated region
        $region21: #{tpu_custom_call.1} parent=11 // pred_check
          %p341 = pneg %p263
        $region22: #{tpu_custom_call.1} parent=11 // pred_check_branch
          %343 = sbr.rel (%p341) target = $region24
        $region23: #{tpu_custom_call.1} parent=11 // pred_region
          %s345 = ssub.s32 2048, 2048
          %346 = vsyncadd [#allocation16], %s345
          %s347 = sshll.u32 [#allocation15], 4
          %s348 = int_to_ptr.vmem [resolvable:$true] %s347
          %353 = dma.hbm_to_vmem [thread:$0]  %s8, 2048, %s348, [#allocation16], 64, 64, 4
        $region24: #{tpu_custom_call.1} parent=11 // pred_fallthru
          _
        // Predicated region
        $region25: #{tpu_custom_call.1} parent=11 // pred_check
          %p354 = pneg %p284
        $region26: #{tpu_custom_call.1} parent=11 // pred_check_branch
          %356 = sbr.rel (%p354) target = $region28
        $region27: #{tpu_custom_call.1} parent=11 // pred_region
          _
        $region28: #{tpu_custom_call.1} parent=11 // pred_fallthru
          _
      $region12: #{tpu_custom_call.1} parent=5 // pred_fallthru
        _
      %p357 = scmp.lt.s32.totalorder %s32, 4
      // Predicated region
      $region29: #{tpu_custom_call.1} parent=5 // pred_check
        %p358 = pneg %p357
      $region30: #{tpu_custom_call.1} parent=5 // pred_check_branch
        %360 = sbr.rel (%p358) target = $region32
      $region31: #{tpu_custom_call.1} parent=5 // pred_region
        // Predicated region
        $region33: #{tpu_custom_call.1} parent=31 // pred_check
          %p361 = pneg %p64
        $region34: #{tpu_custom_call.1} parent=31 // pred_check_branch
          %363 = sbr.rel (%p361) target = $region36
        $region35: #{tpu_custom_call.1} parent=31 // pred_region
          %s364 = sand.u32 %s54, 1
          %s365 = scalar_lea.sflag [#allocation4], %s364
          %s366 = sand.u32 %s54, 1
          %s367 = smul.addr %s366, 128
          %s368 = scalar_lea.vmem [#allocation3], %s367
          %s370 = ssub.s32 2048, 2048
          %371 = vsyncadd %s365, %s370
          %s372 = smul.addr %s39, 16
          %s373 = smul.addr %s372, 128
          %s374 = scalar_lea.hbm %s0, %s373
          %s375 = sshll.u32 %s368, 4
          %s376 = int_to_ptr.vmem [resolvable:$true] %s375
          %381 = dma.hbm_to_vmem [thread:$0]  %s374, 2048, %s376, %s365, 128, 128, 8
        $region36: #{tpu_custom_call.1} parent=31 // pred_fallthru
          _
        // Predicated region
        $region37: #{tpu_custom_call.1} parent=31 // pred_check
          %p382 = pneg %p90
        $region38: #{tpu_custom_call.1} parent=31 // pred_check_branch
          %384 = sbr.rel (%p382) target = $region40
        $region39: #{tpu_custom_call.1} parent=31 // pred_region
          %s385 = sand.u32 %s32, 1
          %s386 = scalar_lea.sflag [#allocation7], %s385
          %s387 = sand.u32 %s80, 1
          %s388 = smul.addr %s387, 192
          %s389 = scalar_lea.vmem [#allocation6], %s388
          %s391 = ssub.s32 3072, 3072
          %392 = vsyncadd %s386, %s391
          %s393 = smul.addr %s40, 48
          %s394 = smul.addr %s393, 64
          %s395 = scalar_lea.hbm %s1, %s394
          %s396 = sshll.u32 %s389, 4
          %s397 = int_to_ptr.vmem [resolvable:$true] %s396
          %402 = dma.hbm_to_vmem [thread:$0]  %s395, 3072, %s397, %s386, 192, 192, 12
        $region40: #{tpu_custom_call.1} parent=31 // pred_fallthru
          _
        // Predicated region
        $region41: #{tpu_custom_call.1} parent=31 // pred_check
          %p403 = pneg %p116
        $region42: #{tpu_custom_call.1} parent=31 // pred_check_branch
          %405 = sbr.rel (%p403) target = $region44
        $region43: #{tpu_custom_call.1} parent=31 // pred_region
          %s406 = sand.u32 %s32, 1
          %s407 = scalar_lea.sflag [#allocation7], %s406
          %s408 = sand.u32 %s106, 1
          %s409 = smul.addr %s408, 64
          %s410 = scalar_lea.vmem [#allocation8], %s409
          %s412 = ssub.s32 1024, 1024
          %413 = vsyncadd %s407, %s412
          %s414 = smul.addr %s40, 16
          %s415 = smul.addr %s414, 64
          %s416 = scalar_lea.hbm %s2, %s415
          %s417 = sshll.u32 %s410, 4
          %s418 = int_to_ptr.vmem [resolvable:$true] %s417
          %423 = dma.hbm_to_vmem [thread:$0]  %s416, 1024, %s418, %s407, 64, 64, 4
        $region44: #{tpu_custom_call.1} parent=31 // pred_fallthru
          _
        // Predicated region
        $region45: #{tpu_custom_call.1} parent=31 // pred_check
          %p424 = pneg %p142
        $region46: #{tpu_custom_call.1} parent=31 // pred_check_branch
          %426 = sbr.rel (%p424) target = $region48
        $region47: #{tpu_custom_call.1} parent=31 // pred_region
          %s427 = sand.u32 %s32, 1
          %s428 = scalar_lea.sflag [#allocation10], %s427
          %s429 = sand.u32 %s132, 1
          %s430 = smul.addr %s429, 256
          %s431 = scalar_lea.vmem [#allocation9], %s430
          %s433 = ssub.s32 4096, 4096
          %434 = vsyncadd %s428, %s433
          %s435 = smul.addr %s40, 64
          %s436 = smul.addr %s435, 64
          %s437 = scalar_lea.hbm %s3, %s436
          %s438 = sshll.u32 %s431, 4
          %s439 = int_to_ptr.vmem [resolvable:$true] %s438
          %444 = dma.hbm_to_vmem [thread:$0]  %s437, 4096, %s439, %s428, 256, 256, 16
        $region48: #{tpu_custom_call.1} parent=31 // pred_fallthru
          _
        // Predicated region
        $region49: #{tpu_custom_call.1} parent=31 // pred_check
          %p445 = pneg %p168
        $region50: #{tpu_custom_call.1} parent=31 // pred_check_branch
          %447 = sbr.rel (%p445) target = $region52
        $region51: #{tpu_custom_call.1} parent=31 // pred_region
          %s448 = sand.u32 %s32, 1
          %s449 = scalar_lea.sflag [#allocation10], %s448
          %s450 = sand.u32 %s158, 1
          %s451 = smul.addr %s450, 256
          %s452 = scalar_lea.vmem [#allocation11], %s451
          %s454 = ssub.s32 4096, 4096
          %455 = vsyncadd %s449, %s454
          %s456 = smul.addr %s40, 64
          %s457 = smul.addr %s456, 64
          %s458 = scalar_lea.hbm %s4, %s457
          %s459 = sshll.u32 %s452, 4
          %s460 = int_to_ptr.vmem [resolvable:$true] %s459
          %465 = dma.hbm_to_vmem [thread:$0]  %s458, 4096, %s460, %s449, 64, 64, 4
        $region52: #{tpu_custom_call.1} parent=31 // pred_fallthru
          _
        // Predicated region
        $region53: #{tpu_custom_call.1} parent=31 // pred_check
          %p466 = pneg %p194
        $region54: #{tpu_custom_call.1} parent=31 // pred_check_branch
          %468 = sbr.rel (%p466) target = $region56
        $region55: #{tpu_custom_call.1} parent=31 // pred_region
          %s469 = sand.u32 %s32, 1
          %s470 = scalar_lea.sflag [#allocation13], %s469
          %s471 = sand.u32 %s184, 1
          %s472 = smul.addr %s471, 32
          %s473 = scalar_lea.vmem [#allocation12], %s472
          %s475 = ssub.s32 512, 512
          %476 = vsyncadd %s470, %s475
          %s477 = smul.addr %s40, 4
          %s478 = smul.addr %s477, 128
          %s479 = scalar_lea.hbm %s5, %s478
          %s481 = sshll.u32 %s473, 4
          %s482 = int_to_ptr.vmem [resolvable:$true] %s481
          %484 = dma.hbm_to_vmem [thread:$0]  %s479, 512, %s482, %s470
        $region56: #{tpu_custom_call.1} parent=31 // pred_fallthru
          _
      $region32: #{tpu_custom_call.1} parent=5 // pred_fallthru
        _
      %p485 = scmp.le.s32.totalorder 1, %s32
      %p486 = scmp.lt.s32.totalorder %s32, 5
      %p487 = pnand %p485, %p486
      %p488 = pneg %p487
      // Predicated region
      $region57: #{tpu_custom_call.1} parent=5 // pred_check
        _
      $region58: #{tpu_custom_call.1} parent=5 // pred_check_branch
        %490 = sbr.rel (%p487) target = $region60
      $region59: #{tpu_custom_call.1} parent=5 // pred_region
        %s491 = ssub.s32 %s32, 1
        %s492 = sand.u32 %s57, 1
        %s493 = scalar_lea.sflag [#allocation4], %s492
        %s494 = sand.u32 %s57, 1
        %s495 = smul.addr %s494, 128
        %s496 = scalar_lea.vmem [#allocation3], %s495
        // Predicated region
        $region61: #{tpu_custom_call.1} parent=59 // pred_check
          %p497 = pneg %p70
        $region62: #{tpu_custom_call.1} parent=59 // pred_check_branch
          %499 = sbr.rel (%p497) target = $region64
        $region63: #{tpu_custom_call.1} parent=59 // pred_region
          %500 = dma.done %s493, 2048
        $region64: #{tpu_custom_call.1} parent=59 // pred_fallthru
          _
        %s501 = sand.u32 %s37, 1
        %s502 = scalar_lea.sflag [#allocation7], %s501
        %s503 = sand.u32 %s83, 1
        %s504 = smul.addr %s503, 192
        %s505 = scalar_lea.vmem [#allocation6], %s504
        // Predicated region
        $region65: #{tpu_custom_call.1} parent=59 // pred_check
          %p506 = pneg %p96
        $region66: #{tpu_custom_call.1} parent=59 // pred_check_branch
          %508 = sbr.rel (%p506) target = $region68
        $region67: #{tpu_custom_call.1} parent=59 // pred_region
          %509 = dma.done %s502, 3072
        $region68: #{tpu_custom_call.1} parent=59 // pred_fallthru
          _
        %s510 = sand.u32 %s37, 1
        %s511 = scalar_lea.sflag [#allocation7], %s510
        %s512 = sand.u32 %s109, 1
        %s513 = smul.addr %s512, 64
        %s514 = scalar_lea.vmem [#allocation8], %s513
        // Predicated region
        $region69: #{tpu_custom_call.1} parent=59 // pred_check
          %p515 = pneg %p122
        $region70: #{tpu_custom_call.1} parent=59 // pred_check_branch
          %517 = sbr.rel (%p515) target = $region72
        $region71: #{tpu_custom_call.1} parent=59 // pred_region
          %518 = dma.done %s511, 1024
        $region72: #{tpu_custom_call.1} parent=59 // pred_fallthru
          _
        %s519 = sand.u32 %s37, 1
        %s520 = scalar_lea.sflag [#allocation10], %s519
        %s521 = sand.u32 %s135, 1
        %s522 = smul.addr %s521, 256
        %s523 = scalar_lea.vmem [#allocation9], %s522
        // Predicated region
        $region73: #{tpu_custom_call.1} parent=59 // pred_check
          %p524 = pneg %p148
        $region74: #{tpu_custom_call.1} parent=59 // pred_check_branch
          %526 = sbr.rel (%p524) target = $region76
        $region75: #{tpu_custom_call.1} parent=59 // pred_region
          %527 = dma.done %s520, 4096
        $region76: #{tpu_custom_call.1} parent=59 // pred_fallthru
          _
        %s528 = sand.u32 %s37, 1
        %s529 = scalar_lea.sflag [#allocation10], %s528
        %s530 = sand.u32 %s161, 1
        %s531 = smul.addr %s530, 256
        %s532 = scalar_lea.vmem [#allocation11], %s531
        // Predicated region
        $region77: #{tpu_custom_call.1} parent=59 // pred_check
          %p533 = pneg %p174
        $region78: #{tpu_custom_call.1} parent=59 // pred_check_branch
          %535 = sbr.rel (%p533) target = $region80
        $region79: #{tpu_custom_call.1} parent=59 // pred_region
          %536 = dma.done %s529, 4096
        $region80: #{tpu_custom_call.1} parent=59 // pred_fallthru
          _
        %s537 = sand.u32 %s37, 1
        %s538 = scalar_lea.sflag [#allocation13], %s537
        %s539 = sand.u32 %s187, 1
        %s540 = smul.addr %s539, 32
        %s541 = scalar_lea.vmem [#allocation12], %s540
        // Predicated region
        $region81: #{tpu_custom_call.1} parent=59 // pred_check
          %p542 = pneg %p200
        $region82: #{tpu_custom_call.1} parent=59 // pred_check_branch
          %544 = sbr.rel (%p542) target = $region84
        $region83: #{tpu_custom_call.1} parent=59 // pred_region
          %545 = dma.done %s538, 512
        $region84: #{tpu_custom_call.1} parent=59 // pred_fallthru
          _
        // Predicated region
        $region85: #{tpu_custom_call.1} parent=59 // pred_check
          %p546 = pneg %p221
        $region86: #{tpu_custom_call.1} parent=59 // pred_check_branch
          %548 = sbr.rel (%p546) target = $region88
        $region87: #{tpu_custom_call.1} parent=59 // pred_region
          %549 = dma.done [#allocation13], 2048
        $region88: #{tpu_custom_call.1} parent=59 // pred_fallthru
          _
        // Predicated region
        $region89: #{tpu_custom_call.1} parent=59 // pred_check
          %p550 = pneg %p263
        $region90: #{tpu_custom_call.1} parent=59 // pred_check_branch
          %552 = sbr.rel (%p550) target = $region92
        $region91: #{tpu_custom_call.1} parent=59 // pred_region
          %553 = dma.done [#allocation16], 2048
        $region92: #{tpu_custom_call.1} parent=59 // pred_fallthru
          _
        %s554 = sand.u32 %s57, 1
        %s555 = scalar_lea.sflag [#allocation4], %s554
        %s556 = sand.u32 %s57, 1
        %s557 = smul.addr %s556, 128
        %s558 = scalar_lea.vmem [#allocation3], %s557
        %p559 = pneg %p70
        %p560 = pneg %p67
        %s561 = sand.u32 %s37, 1
        %s562 = scalar_lea.sflag [#allocation7], %s561
        %s563 = sand.u32 %s83, 1
        %s564 = smul.addr %s563, 192
        %s565 = scalar_lea.vmem [#allocation6], %s564
        %p566 = pneg %p96
        %p567 = pneg %p93
        %s568 = sand.u32 %s37, 1
        %s569 = scalar_lea.sflag [#allocation7], %s568
        %s570 = sand.u32 %s109, 1
        %s571 = smul.addr %s570, 64
        %s572 = scalar_lea.vmem [#allocation8], %s571
        %p573 = pneg %p122
        %p574 = pneg %p119
        %s575 = sand.u32 %s37, 1
        %s576 = scalar_lea.sflag [#allocation10], %s575
        %s577 = sand.u32 %s135, 1
        %s578 = smul.addr %s577, 256
        %s579 = scalar_lea.vmem [#allocation9], %s578
        %p580 = pneg %p148
        %p581 = pneg %p145
        %s582 = sand.u32 %s37, 1
        %s583 = scalar_lea.sflag [#allocation10], %s582
        %s584 = sand.u32 %s161, 1
        %s585 = smul.addr %s584, 256
        %s586 = scalar_lea.vmem [#allocation11], %s585
        %p587 = pneg %p174
        %p588 = pneg %p171
        %s589 = sand.u32 %s37, 1
        %s590 = scalar_lea.sflag [#allocation13], %s589
        %s591 = sand.u32 %s187, 1
        %s592 = smul.addr %s591, 32
        %s593 = scalar_lea.vmem [#allocation12], %s592
        %p594 = pneg %p200
        %p595 = pneg %p197
        %p596 = pneg %p221
        %p597 = pneg %p218
        %p598 = pneg %p242
        %p599 = pneg %p239
        %p600 = pneg %p263
        %p601 = pneg %p260
        %p602 = pneg %p284
        %p603 = pneg %p281
        %p604 = pneg %p310
        %p605 = pneg %p307
        %s606 = sand.u32 %s297, 1
        %s607 = scalar_lea.sflag [#allocation5], %s606
        %s608 = sand.u32 %s297, 1
        %s609 = smul.addr %s608, 8
        %s610 = scalar_lea.vmem [#allocation17], %s609
        %p612 = scmp.eq.s32.totalorder %s42, 0
        // Predicated region
        $region93: #{tpu_custom_call.1} parent=59 // pred_check
          %p613 = pneg %p612
        $region94: #{tpu_custom_call.1} parent=59 // pred_check_branch
          %615 = sbr.rel (%p613) target = $region96
        $region95: #{tpu_custom_call.1} parent=59 // pred_region
          %v616 = vld [vmem:[%s496] sm:$0xff]
          %v617 = vld [vmem:[%s496 + $0x8] sm:$0xff]
          %v618 = vld [vmem:[%s496 + $0x10] sm:$0xff]
          %v619 = vld [vmem:[%s496 + $0x18] sm:$0xff]
          %v620 = vld [vmem:[%s496 + $0x20] sm:$0xff]
          %v621 = vld [vmem:[%s496 + $0x28] sm:$0xff]
          %v622 = vld [vmem:[%s496 + $0x30] sm:$0xff]
          %v623 = vld [vmem:[%s496 + $0x38] sm:$0xff]
          %v624 = vld [vmem:[%s496 + $0x40] sm:$0xff]
          %v625 = vld [vmem:[%s496 + $0x48] sm:$0xff]
          %v626 = vld [vmem:[%s496 + $0x50] sm:$0xff]
          %v627 = vld [vmem:[%s496 + $0x58] sm:$0xff]
          %v628 = vld [vmem:[%s496 + $0x60] sm:$0xff]
          %v629 = vld [vmem:[%s496 + $0x68] sm:$0xff]
          %v630 = vld [vmem:[%s496 + $0x70] sm:$0xff]
          %v631 = vld [vmem:[%s496 + $0x78] sm:$0xff]
          %632 = vst [vmem:[#allocation2] sm:$0xff] %v616
          %633 = vst [vmem:[#allocation2 + $0x8] sm:$0xff] %v617
          %634 = vst [vmem:[#allocation2 + $0x10] sm:$0xff] %v618
          %635 = vst [vmem:[#allocation2 + $0x18] sm:$0xff] %v619
          %636 = vst [vmem:[#allocation2 + $0x20] sm:$0xff] %v620
          %637 = vst [vmem:[#allocation2 + $0x28] sm:$0xff] %v621
          %638 = vst [vmem:[#allocation2 + $0x30] sm:$0xff] %v622
          %639 = vst [vmem:[#allocation2 + $0x38] sm:$0xff] %v623
          %640 = vst [vmem:[#allocation2 + $0x40] sm:$0xff] %v624
          %641 = vst [vmem:[#allocation2 + $0x48] sm:$0xff] %v625
          %642 = vst [vmem:[#allocation2 + $0x50] sm:$0xff] %v626
          %643 = vst [vmem:[#allocation2 + $0x58] sm:$0xff] %v627
          %644 = vst [vmem:[#allocation2 + $0x60] sm:$0xff] %v628
          %645 = vst [vmem:[#allocation2 + $0x68] sm:$0xff] %v629
          %646 = vst [vmem:[#allocation2 + $0x70] sm:$0xff] %v630
          %647 = vst [vmem:[#allocation2 + $0x78] sm:$0xff] %v631
        $region96: #{tpu_custom_call.1} parent=59 // pred_fallthru
          _
        %v648 = vld [vmem:[#allocation2] sm:$0xff]
        %v649 = vld [vmem:[#allocation2 + $0x8] sm:$0xff]
        %v650 = vld [vmem:[#allocation2 + $0x10] sm:$0xff]
        %v651 = vld [vmem:[#allocation2 + $0x18] sm:$0xff]
        %v652 = vld [vmem:[#allocation2 + $0x20] sm:$0xff]
        %v653 = vld [vmem:[#allocation2 + $0x28] sm:$0xff]
        %v654 = vld [vmem:[#allocation2 + $0x30] sm:$0xff]
        %v655 = vld [vmem:[#allocation2 + $0x38] sm:$0xff]
        %v656 = vld [vmem:[#allocation2 + $0x40] sm:$0xff]
        %v657 = vld [vmem:[#allocation2 + $0x48] sm:$0xff]
        %v658 = vld [vmem:[#allocation2 + $0x50] sm:$0xff]
        %v659 = vld [vmem:[#allocation2 + $0x58] sm:$0xff]
        %v660 = vld [vmem:[#allocation2 + $0x60] sm:$0xff]
        %v661 = vld [vmem:[#allocation2 + $0x68] sm:$0xff]
        %v662 = vld [vmem:[#allocation2 + $0x70] sm:$0xff]
        %v663 = vld [vmem:[#allocation2 + $0x78] sm:$0xff]
        %v664 = vpack.c.bf16 %v649, %v648
        %v665 = vpack.c.bf16 %v651, %v650
        %v666 = vpack.c.bf16 %v653, %v652
        %v667 = vpack.c.bf16 %v655, %v654
        %v668 = vpack.c.bf16 %v657, %v656
        %v669 = vpack.c.bf16 %v659, %v658
        %v670 = vpack.c.bf16 %v661, %v660
        %v671 = vpack.c.bf16 %v663, %v662
        %v672 = vld [vmem:[%s541] sm:$0xff]
        %v673 = vld [vmem:[%s541 + $0x8] sm:$0xff]
        %v674 = vld [vmem:[%s541 + $0x10] sm:$0xff]
        %v675 = vld [vmem:[%s541 + $0x18] sm:$0xff]
        %v676 = vld [vmem:[%s505] sm:$0xff]
        %v677 = vld [vmem:[%s505 + $0x8] sm:$0xf]
        %v678 = vld [vmem:[%s505 + $0xc] sm:$0xff]
        %v679 = vld [vmem:[%s505 + $0x14] sm:$0xf]
        %v680 = vld [vmem:[%s505 + $0x18] sm:$0xff]
        %v681 = vld [vmem:[%s505 + $0x20] sm:$0xf]
        %v682 = vld [vmem:[%s505 + $0x24] sm:$0xff]
        %v683 = vld [vmem:[%s505 + $0x2c] sm:$0xf]
        %v684 = vld [vmem:[%s505 + $0x30] sm:$0xff]
        %v685 = vld [vmem:[%s505 + $0x38] sm:$0xf]
        %v686 = vld [vmem:[%s505 + $0x3c] sm:$0xff]
        %v687 = vld [vmem:[%s505 + $0x44] sm:$0xf]
        %v688 = vld [vmem:[%s505 + $0x48] sm:$0xff]
        %v689 = vld [vmem:[%s505 + $0x50] sm:$0xf]
        %v690 = vld [vmem:[%s505 + $0x54] sm:$0xff]
        %v691 = vld [vmem:[%s505 + $0x5c] sm:$0xf]
        %v692 = vld [vmem:[%s505 + $0x60] sm:$0xff]
        %v693 = vld [vmem:[%s505 + $0x68] sm:$0xf]
        %v694 = vld [vmem:[%s505 + $0x6c] sm:$0xff]
        %v695 = vld [vmem:[%s505 + $0x74] sm:$0xf]
        %v696 = vld [vmem:[%s505 + $0x78] sm:$0xff]
        %v697 = vld [vmem:[%s505 + $0x80] sm:$0xf]
        %v698 = vld [vmem:[%s505 + $0x84] sm:$0xff]
        %v699 = vld [vmem:[%s505 + $0x8c] sm:$0xf]
        %v700 = vld [vmem:[%s505 + $0x90] sm:$0xff]
        %v701 = vld [vmem:[%s505 + $0x98] sm:$0xf]
        %v702 = vld [vmem:[%s505 + $0x9c] sm:$0xff]
        %v703 = vld [vmem:[%s505 + $0xa4] sm:$0xf]
        %v704 = vld [vmem:[%s505 + $0xa8] sm:$0xff]
        %v705 = vld [vmem:[%s505 + $0xb0] sm:$0xf]
        %v706 = vld [vmem:[%s505 + $0xb4] sm:$0xff]
        %v707 = vld [vmem:[%s505 + $0xbc] sm:$0xf]
        %v708 = vlaneseq
        %v709 = vshrl.u32 %v708, 7
        %v710 = vsub.s32 0, %v709
        %v711 = vrot.slane %v672, %v710
        %v712 = vlaneseq
        %v713 = vshrl.u32 %v712, 7
        %v714 = vsub.s32 0, %v713
        %v715 = vrot.slane %v673, %v714
        %v716 = vlaneseq
        %v717 = vshrl.u32 %v716, 7
        %v718 = vsub.s32 0, %v717
        %v719 = vrot.slane %v674, %v718
        %v752 = vunpack.c.l.b16 %v676
        %v753 = vunpack.c.h.b16 %v676
        %v754 = vunpack.c.l.b16 %v677
        %v755 = vunpack.c.l.b16 %v678
        %v756 = vunpack.c.h.b16 %v678
        %v757 = vunpack.c.l.b16 %v679
        %v758 = vunpack.c.l.b16 %v680
        %v759 = vunpack.c.h.b16 %v680
        %v760 = vunpack.c.l.b16 %v681
        %v761 = vunpack.c.l.b16 %v682
        %v762 = vunpack.c.h.b16 %v682
        %v763 = vunpack.c.l.b16 %v683
        %v764 = vunpack.c.l.b16 %v684
        %v765 = vunpack.c.h.b16 %v684
        %v766 = vunpack.c.l.b16 %v685
        %v767 = vunpack.c.l.b16 %v686
        %v768 = vunpack.c.h.b16 %v686
        %v769 = vunpack.c.l.b16 %v687
        %v770 = vunpack.c.l.b16 %v688
        %v771 = vunpack.c.h.b16 %v688
        %v772 = vunpack.c.l.b16 %v689
        %v773 = vunpack.c.l.b16 %v690
        %v774 = vunpack.c.h.b16 %v690
        %v775 = vunpack.c.l.b16 %v691
        %v776 = vunpack.c.l.b16 %v692
        %v777 = vunpack.c.h.b16 %v692
        %v778 = vunpack.c.l.b16 %v693
        %v779 = vunpack.c.l.b16 %v694
        %v780 = vunpack.c.h.b16 %v694
        %v781 = vunpack.c.l.b16 %v695
        %v782 = vunpack.c.l.b16 %v696
        %v783 = vunpack.c.h.b16 %v696
        %v784 = vunpack.c.l.b16 %v697
        %v785 = vunpack.c.l.b16 %v698
        %v786 = vunpack.c.h.b16 %v698
        %v787 = vunpack.c.l.b16 %v699
        %v788 = vunpack.c.l.b16 %v700
        %v789 = vunpack.c.h.b16 %v700
        %v790 = vunpack.c.l.b16 %v701
        %v791 = vunpack.c.l.b16 %v702
        %v792 = vunpack.c.h.b16 %v702
        %v793 = vunpack.c.l.b16 %v703
        %v794 = vunpack.c.l.b16 %v704
        %v795 = vunpack.c.h.b16 %v704
        %v796 = vunpack.c.l.b16 %v705
        %v797 = vunpack.c.l.b16 %v706
        %v798 = vunpack.c.h.b16 %v706
        %v799 = vunpack.c.l.b16 %v707
        %v800 = vpack.c.b16 %v755, %v752
        %v801 = vpack.c.b16 %v756, %v753
        %v802 = vpack.c.b16 %v757, %v754
        %v803 = vpack.c.b16 %v761, %v758
        %v804 = vpack.c.b16 %v762, %v759
        %v805 = vpack.c.b16 %v763, %v760
        %v806 = vpack.c.b16 %v767, %v764
        %v807 = vpack.c.b16 %v768, %v765
        %v808 = vpack.c.b16 %v769, %v766
        %v809 = vpack.c.b16 %v773, %v770
        %v810 = vpack.c.b16 %v774, %v771
        %v811 = vpack.c.b16 %v775, %v772
        %v812 = vpack.c.b16 %v779, %v776
        %v813 = vpack.c.b16 %v780, %v777
        %v814 = vpack.c.b16 %v781, %v778
        %v815 = vpack.c.b16 %v785, %v782
        %v816 = vpack.c.b16 %v786, %v783
        %v817 = vpack.c.b16 %v787, %v784
        %v818 = vpack.c.b16 %v791, %v788
        %v819 = vpack.c.b16 %v792, %v789
        %v820 = vpack.c.b16 %v793, %v790
        %v821 = vpack.c.b16 %v797, %v794
        %v822 = vpack.c.b16 %v798, %v795
        %v823 = vpack.c.b16 %v799, %v796
        %848 = vmatprep.subr.bf16.mxu0 %v801
        %849 = vmatpush1.bf16.msra.mxu0 %v800
        %850 = vmatprep.subr.bf16.mxu0 %v804
        %851 = vmatpush1.bf16.msra.mxu0 %v803
        %852 = vmatprep.subr.bf16.mxu0 %v807
        %853 = vmatpush1.bf16.msra.mxu0 %v806
        %854 = vmatprep.subr.bf16.mxu0 %v810
        %855 = vmatpush1.bf16.msra.mxu0 %v809
        %856 = vmatprep.subr.bf16.mxu0 %v813
        %857 = vmatpush1.bf16.msra.mxu0 %v812
        %858 = vmatprep.subr.bf16.mxu0 %v816
        %859 = vmatpush1.bf16.msra.mxu0 %v815
        %860 = vmatprep.subr.bf16.mxu0 %v819
        %861 = vmatpush1.bf16.msra.mxu0 %v818
        %862 = vmatprep.subr.bf16.mxu0 %v822
        %863 = vmatpush1.bf16.msra.mxu0 %v821
        %864 = vmatprep.subr.bf16.mxu0 0
        %865 = vmatpush1.bf16.msra.mxu0 0
        %866 = vmatprep.subr.bf16.mxu0 0
        %867 = vmatpush1.bf16.msra.mxu0 0
        %868 = vmatprep.subr.bf16.mxu0 0
        %869 = vmatpush1.bf16.msra.mxu0 0
        %870 = vmatprep.subr.bf16.mxu0 0
        %871 = vmatpush1.bf16.msra.mxu0 0
        %872 = vmatprep.subr.bf16.mxu0 0
        %873 = vmatpush1.bf16.msra.mxu0 0
        %874 = vmatprep.subr.bf16.mxu0 0
        %875 = vmatpush1.bf16.msra.mxu0 0
        %876 = vmatprep.subr.bf16.mxu0 0
        %877 = vmatpush1.bf16.msra.mxu0 0
        %878 = vmatprep.subr.bf16.mxu0 0
        %879 = vmatpush1.bf16.msra.mxu0 0
        %880 = vmatprep.mubr.bf16.mxu0 0
        %881 = vmatmul.mubr.bf16.gmra.mrb[0].mxu0 %v664
        %v882 = vpop.f32.mrb[0].mxu0
        %v883 = vadd.f32 %v711, %v882
        %v884 = vpop.f32.mrb[0].mxu0
        %v885 = vadd.f32 %v715, %v884
        %v886 = vpop.f32.mrb[0].mxu0
        %v887 = vadd.f32 %v711, %v886
        %v888 = vpop.f32.mrb[0].mxu0
        %v889 = vadd.f32 %v715, %v888
        %890 = vmatprep.mubr.bf16.mxu0 0
        %891 = vmatmul.mubr.bf16.gmra.mrb[0].mxu0 %v665
        %v892 = vpop.f32.mrb[0].mxu0
        %v893 = vadd.f32 %v711, %v892
        %v894 = vpop.f32.mrb[0].mxu0
        %v895 = vadd.f32 %v715, %v894
        %v896 = vpop.f32.mrb[0].mxu0
        %v897 = vadd.f32 %v711, %v896
        %v898 = vpop.f32.mrb[0].mxu0
        %v899 = vadd.f32 %v715, %v898
        %900 = vmatprep.mubr.bf16.mxu0 0
        %901 = vmatmul.mubr.bf16.gmra.mrb[0].mxu0 %v666
        %v902 = vpop.f32.mrb[0].mxu0
        %v903 = vadd.f32 %v711, %v902
        %v904 = vpop.f32.mrb[0].mxu0
        %v905 = vadd.f32 %v715, %v904
        %v906 = vpop.f32.mrb[0].mxu0
        %v907 = vadd.f32 %v711, %v906
        %v908 = vpop.f32.mrb[0].mxu0
        %v909 = vadd.f32 %v715, %v908
        %910 = vmatprep.mubr.bf16.mxu0 0
        %911 = vmatmul.mubr.bf16.gmra.mrb[0].mxu0 %v667
        %v912 = vpop.f32.mrb[0].mxu0
        %v913 = vadd.f32 %v711, %v912
        %v914 = vpop.f32.mrb[0].mxu0
        %v915 = vadd.f32 %v715, %v914
        %v916 = vpop.f32.mrb[0].mxu0
        %v917 = vadd.f32 %v711, %v916
        %v918 = vpop.f32.mrb[0].mxu0
        %v919 = vadd.f32 %v715, %v918
        %920 = vmatprep.mubr.bf16.mxu0 0
        %921 = vmatmul.mubr.bf16.gmra.mrb[0].mxu0 %v668
        %v922 = vpop.f32.mrb[0].mxu0
        %v923 = vadd.f32 %v711, %v922
        %v924 = vpop.f32.mrb[0].mxu0
        %v925 = vadd.f32 %v715, %v924
        %v926 = vpop.f32.mrb[0].mxu0
        %v927 = vadd.f32 %v711, %v926
        %v928 = vpop.f32.mrb[0].mxu0
        %v929 = vadd.f32 %v715, %v928
        %930 = vmatprep.mubr.bf16.mxu0 0
        %931 = vmatmul.mubr.bf16.gmra.mrb[0].mxu0 %v669
        %v932 = vpop.f32.mrb[0].mxu0
        %v933 = vadd.f32 %v711, %v932
        %v934 = vpop.f32.mrb[0].mxu0
        %v935 = vadd.f32 %v715, %v934
        %v936 = vpop.f32.mrb[0].mxu0
        %v937 = vadd.f32 %v711, %v936
        %v938 = vpop.f32.mrb[0].mxu0
        %v939 = vadd.f32 %v715, %v938
        %940 = vmatprep.mubr.bf16.mxu0 0
        %941 = vmatmul.mubr.bf16.gmra.mrb[0].mxu0 %v670
        %v942 = vpop.f32.mrb[0].mxu0
        %v943 = vadd.f32 %v711, %v942
        %v944 = vpop.f32.mrb[0].mxu0
        %v945 = vadd.f32 %v715, %v944
        %v946 = vpop.f32.mrb[0].mxu0
        %v947 = vadd.f32 %v711, %v946
        %v948 = vpop.f32.mrb[0].mxu0
        %v949 = vadd.f32 %v715, %v948
        %950 = vmatprep.mubr.bf16.mxu0 0
        %951 = vmatmul.mubr.bf16.gmra.mrb[0].mxu0 %v671
        %v952 = vpop.f32.mrb[0].mxu0
        %v953 = vadd.f32 %v711, %v952
        %v954 = vpop.f32.mrb[0].mxu0
        %v955 = vadd.f32 %v715, %v954
        %v956 = vpop.f32.mrb[0].mxu0
        %v957 = vadd.f32 %v711, %v956
        %v958 = vpop.f32.mrb[0].mxu0
        %v959 = vadd.f32 %v715, %v958
        %960 = vdwg.mxu0
        %961 = vmatprep.subr.bf16.mxu0 0
        %962 = vmatpush1.bf16.msra.mxu0 %v802
        %963 = vmatprep.subr.bf16.mxu0 0
        %964 = vmatpush1.bf16.msra.mxu0 %v805
        %965 = vmatprep.subr.bf16.mxu0 0
        %966 = vmatpush1.bf16.msra.mxu0 %v808
        %967 = vmatprep.subr.bf16.mxu0 0
        %968 = vmatpush1.bf16.msra.mxu0 %v811
        %969 = vmatprep.subr.bf16.mxu0 0
        %970 = vmatpush1.bf16.msra.mxu0 %v814
        %971 = vmatprep.subr.bf16.mxu0 0
        %972 = vmatpush1.bf16.msra.mxu0 %v817
        %973 = vmatprep.subr.bf16.mxu0 0
        %974 = vmatpush1.bf16.msra.mxu0 %v820
        %975 = vmatprep.subr.bf16.mxu0 0
        %976 = vmatpush1.bf16.msra.mxu0 %v823
        %977 = vmatprep.subr.bf16.mxu0 0
        %978 = vmatpush1.bf16.msra.mxu0 0
        %979 = vmatprep.subr.bf16.mxu0 0
        %980 = vmatpush1.bf16.msra.mxu0 0
        %981 = vmatprep.subr.bf16.mxu0 0
        %982 = vmatpush1.bf16.msra.mxu0 0
        %983 = vmatprep.subr.bf16.mxu0 0
        %984 = vmatpush1.bf16.msra.mxu0 0
        %985 = vmatprep.subr.bf16.mxu0 0
        %986 = vmatpush1.bf16.msra.mxu0 0
        %987 = vmatprep.subr.bf16.mxu0 0
        %988 = vmatpush1.bf16.msra.mxu0 0
        %989 = vmatprep.subr.bf16.mxu0 0
        %990 = vmatpush1.bf16.msra.mxu0 0
        %991 = vmatprep.subr.bf16.mxu0 0
        %992 = vmatpush1.bf16.msra.mxu0 0
        %993 = vmatprep.mubr.bf16.mxu0 0
        %994 = vmatmul.mubr.bf16.gmra.mrb[0].mxu0 %v664
        %v995 = vpop.f32.mrb[0].mxu0
        %v996 = vadd.f32 %v719, %v995
        %v997 = vpop.f32.mrb[0].mxu0
        %v998 = vpop.f32.mrb[0].mxu0
        %v999 = vadd.f32 %v719, %v998
        %v1000 = vpop.f32.mrb[0].mxu0
        %1001 = vmatprep.mubr.bf16.mxu0 0
        %1002 = vmatmul.mubr.bf16.gmra.mrb[0].mxu0 %v665
        %v1003 = vpop.f32.mrb[0].mxu0
        %v1004 = vadd.f32 %v719, %v1003
        %v1005 = vpop.f32.mrb[0].mxu0
        %v1006 = vpop.f32.mrb[0].mxu0
        %v1007 = vadd.f32 %v719, %v1006
        %v1008 = vpop.f32.mrb[0].mxu0
        %1009 = vmatprep.mubr.bf16.mxu0 0
        %1010 = vmatmul.mubr.bf16.gmra.mrb[0].mxu0 %v666
        %v1011 = vpop.f32.mrb[0].mxu0
        %v1012 = vadd.f32 %v719, %v1011
        %v1013 = vpop.f32.mrb[0].mxu0
        %v1014 = vpop.f32.mrb[0].mxu0
        %v1015 = vadd.f32 %v719, %v1014
        %v1016 = vpop.f32.mrb[0].mxu0
        %1017 = vmatprep.mubr.bf16.mxu0 0
        %1018 = vmatmul.mubr.bf16.gmra.mrb[0].mxu0 %v667
        %v1019 = vpop.f32.mrb[0].mxu0
        %v1020 = vadd.f32 %v719, %v1019
        %v1021 = vpop.f32.mrb[0].mxu0
        %v1022 = vpop.f32.mrb[0].mxu0
        %v1023 = vadd.f32 %v719, %v1022
        %v1024 = vpop.f32.mrb[0].mxu0
        %1025 = vmatprep.mubr.bf16.mxu0 0
        %1026 = vmatmul.mubr.bf16.gmra.mrb[0].mxu0 %v668
        %v1027 = vpop.f32.mrb[0].mxu0
        %v1028 = vadd.f32 %v719, %v1027
        %v1029 = vpop.f32.mrb[0].mxu0
        %v1030 = vpop.f32.mrb[0].mxu0
        %v1031 = vadd.f32 %v719, %v1030
        %v1032 = vpop.f32.mrb[0].mxu0
        %1033 = vmatprep.mubr.bf16.mxu0 0
        %1034 = vmatmul.mubr.bf16.gmra.mrb[0].mxu0 %v669
        %v1035 = vpop.f32.mrb[0].mxu0
        %v1036 = vadd.f32 %v719, %v1035
        %v1037 = vpop.f32.mrb[0].mxu0
        %v1038 = vpop.f32.mrb[0].mxu0
        %v1039 = vadd.f32 %v719, %v1038
        %v1040 = vpop.f32.mrb[0].mxu0
        %1041 = vmatprep.mubr.bf16.mxu0 0
        %1042 = vmatmul.mubr.bf16.gmra.mrb[0].mxu0 %v670
        %v1043 = vpop.f32.mrb[0].mxu0
        %v1044 = vadd.f32 %v719, %v1043
        %v1045 = vpop.f32.mrb[0].mxu0
        %v1046 = vpop.f32.mrb[0].mxu0
        %v1047 = vadd.f32 %v719, %v1046
        %v1048 = vpop.f32.mrb[0].mxu0
        %1049 = vmatprep.mubr.bf16.mxu0 0
        %1050 = vmatmul.mubr.bf16.gmra.mrb[0].mxu0 %v671
        %v1051 = vpop.f32.mrb[0].mxu0
        %v1052 = vadd.f32 %v719, %v1051
        %v1053 = vpop.f32.mrb[0].mxu0
        %v1054 = vpop.f32.mrb[0].mxu0
        %v1055 = vadd.f32 %v719, %v1054
        %v1056 = vpop.f32.mrb[0].mxu0
        %1057 = vdwg.mxu0
        %v1058 = vpack.c.bf16 %v887, %v883
        %v1059 = vpack.c.bf16 %v897, %v893
        %v1060 = vpack.c.bf16 %v907, %v903
        %v1061 = vpack.c.bf16 %v917, %v913
        %v1062 = vpack.c.bf16 %v927, %v923
        %v1063 = vpack.c.bf16 %v937, %v933
        %v1064 = vpack.c.bf16 %v947, %v943
        %v1065 = vpack.c.bf16 %v957, %v953
        %1066 = vxpose.xlu0.b32.start [1/16] %v885, 128
        %1067 = vxpose.xlu0.b32.cont [2/16] %v889, 128
        %1068 = vxpose.xlu0.b32.cont [3/16] %v895, 128
        %1069 = vxpose.xlu0.b32.cont [4/16] %v899, 128
        %1070 = vxpose.xlu0.b32.cont [5/16] %v905, 128
        %1071 = vxpose.xlu0.b32.cont [6/16] %v909, 128
        %1072 = vxpose.xlu0.b32.cont [7/16] %v915, 128
        %1073 = vxpose.xlu0.b32.cont [8/16] %v919, 128
        %1074 = vxpose.xlu0.b32.cont [9/16] %v925, 128
        %1075 = vxpose.xlu0.b32.cont [10/16] %v929, 128
        %1076 = vxpose.xlu0.b32.cont [11/16] %v935, 128
        %1077 = vxpose.xlu0.b32.cont [12/16] %v939, 128
        %1078 = vxpose.xlu0.b32.cont [13/16] %v945, 128
        %1079 = vxpose.xlu0.b32.cont [14/16] %v949, 128
        %1080 = vxpose.xlu0.b32.cont [15/16] %v955, 128
        %1081 = vxpose.xlu0.b32.end [16/16] %v959, 128
        %v1082 = vpop.trf.xlu0
        %v1083 = vpop.trf.xlu0
        %v1084 = vpop.trf.xlu0
        %v1085 = vpop.trf.xlu0
        %v1086 = vpop.trf.xlu0
        %v1087 = vpop.trf.xlu0
        %v1088 = vpop.trf.xlu0
        %v1089 = vpop.trf.xlu0
        %v1090 = vpop.trf.xlu0
        %v1091 = vpop.trf.xlu0
        %v1092 = vpop.trf.xlu0
        %v1093 = vpop.trf.xlu0
        %v1094 = vpop.trf.xlu0
        %v1095 = vpop.trf.xlu0
        %v1096 = vpop.trf.xlu0
        %v1097 = vpop.trf.xlu0
        %1098 = vxpose.xlu0.b32.start [1/16] %v996, 128
        %1099 = vxpose.xlu0.b32.cont [2/16] %v999, 128
        %1100 = vxpose.xlu0.b32.cont [3/16] %v1004, 128
        %1101 = vxpose.xlu0.b32.cont [4/16] %v1007, 128
        %1102 = vxpose.xlu0.b32.cont [5/16] %v1012, 128
        %1103 = vxpose.xlu0.b32.cont [6/16] %v1015, 128
        %1104 = vxpose.xlu0.b32.cont [7/16] %v1020, 128
        %1105 = vxpose.xlu0.b32.cont [8/16] %v1023, 128
        %1106 = vxpose.xlu0.b32.cont [9/16] %v1028, 128
        %1107 = vxpose.xlu0.b32.cont [10/16] %v1031, 128
        %1108 = vxpose.xlu0.b32.cont [11/16] %v1036, 128
        %1109 = vxpose.xlu0.b32.cont [12/16] %v1039, 128
        %1110 = vxpose.xlu0.b32.cont [13/16] %v1044, 128
        %1111 = vxpose.xlu0.b32.cont [14/16] %v1047, 128
        %1112 = vxpose.xlu0.b32.cont [15/16] %v1052, 128
        %1113 = vxpose.xlu0.b32.end [16/16] %v1055, 128
        %v1114 = vpop.trf.xlu0
        %v1115 = vpop.trf.xlu0
        %v1116 = vpop.trf.xlu0
        %v1117 = vpop.trf.xlu0
        %v1118 = vpop.trf.xlu0
        %v1119 = vpop.trf.xlu0
        %v1120 = vpop.trf.xlu0
        %v1121 = vpop.trf.xlu0
        %v1122 = vpop.trf.xlu0
        %v1123 = vpop.trf.xlu0
        %v1124 = vpop.trf.xlu0
        %v1125 = vpop.trf.xlu0
        %v1126 = vpop.trf.xlu0
        %v1127 = vpop.trf.xlu0
        %v1128 = vpop.trf.xlu0
        %v1129 = vpop.trf.xlu0
        %v1130 = vpack.c.bf16 %v1083, %v1082
        %v1131 = vpack.c.bf16 %v1085, %v1084
        %v1132 = vpack.c.bf16 %v1087, %v1086
        %v1133 = vpack.c.bf16 %v1089, %v1088
        %v1134 = vpack.c.bf16 %v1091, %v1090
        %v1135 = vpack.c.bf16 %v1093, %v1092
        %v1136 = vpack.c.bf16 %v1095, %v1094
        %v1137 = vpack.c.bf16 %v1097, %v1096
        %v1138 = vpack.c.bf16 %v1115, %v1114
        %v1139 = vpack.c.bf16 %v1117, %v1116
        %v1140 = vpack.c.bf16 %v1119, %v1118
        %v1141 = vpack.c.bf16 %v1121, %v1120
        %v1142 = vpack.c.bf16 %v1123, %v1122
        %v1143 = vpack.c.bf16 %v1125, %v1124
        %v1144 = vpack.c.bf16 %v1127, %v1126
        %v1145 = vpack.c.bf16 %v1129, %v1128
        %vm1146 = vcmask 261120
        %v1148 = vsel %vm1146, %v1058, 0
        %v1151 = vsel %vm1146, %v1059, 0
        %v1154 = vsel %vm1146, %v1060, 0
        %v1157 = vsel %vm1146, %v1061, 0
        %v1160 = vsel %vm1146, %v1062, 0
        %v1163 = vsel %vm1146, %v1063, 0
        %v1166 = vsel %vm1146, %v1064, 0
        %v1169 = vsel %vm1146, %v1065, 0
        %1171 = vmatprep.subr.bf16.mxu0 0
        %1172 = vmatpush1.bf16.msra.mxu0 %v1130
        %1173 = vmatprep.subr.bf16.mxu0 0
        %1174 = vmatpush1.bf16.msra.mxu0 %v1131
        %1175 = vmatprep.subr.bf16.mxu0 0
        %1176 = vmatpush1.bf16.msra.mxu0 0
        %1177 = vmatprep.subr.bf16.mxu0 0
        %1178 = vmatpush1.bf16.msra.mxu0 0
        %1179 = vmatprep.subr.bf16.mxu0 0
        %1180 = vmatpush1.bf16.msra.mxu0 0
        %1181 = vmatprep.subr.bf16.mxu0 0
        %1182 = vmatpush1.bf16.msra.mxu0 0
        %1183 = vmatprep.subr.bf16.mxu0 0
        %1184 = vmatpush1.bf16.msra.mxu0 0
        %1185 = vmatprep.subr.bf16.mxu0 0
        %1186 = vmatpush1.bf16.msra.mxu0 0
        %1187 = vmatprep.subr.bf16.mxu0 0
        %1188 = vmatpush1.bf16.msra.mxu0 0
        %1189 = vmatprep.subr.bf16.mxu0 0
        %1190 = vmatpush1.bf16.msra.mxu0 0
        %1191 = vmatprep.subr.bf16.mxu0 0
        %1192 = vmatpush1.bf16.msra.mxu0 0
        %1193 = vmatprep.subr.bf16.mxu0 0
        %1194 = vmatpush1.bf16.msra.mxu0 0
        %1195 = vmatprep.subr.bf16.mxu0 0
        %1196 = vmatpush1.bf16.msra.mxu0 0
        %1197 = vmatprep.subr.bf16.mxu0 0
        %1198 = vmatpush1.bf16.msra.mxu0 0
        %1199 = vmatprep.subr.bf16.mxu0 0
        %1200 = vmatpush1.bf16.msra.mxu0 0
        %1201 = vmatprep.subr.bf16.mxu0 0
        %1202 = vmatpush1.bf16.msra.mxu0 0
        %1203 = vmatprep.mubr.bf16.mxu0 0
        %1204 = vmatmul.mubr.bf16.gmra.mrb[0].mxu0 %v1148
        %v1205 = vpop.f32.mrb[0].mxu0
        %v1206 = vadd.f32 0.0, %v1205
        %v1207 = vpop.f32.mrb[0].mxu0
        %v1208 = vpop.f32.mrb[0].mxu0
        %v1209 = vadd.f32 0.0, %v1208
        %v1210 = vpop.f32.mrb[0].mxu0
        %1211 = vmatprep.mubr.bf16.mxu0 0
        %1212 = vmatmul.mubr.bf16.gmra.mrb[0].mxu0 %v1151
        %v1213 = vpop.f32.mrb[0].mxu0
        %v1214 = vadd.f32 0.0, %v1213
        %v1215 = vpop.f32.mrb[0].mxu0
        %v1216 = vpop.f32.mrb[0].mxu0
        %v1217 = vadd.f32 0.0, %v1216
        %v1218 = vpop.f32.mrb[0].mxu0
        %1219 = vmatprep.mubr.bf16.mxu0 0
        %1220 = vmatmul.mubr.bf16.gmra.mrb[0].mxu0 %v1154
        %v1221 = vpop.f32.mrb[0].mxu0
        %v1222 = vadd.f32 0.0, %v1221
        %v1223 = vpop.f32.mrb[0].mxu0
        %v1224 = vpop.f32.mrb[0].mxu0
        %v1225 = vadd.f32 0.0, %v1224
        %v1226 = vpop.f32.mrb[0].mxu0
        %1227 = vmatprep.mubr.bf16.mxu0 0
        %1228 = vmatmul.mubr.bf16.gmra.mrb[0].mxu0 %v1157
        %v1229 = vpop.f32.mrb[0].mxu0
        %v1230 = vadd.f32 0.0, %v1229
        %v1231 = vpop.f32.mrb[0].mxu0
        %v1232 = vpop.f32.mrb[0].mxu0
        %v1233 = vadd.f32 0.0, %v1232
        %v1234 = vpop.f32.mrb[0].mxu0
        %1235 = vmatprep.mubr.bf16.mxu0 0
        %1236 = vmatmul.mubr.bf16.gmra.mrb[0].mxu0 %v1160
        %v1237 = vpop.f32.mrb[0].mxu0
        %v1238 = vadd.f32 0.0, %v1237
        %v1239 = vpop.f32.mrb[0].mxu0
        %v1240 = vpop.f32.mrb[0].mxu0
        %v1241 = vadd.f32 0.0, %v1240
        %v1242 = vpop.f32.mrb[0].mxu0
        %1243 = vmatprep.mubr.bf16.mxu0 0
        %1244 = vmatmul.mubr.bf16.gmra.mrb[0].mxu0 %v1163
        %v1245 = vpop.f32.mrb[0].mxu0
        %v1246 = vadd.f32 0.0, %v1245
        %v1247 = vpop.f32.mrb[0].mxu0
        %v1248 = vpop.f32.mrb[0].mxu0
        %v1249 = vadd.f32 0.0, %v1248
        %v1250 = vpop.f32.mrb[0].mxu0
        %1251 = vmatprep.mubr.bf16.mxu0 0
        %1252 = vmatmul.mubr.bf16.gmra.mrb[0].mxu0 %v1166
        %v1253 = vpop.f32.mrb[0].mxu0
        %v1254 = vadd.f32 0.0, %v1253
        %v1255 = vpop.f32.mrb[0].mxu0
        %v1256 = vpop.f32.mrb[0].mxu0
        %v1257 = vadd.f32 0.0, %v1256
        %v1258 = vpop.f32.mrb[0].mxu0
        %1259 = vmatprep.mubr.bf16.mxu0 0
        %1260 = vmatmul.mubr.bf16.gmra.mrb[0].mxu0 %v1169
        %v1261 = vpop.f32.mrb[0].mxu0
        %v1262 = vadd.f32 0.0, %v1261
        %v1263 = vpop.f32.mrb[0].mxu0
        %v1264 = vpop.f32.mrb[0].mxu0
        %v1265 = vadd.f32 0.0, %v1264
        %v1266 = vpop.f32.mrb[0].mxu0
        %1267 = vdwg.mxu0
        %1268 = vmax.xlane.f32.xlu0 %v1206
        %v1269 = vpop.xlane.xlu0 %1268
        %1270 = vmax.xlane.f32.xlu0 %v1209
        %v1271 = vpop.xlane.xlu0 %1270
        %1272 = vmax.xlane.f32.xlu0 %v1214
        %v1273 = vpop.xlane.xlu0 %1272
        %1274 = vmax.xlane.f32.xlu0 %v1217
        %v1275 = vpop.xlane.xlu0 %1274
        %1276 = vmax.xlane.f32.xlu0 %v1222
        %v1277 = vpop.xlane.xlu0 %1276
        %1278 = vmax.xlane.f32.xlu0 %v1225
        %v1279 = vpop.xlane.xlu0 %1278
        %1280 = vmax.xlane.f32.xlu0 %v1230
        %v1281 = vpop.xlane.xlu0 %1280
        %1282 = vmax.xlane.f32.xlu0 %v1233
        %v1283 = vpop.xlane.xlu0 %1282
        %1284 = vmax.xlane.f32.xlu0 %v1238
        %v1285 = vpop.xlane.xlu0 %1284
        %1286 = vmax.xlane.f32.xlu0 %v1241
        %v1287 = vpop.xlane.xlu0 %1286
        %1288 = vmax.xlane.f32.xlu0 %v1246
        %v1289 = vpop.xlane.xlu0 %1288
        %1290 = vmax.xlane.f32.xlu0 %v1249
        %v1291 = vpop.xlane.xlu0 %1290
        %1292 = vmax.xlane.f32.xlu0 %v1254
        %v1293 = vpop.xlane.xlu0 %1292
        %1294 = vmax.xlane.f32.xlu0 %v1257
        %v1295 = vpop.xlane.xlu0 %1294
        %1296 = vmax.xlane.f32.xlu0 %v1262
        %v1297 = vpop.xlane.xlu0 %1296
        %1298 = vmax.xlane.f32.xlu0 %v1265
        %v1299 = vpop.xlane.xlu0 %1298
        %v1300 = vsub.f32 %v1206, %v1269
        %v1301 = vsub.f32 %v1209, %v1271
        %v1302 = vsub.f32 %v1214, %v1273
        %v1303 = vsub.f32 %v1217, %v1275
        %v1304 = vsub.f32 %v1222, %v1277
        %v1305 = vsub.f32 %v1225, %v1279
        %v1306 = vsub.f32 %v1230, %v1281
        %v1307 = vsub.f32 %v1233, %v1283
        %v1308 = vsub.f32 %v1238, %v1285
        %v1309 = vsub.f32 %v1241, %v1287
        %v1310 = vsub.f32 %v1246, %v1289
        %v1311 = vsub.f32 %v1249, %v1291
        %v1312 = vsub.f32 %v1254, %v1293
        %v1313 = vsub.f32 %v1257, %v1295
        %v1314 = vsub.f32 %v1262, %v1297
        %v1315 = vsub.f32 %v1265, %v1299
        %v1316 = vmul.f32 %v1300, 1.442695
        %v1317 = vpow.pop %v1316
        %v1318 = vmul.f32 %v1301, 1.442695
        %v1319 = vpow.pop %v1318
        %v1320 = vmul.f32 %v1302, 1.442695
        %v1321 = vpow.pop %v1320
        %v1322 = vmul.f32 %v1303, 1.442695
        %v1323 = vpow.pop %v1322
        %v1324 = vmul.f32 %v1304, 1.442695
        %v1325 = vpow.pop %v1324
        %v1326 = vmul.f32 %v1305, 1.442695
        %v1327 = vpow.pop %v1326
        %v1328 = vmul.f32 %v1306, 1.442695
        %v1329 = vpow.pop %v1328
        %v1330 = vmul.f32 %v1307, 1.442695
        %v1331 = vpow.pop %v1330
        %v1332 = vmul.f32 %v1308, 1.442695
        %v1333 = vpow.pop %v1332
        %v1334 = vmul.f32 %v1309, 1.442695
        %v1335 = vpow.pop %v1334
        %v1336 = vmul.f32 %v1310, 1.442695
        %v1337 = vpow.pop %v1336
        %v1338 = vmul.f32 %v1311, 1.442695
        %v1339 = vpow.pop %v1338
        %v1340 = vmul.f32 %v1312, 1.442695
        %v1341 = vpow.pop %v1340
        %v1342 = vmul.f32 %v1313, 1.442695
        %v1343 = vpow.pop %v1342
        %v1344 = vmul.f32 %v1314, 1.442695
        %v1345 = vpow.pop %v1344
        %v1346 = vmul.f32 %v1315, 1.442695
        %v1347 = vpow.pop %v1346
        %1348 = vadd.xlane.f32.xlu0 %v1317
        %v1349 = vpop.xlane.xlu0 %1348
        %1350 = vadd.xlane.f32.xlu0 %v1319
        %v1351 = vpop.xlane.xlu0 %1350
        %1352 = vadd.xlane.f32.xlu0 %v1321
        %v1353 = vpop.xlane.xlu0 %1352
        %1354 = vadd.xlane.f32.xlu0 %v1323
        %v1355 = vpop.xlane.xlu0 %1354
        %1356 = vadd.xlane.f32.xlu0 %v1325
        %v1357 = vpop.xlane.xlu0 %1356
        %1358 = vadd.xlane.f32.xlu0 %v1327
        %v1359 = vpop.xlane.xlu0 %1358
        %1360 = vadd.xlane.f32.xlu0 %v1329
        %v1361 = vpop.xlane.xlu0 %1360
        %1362 = vadd.xlane.f32.xlu0 %v1331
        %v1363 = vpop.xlane.xlu0 %1362
        %1364 = vadd.xlane.f32.xlu0 %v1333
        %v1365 = vpop.xlane.xlu0 %1364
        %1366 = vadd.xlane.f32.xlu0 %v1335
        %v1367 = vpop.xlane.xlu0 %1366
        %1368 = vadd.xlane.f32.xlu0 %v1337
        %v1369 = vpop.xlane.xlu0 %1368
        %1370 = vadd.xlane.f32.xlu0 %v1339
        %v1371 = vpop.xlane.xlu0 %1370
        %1372 = vadd.xlane.f32.xlu0 %v1341
        %v1373 = vpop.xlane.xlu0 %1372
        %1374 = vadd.xlane.f32.xlu0 %v1343
        %v1375 = vpop.xlane.xlu0 %1374
        %1376 = vadd.xlane.f32.xlu0 %v1345
        %v1377 = vpop.xlane.xlu0 %1376
        %1378 = vadd.xlane.f32.xlu0 %v1347
        %v1379 = vpop.xlane.xlu0 %1378
        %v1380 = vrcp.pop %v1349
        %v1381 = vrcp.pop %v1351
        %v1382 = vrcp.pop %v1353
        %v1383 = vrcp.pop %v1355
        %v1384 = vrcp.pop %v1357
        %v1385 = vrcp.pop %v1359
        %v1386 = vrcp.pop %v1361
        %v1387 = vrcp.pop %v1363
        %v1388 = vrcp.pop %v1365
        %v1389 = vrcp.pop %v1367
        %v1390 = vrcp.pop %v1369
        %v1391 = vrcp.pop %v1371
        %v1392 = vrcp.pop %v1373
        %v1393 = vrcp.pop %v1375
        %v1394 = vrcp.pop %v1377
        %v1395 = vrcp.pop %v1379
        %v1396 = vmul.f32 %v1317, %v1380
        %v1397 = vmul.f32 %v1319, %v1381
        %v1398 = vmul.f32 %v1321, %v1382
        %v1399 = vmul.f32 %v1323, %v1383
        %v1400 = vmul.f32 %v1325, %v1384
        %v1401 = vmul.f32 %v1327, %v1385
        %v1402 = vmul.f32 %v1329, %v1386
        %v1403 = vmul.f32 %v1331, %v1387
        %v1404 = vmul.f32 %v1333, %v1388
        %v1405 = vmul.f32 %v1335, %v1389
        %v1406 = vmul.f32 %v1337, %v1390
        %v1407 = vmul.f32 %v1339, %v1391
        %v1408 = vmul.f32 %v1341, %v1392
        %v1409 = vmul.f32 %v1343, %v1393
        %v1410 = vmul.f32 %v1345, %v1394
        %v1411 = vmul.f32 %v1347, %v1395
        %v1412 = vpack.c.bf16 %v1397, %v1396
        %v1413 = vpack.c.bf16 %v1399, %v1398
        %v1414 = vpack.c.bf16 %v1401, %v1400
        %v1415 = vpack.c.bf16 %v1403, %v1402
        %v1416 = vpack.c.bf16 %v1405, %v1404
        %v1417 = vpack.c.bf16 %v1407, %v1406
        %v1418 = vpack.c.bf16 %v1409, %v1408
        %v1419 = vpack.c.bf16 %v1411, %v1410
        %1420 = vmatprep.subr.bf16.mxu0 0
        %1421 = vmatpush1.bf16.xpose.msra.mxu0 %v1138
        %1422 = vmatprep.subr.bf16.mxu0 0
        %1423 = vmatpush1.bf16.xpose.msra.mxu0 %v1139
        %1424 = vmatprep.subr.bf16.mxu0 0
        %1425 = vmatpush1.bf16.xpose.msra.mxu0 0
        %1426 = vmatprep.subr.bf16.mxu0 0
        %1427 = vmatpush1.bf16.xpose.msra.mxu0 0
        %1428 = vmatprep.subr.bf16.mxu0 0
        %1429 = vmatpush1.bf16.xpose.msra.mxu0 0
        %1430 = vmatprep.subr.bf16.mxu0 0
        %1431 = vmatpush1.bf16.xpose.msra.mxu0 0
        %1432 = vmatprep.subr.bf16.mxu0 0
        %1433 = vmatpush1.bf16.xpose.msra.mxu0 0
        %1434 = vmatprep.subr.bf16.mxu0 0
        %1435 = vmatpush1.bf16.xpose.msra.mxu0 0
        %1436 = vmatprep.subr.bf16.mxu0 0
        %1437 = vmatpush1.bf16.xpose.msra.mxu0 0
        %1438 = vmatprep.subr.bf16.mxu0 0
        %1439 = vmatpush1.bf16.xpose.msra.mxu0 0
        %1440 = vmatprep.subr.bf16.mxu0 0
        %1441 = vmatpush1.bf16.xpose.msra.mxu0 0
        %1442 = vmatprep.subr.bf16.mxu0 0
        %1443 = vmatpush1.bf16.xpose.msra.mxu0 0
        %1444 = vmatprep.subr.bf16.mxu0 0
        %1445 = vmatpush1.bf16.xpose.msra.mxu0 0
        %1446 = vmatprep.subr.bf16.mxu0 0
        %1447 = vmatpush1.bf16.xpose.msra.mxu0 0
        %1448 = vmatprep.subr.bf16.mxu0 0
        %1449 = vmatpush1.bf16.xpose.msra.mxu0 0
        %1450 = vmatprep.subr.bf16.mxu0 0
        %1451 = vmatpush1.bf16.xpose.msra.mxu0 0
        %1452 = vmatprep.mubr.bf16.mxu0 0
        %1453 = vmatmul.mubr.bf16.gmra.mrb[0].mxu0 %v1412
        %v1454 = vpop.f32.mrb[0].mxu0
        %v1455 = vadd.f32 0.0, %v1454
        %v1456 = vpop.f32.mrb[0].mxu0
        %v1457 = vpop.f32.mrb[0].mxu0
        %v1458 = vadd.f32 0.0, %v1457
        %v1459 = vpop.f32.mrb[0].mxu0
        %1460 = vmatprep.mubr.bf16.mxu0 0
        %1461 = vmatmul.mubr.bf16.gmra.mrb[0].mxu0 %v1413
        %v1462 = vpop.f32.mrb[0].mxu0
        %v1463 = vadd.f32 0.0, %v1462
        %v1464 = vpop.f32.mrb[0].mxu0
        %v1465 = vpop.f32.mrb[0].mxu0
        %v1466 = vadd.f32 0.0, %v1465
        %v1467 = vpop.f32.mrb[0].mxu0
        %1468 = vmatprep.mubr.bf16.mxu0 0
        %1469 = vmatmul.mubr.bf16.gmra.mrb[0].mxu0 %v1414
        %v1470 = vpop.f32.mrb[0].mxu0
        %v1471 = vadd.f32 0.0, %v1470
        %v1472 = vpop.f32.mrb[0].mxu0
        %v1473 = vpop.f32.mrb[0].mxu0
        %v1474 = vadd.f32 0.0, %v1473
        %v1475 = vpop.f32.mrb[0].mxu0
        %1476 = vmatprep.mubr.bf16.mxu0 0
        %1477 = vmatmul.mubr.bf16.gmra.mrb[0].mxu0 %v1415
        %v1478 = vpop.f32.mrb[0].mxu0
        %v1479 = vadd.f32 0.0, %v1478
        %v1480 = vpop.f32.mrb[0].mxu0
        %v1481 = vpop.f32.mrb[0].mxu0
        %v1482 = vadd.f32 0.0, %v1481
        %v1483 = vpop.f32.mrb[0].mxu0
        %1484 = vmatprep.mubr.bf16.mxu0 0
        %1485 = vmatmul.mubr.bf16.gmra.mrb[0].mxu0 %v1416
        %v1486 = vpop.f32.mrb[0].mxu0
        %v1487 = vadd.f32 0.0, %v1486
        %v1488 = vpop.f32.mrb[0].mxu0
        %v1489 = vpop.f32.mrb[0].mxu0
        %v1490 = vadd.f32 0.0, %v1489
        %v1491 = vpop.f32.mrb[0].mxu0
        %1492 = vmatprep.mubr.bf16.mxu0 0
        %1493 = vmatmul.mubr.bf16.gmra.mrb[0].mxu0 %v1417
        %v1494 = vpop.f32.mrb[0].mxu0
        %v1495 = vadd.f32 0.0, %v1494
        %v1496 = vpop.f32.mrb[0].mxu0
        %v1497 = vpop.f32.mrb[0].mxu0
        %v1498 = vadd.f32 0.0, %v1497
        %v1499 = vpop.f32.mrb[0].mxu0
        %1500 = vmatprep.mubr.bf16.mxu0 0
        %1501 = vmatmul.mubr.bf16.gmra.mrb[0].mxu0 %v1418
        %v1502 = vpop.f32.mrb[0].mxu0
        %v1503 = vadd.f32 0.0, %v1502
        %v1504 = vpop.f32.mrb[0].mxu0
        %v1505 = vpop.f32.mrb[0].mxu0
        %v1506 = vadd.f32 0.0, %v1505
        %v1507 = vpop.f32.mrb[0].mxu0
        %1508 = vmatprep.mubr.bf16.mxu0 0
        %1509 = vmatmul.mubr.bf16.gmra.mrb[0].mxu0 %v1419
        %v1510 = vpop.f32.mrb[0].mxu0
        %v1511 = vadd.f32 0.0, %v1510
        %v1512 = vpop.f32.mrb[0].mxu0
        %v1513 = vpop.f32.mrb[0].mxu0
        %v1514 = vadd.f32 0.0, %v1513
        %v1515 = vpop.f32.mrb[0].mxu0
        %1516 = vdwg.mxu0
        %v1517 = vpack.c.bf16 %v1458, %v1455
        %v1518 = vpack.c.bf16 %v1466, %v1463
        %v1519 = vpack.c.bf16 %v1474, %v1471
        %v1520 = vpack.c.bf16 %v1482, %v1479
        %v1521 = vpack.c.bf16 %v1490, %v1487
        %v1522 = vpack.c.bf16 %v1498, %v1495
        %v1523 = vpack.c.bf16 %v1506, %v1503
        %v1524 = vpack.c.bf16 %v1514, %v1511
        %v1525 = vld [vmem:[%s514] sm:$0xf]
        %v1526 = vld [vmem:[%s514 + $0x4] sm:$0xf]
        %v1527 = vld [vmem:[%s514 + $0x8] sm:$0xf]
        %v1528 = vld [vmem:[%s514 + $0xc] sm:$0xf]
        %1537 = vrot.lane.b32.xlu0 %v1058, 96
        %v1538 = vpop.permute.xlu0 %1537
        %1539 = vrot.lane.b32.xlu0 %v1059, 96
        %v1540 = vpop.permute.xlu0 %1539
        %1541 = vrot.lane.b32.xlu0 %v1060, 96
        %v1542 = vpop.permute.xlu0 %1541
        %1543 = vrot.lane.b32.xlu0 %v1061, 96
        %v1544 = vpop.permute.xlu0 %1543
        %1545 = vrot.lane.b32.xlu0 %v1062, 96
        %v1546 = vpop.permute.xlu0 %1545
        %1547 = vrot.lane.b32.xlu0 %v1063, 96
        %v1548 = vpop.permute.xlu0 %1547
        %1549 = vrot.lane.b32.xlu0 %v1064, 96
        %v1550 = vpop.permute.xlu0 %1549
        %1551 = vrot.lane.b32.xlu0 %v1065, 96
        %v1552 = vpop.permute.xlu0 %1551
        %v1554 = vsel %vm1146, %v1538, 0
        %v1557 = vsel %vm1146, %v1540, 0
        %v1560 = vsel %vm1146, %v1542, 0
        %v1563 = vsel %vm1146, %v1544, 0
        %v1566 = vsel %vm1146, %v1546, 0
        %v1569 = vsel %vm1146, %v1548, 0
        %v1572 = vsel %vm1146, %v1550, 0
        %v1575 = vsel %vm1146, %v1552, 0
        %1577 = vmatprep.subr.bf16.mxu0 0
        %1578 = vmatpush1.bf16.msra.mxu0 %v1132
        %1579 = vmatprep.subr.bf16.mxu0 0
        %1580 = vmatpush1.bf16.msra.mxu0 %v1133
        %1581 = vmatprep.subr.bf16.mxu0 0
        %1582 = vmatpush1.bf16.msra.mxu0 0
        %1583 = vmatprep.subr.bf16.mxu0 0
        %1584 = vmatpush1.bf16.msra.mxu0 0
        %1585 = vmatprep.subr.bf16.mxu0 0
        %1586 = vmatpush1.bf16.msra.mxu0 0
        %1587 = vmatprep.subr.bf16.mxu0 0
        %1588 = vmatpush1.bf16.msra.mxu0 0
        %1589 = vmatprep.subr.bf16.mxu0 0
        %1590 = vmatpush1.bf16.msra.mxu0 0
        %1591 = vmatprep.subr.bf16.mxu0 0
        %1592 = vmatpush1.bf16.msra.mxu0 0
        %1593 = vmatprep.subr.bf16.mxu0 0
        %1594 = vmatpush1.bf16.msra.mxu0 0
        %1595 = vmatprep.subr.bf16.mxu0 0
        %1596 = vmatpush1.bf16.msra.mxu0 0
        %1597 = vmatprep.subr.bf16.mxu0 0
        %1598 = vmatpush1.bf16.msra.mxu0 0
        %1599 = vmatprep.subr.bf16.mxu0 0
        %1600 = vmatpush1.bf16.msra.mxu0 0
        %1601 = vmatprep.subr.bf16.mxu0 0
        %1602 = vmatpush1.bf16.msra.mxu0 0
        %1603 = vmatprep.subr.bf16.mxu0 0
        %1604 = vmatpush1.bf16.msra.mxu0 0
        %1605 = vmatprep.subr.bf16.mxu0 0
        %1606 = vmatpush1.bf16.msra.mxu0 0
        %1607 = vmatprep.subr.bf16.mxu0 0
        %1608 = vmatpush1.bf16.msra.mxu0 0
        %1609 = vmatprep.mubr.bf16.mxu0 0
        %1610 = vmatmul.mubr.bf16.gmra.mrb[0].mxu0 %v1554
        %v1611 = vpop.f32.mrb[0].mxu0
        %v1612 = vadd.f32 0.0, %v1611
        %v1613 = vpop.f32.mrb[0].mxu0
        %v1614 = vpop.f32.mrb[0].mxu0
        %v1615 = vadd.f32 0.0, %v1614
        %v1616 = vpop.f32.mrb[0].mxu0
        %1617 = vmatprep.mubr.bf16.mxu0 0
        %1618 = vmatmul.mubr.bf16.gmra.mrb[0].mxu0 %v1557
        %v1619 = vpop.f32.mrb[0].mxu0
        %v1620 = vadd.f32 0.0, %v1619
        %v1621 = vpop.f32.mrb[0].mxu0
        %v1622 = vpop.f32.mrb[0].mxu0
        %v1623 = vadd.f32 0.0, %v1622
        %v1624 = vpop.f32.mrb[0].mxu0
        %1625 = vmatprep.mubr.bf16.mxu0 0
        %1626 = vmatmul.mubr.bf16.gmra.mrb[0].mxu0 %v1560
        %v1627 = vpop.f32.mrb[0].mxu0
        %v1628 = vadd.f32 0.0, %v1627
        %v1629 = vpop.f32.mrb[0].mxu0
        %v1630 = vpop.f32.mrb[0].mxu0
        %v1631 = vadd.f32 0.0, %v1630
        %v1632 = vpop.f32.mrb[0].mxu0
        %1633 = vmatprep.mubr.bf16.mxu0 0
        %1634 = vmatmul.mubr.bf16.gmra.mrb[0].mxu0 %v1563
        %v1635 = vpop.f32.mrb[0].mxu0
        %v1636 = vadd.f32 0.0, %v1635
        %v1637 = vpop.f32.mrb[0].mxu0
        %v1638 = vpop.f32.mrb[0].mxu0
        %v1639 = vadd.f32 0.0, %v1638
        %v1640 = vpop.f32.mrb[0].mxu0
        %1641 = vmatprep.mubr.bf16.mxu0 0
        %1642 = vmatmul.mubr.bf16.gmra.mrb[0].mxu0 %v1566
        %v1643 = vpop.f32.mrb[0].mxu0
        %v1644 = vadd.f32 0.0, %v1643
        %v1645 = vpop.f32.mrb[0].mxu0
        %v1646 = vpop.f32.mrb[0].mxu0
        %v1647 = vadd.f32 0.0, %v1646
        %v1648 = vpop.f32.mrb[0].mxu0
        %1649 = vmatprep.mubr.bf16.mxu0 0
        %1650 = vmatmul.mubr.bf16.gmra.mrb[0].mxu0 %v1569
        %v1651 = vpop.f32.mrb[0].mxu0
        %v1652 = vadd.f32 0.0, %v1651
        %v1653 = vpop.f32.mrb[0].mxu0
        %v1654 = vpop.f32.mrb[0].mxu0
        %v1655 = vadd.f32 0.0, %v1654
        %v1656 = vpop.f32.mrb[0].mxu0
        %1657 = vmatprep.mubr.bf16.mxu0 0
        %1658 = vmatmul.mubr.bf16.gmra.mrb[0].mxu0 %v1572
        %v1659 = vpop.f32.mrb[0].mxu0
        %v1660 = vadd.f32 0.0, %v1659
        %v1661 = vpop.f32.mrb[0].mxu0
        %v1662 = vpop.f32.mrb[0].mxu0
        %v1663 = vadd.f32 0.0, %v1662
        %v1664 = vpop.f32.mrb[0].mxu0
        %1665 = vmatprep.mubr.bf16.mxu0 0
        %1666 = vmatmul.mubr.bf16.gmra.mrb[0].mxu0 %v1575
        %v1667 = vpop.f32.mrb[0].mxu0
        %v1668 = vadd.f32 0.0, %v1667
        %v1669 = vpop.f32.mrb[0].mxu0
        %v1670 = vpop.f32.mrb[0].mxu0
        %v1671 = vadd.f32 0.0, %v1670
        %v1672 = vpop.f32.mrb[0].mxu0
        %1673 = vdwg.mxu0
        %1674 = vmax.xlane.f32.xlu0 %v1612
        %v1675 = vpop.xlane.xlu0 %1674
        %1676 = vmax.xlane.f32.xlu0 %v1615
        %v1677 = vpop.xlane.xlu0 %1676
        %1678 = vmax.xlane.f32.xlu0 %v1620
        %v1679 = vpop.xlane.xlu0 %1678
        %1680 = vmax.xlane.f32.xlu0 %v1623
        %v1681 = vpop.xlane.xlu0 %1680
        %1682 = vmax.xlane.f32.xlu0 %v1628
        %v1683 = vpop.xlane.xlu0 %1682
        %1684 = vmax.xlane.f32.xlu0 %v1631
        %v1685 = vpop.xlane.xlu0 %1684
        %1686 = vmax.xlane.f32.xlu0 %v1636
        %v1687 = vpop.xlane.xlu0 %1686
        %1688 = vmax.xlane.f32.xlu0 %v1639
        %v1689 = vpop.xlane.xlu0 %1688
        %1690 = vmax.xlane.f32.xlu0 %v1644
        %v1691 = vpop.xlane.xlu0 %1690
        %1692 = vmax.xlane.f32.xlu0 %v1647
        %v1693 = vpop.xlane.xlu0 %1692
        %1694 = vmax.xlane.f32.xlu0 %v1652
        %v1695 = vpop.xlane.xlu0 %1694
        %1696 = vmax.xlane.f32.xlu0 %v1655
        %v1697 = vpop.xlane.xlu0 %1696
        %1698 = vmax.xlane.f32.xlu0 %v1660
        %v1699 = vpop.xlane.xlu0 %1698
        %1700 = vmax.xlane.f32.xlu0 %v1663
        %v1701 = vpop.xlane.xlu0 %1700
        %1702 = vmax.xlane.f32.xlu0 %v1668
        %v1703 = vpop.xlane.xlu0 %1702
        %1704 = vmax.xlane.f32.xlu0 %v1671
        %v1705 = vpop.xlane.xlu0 %1704
        %v1706 = vsub.f32 %v1612, %v1675
        %v1707 = vsub.f32 %v1615, %v1677
        %v1708 = vsub.f32 %v1620, %v1679
        %v1709 = vsub.f32 %v1623, %v1681
        %v1710 = vsub.f32 %v1628, %v1683
        %v1711 = vsub.f32 %v1631, %v1685
        %v1712 = vsub.f32 %v1636, %v1687
        %v1713 = vsub.f32 %v1639, %v1689
        %v1714 = vsub.f32 %v1644, %v1691
        %v1715 = vsub.f32 %v1647, %v1693
        %v1716 = vsub.f32 %v1652, %v1695
        %v1717 = vsub.f32 %v1655, %v1697
        %v1718 = vsub.f32 %v1660, %v1699
        %v1719 = vsub.f32 %v1663, %v1701
        %v1720 = vsub.f32 %v1668, %v1703
        %v1721 = vsub.f32 %v1671, %v1705
        %v1722 = vmul.f32 %v1706, 1.442695
        %v1723 = vpow.pop %v1722
        %v1724 = vmul.f32 %v1707, 1.442695
        %v1725 = vpow.pop %v1724
        %v1726 = vmul.f32 %v1708, 1.442695
        %v1727 = vpow.pop %v1726
        %v1728 = vmul.f32 %v1709, 1.442695
        %v1729 = vpow.pop %v1728
        %v1730 = vmul.f32 %v1710, 1.442695
        %v1731 = vpow.pop %v1730
        %v1732 = vmul.f32 %v1711, 1.442695
        %v1733 = vpow.pop %v1732
        %v1734 = vmul.f32 %v1712, 1.442695
        %v1735 = vpow.pop %v1734
        %v1736 = vmul.f32 %v1713, 1.442695
        %v1737 = vpow.pop %v1736
        %v1738 = vmul.f32 %v1714, 1.442695
        %v1739 = vpow.pop %v1738
        %v1740 = vmul.f32 %v1715, 1.442695
        %v1741 = vpow.pop %v1740
        %v1742 = vmul.f32 %v1716, 1.442695
        %v1743 = vpow.pop %v1742
        %v1744 = vmul.f32 %v1717, 1.442695
        %v1745 = vpow.pop %v1744
        %v1746 = vmul.f32 %v1718, 1.442695
        %v1747 = vpow.pop %v1746
        %v1748 = vmul.f32 %v1719, 1.442695
        %v1749 = vpow.pop %v1748
        %v1750 = vmul.f32 %v1720, 1.442695
        %v1751 = vpow.pop %v1750
        %v1752 = vmul.f32 %v1721, 1.442695
        %v1753 = vpow.pop %v1752
        %1754 = vadd.xlane.f32.xlu0 %v1723
        %v1755 = vpop.xlane.xlu0 %1754
        %1756 = vadd.xlane.f32.xlu0 %v1725
        %v1757 = vpop.xlane.xlu0 %1756
        %1758 = vadd.xlane.f32.xlu0 %v1727
        %v1759 = vpop.xlane.xlu0 %1758
        %1760 = vadd.xlane.f32.xlu0 %v1729
        %v1761 = vpop.xlane.xlu0 %1760
        %1762 = vadd.xlane.f32.xlu0 %v1731
        %v1763 = vpop.xlane.xlu0 %1762
        %1764 = vadd.xlane.f32.xlu0 %v1733
        %v1765 = vpop.xlane.xlu0 %1764
        %1766 = vadd.xlane.f32.xlu0 %v1735
        %v1767 = vpop.xlane.xlu0 %1766
        %1768 = vadd.xlane.f32.xlu0 %v1737
        %v1769 = vpop.xlane.xlu0 %1768
        %1770 = vadd.xlane.f32.xlu0 %v1739
        %v1771 = vpop.xlane.xlu0 %1770
        %1772 = vadd.xlane.f32.xlu0 %v1741
        %v1773 = vpop.xlane.xlu0 %1772
        %1774 = vadd.xlane.f32.xlu0 %v1743
        %v1775 = vpop.xlane.xlu0 %1774
        %1776 = vadd.xlane.f32.xlu0 %v1745
        %v1777 = vpop.xlane.xlu0 %1776
        %1778 = vadd.xlane.f32.xlu0 %v1747
        %v1779 = vpop.xlane.xlu0 %1778
        %1780 = vadd.xlane.f32.xlu0 %v1749
        %v1781 = vpop.xlane.xlu0 %1780
        %1782 = vadd.xlane.f32.xlu0 %v1751
        %v1783 = vpop.xlane.xlu0 %1782
        %1784 = vadd.xlane.f32.xlu0 %v1753
        %v1785 = vpop.xlane.xlu0 %1784
        %v1786 = vrcp.pop %v1755
        %v1787 = vrcp.pop %v1757
        %v1788 = vrcp.pop %v1759
        %v1789 = vrcp.pop %v1761
        %v1790 = vrcp.pop %v1763
        %v1791 = vrcp.pop %v1765
        %v1792 = vrcp.pop %v1767
        %v1793 = vrcp.pop %v1769
        %v1794 = vrcp.pop %v1771
        %v1795 = vrcp.pop %v1773
        %v1796 = vrcp.pop %v1775
        %v1797 = vrcp.pop %v1777
        %v1798 = vrcp.pop %v1779
        %v1799 = vrcp.pop %v1781
        %v1800 = vrcp.pop %v1783
        %v1801 = vrcp.pop %v1785
        %v1802 = vmul.f32 %v1723, %v1786
        %v1803 = vmul.f32 %v1725, %v1787
        %v1804 = vmul.f32 %v1727, %v1788
        %v1805 = vmul.f32 %v1729, %v1789
        %v1806 = vmul.f32 %v1731, %v1790
        %v1807 = vmul.f32 %v1733, %v1791
        %v1808 = vmul.f32 %v1735, %v1792
        %v1809 = vmul.f32 %v1737, %v1793
        %v1810 = vmul.f32 %v1739, %v1794
        %v1811 = vmul.f32 %v1741, %v1795
        %v1812 = vmul.f32 %v1743, %v1796
        %v1813 = vmul.f32 %v1745, %v1797
        %v1814 = vmul.f32 %v1747, %v1798
        %v1815 = vmul.f32 %v1749, %v1799
        %v1816 = vmul.f32 %v1751, %v1800
        %v1817 = vmul.f32 %v1753, %v1801
        %v1818 = vpack.c.bf16 %v1803, %v1802
        %v1819 = vpack.c.bf16 %v1805, %v1804
        %v1820 = vpack.c.bf16 %v1807, %v1806
        %v1821 = vpack.c.bf16 %v1809, %v1808
        %v1822 = vpack.c.bf16 %v1811, %v1810
        %v1823 = vpack.c.bf16 %v1813, %v1812
        %v1824 = vpack.c.bf16 %v1815, %v1814
        %v1825 = vpack.c.bf16 %v1817, %v1816
        %1826 = vmatprep.subr.bf16.mxu0 0
        %1827 = vmatpush1.bf16.xpose.msra.mxu0 %v1140
        %1828 = vmatprep.subr.bf16.mxu0 0
        %1829 = vmatpush1.bf16.xpose.msra.mxu0 %v1141
        %1830 = vmatprep.subr.bf16.mxu0 0
        %1831 = vmatpush1.bf16.xpose.msra.mxu0 0
        %1832 = vmatprep.subr.bf16.mxu0 0
        %1833 = vmatpush1.bf16.xpose.msra.mxu0 0
        %1834 = vmatprep.subr.bf16.mxu0 0
        %1835 = vmatpush1.bf16.xpose.msra.mxu0 0
        %1836 = vmatprep.subr.bf16.mxu0 0
        %1837 = vmatpush1.bf16.xpose.msra.mxu0 0
        %1838 = vmatprep.subr.bf16.mxu0 0
        %1839 = vmatpush1.bf16.xpose.msra.mxu0 0
        %1840 = vmatprep.subr.bf16.mxu0 0
        %1841 = vmatpush1.bf16.xpose.msra.mxu0 0
        %1842 = vmatprep.subr.bf16.mxu0 0
        %1843 = vmatpush1.bf16.xpose.msra.mxu0 0
        %1844 = vmatprep.subr.bf16.mxu0 0
        %1845 = vmatpush1.bf16.xpose.msra.mxu0 0
        %1846 = vmatprep.subr.bf16.mxu0 0
        %1847 = vmatpush1.bf16.xpose.msra.mxu0 0
        %1848 = vmatprep.subr.bf16.mxu0 0
        %1849 = vmatpush1.bf16.xpose.msra.mxu0 0
        %1850 = vmatprep.subr.bf16.mxu0 0
        %1851 = vmatpush1.bf16.xpose.msra.mxu0 0
        %1852 = vmatprep.subr.bf16.mxu0 0
        %1853 = vmatpush1.bf16.xpose.msra.mxu0 0
        %1854 = vmatprep.subr.bf16.mxu0 0
        %1855 = vmatpush1.bf16.xpose.msra.mxu0 0
        %1856 = vmatprep.subr.bf16.mxu0 0
        %1857 = vmatpush1.bf16.xpose.msra.mxu0 0
        %1858 = vmatprep.mubr.bf16.mxu0 0
        %1859 = vmatmul.mubr.bf16.gmra.mrb[0].mxu0 %v1818
        %v1860 = vpop.f32.mrb[0].mxu0
        %v1861 = vadd.f32 0.0, %v1860
        %v1862 = vpop.f32.mrb[0].mxu0
        %v1863 = vpop.f32.mrb[0].mxu0
        %v1864 = vadd.f32 0.0, %v1863
        %v1865 = vpop.f32.mrb[0].mxu0
        %1866 = vmatprep.mubr.bf16.mxu0 0
        %1867 = vmatmul.mubr.bf16.gmra.mrb[0].mxu0 %v1819
        %v1868 = vpop.f32.mrb[0].mxu0
        %v1869 = vadd.f32 0.0, %v1868
        %v1870 = vpop.f32.mrb[0].mxu0
        %v1871 = vpop.f32.mrb[0].mxu0
        %v1872 = vadd.f32 0.0, %v1871
        %v1873 = vpop.f32.mrb[0].mxu0
        %1874 = vmatprep.mubr.bf16.mxu0 0
        %1875 = vmatmul.mubr.bf16.gmra.mrb[0].mxu0 %v1820
        %v1876 = vpop.f32.mrb[0].mxu0
        %v1877 = vadd.f32 0.0, %v1876
        %v1878 = vpop.f32.mrb[0].mxu0
        %v1879 = vpop.f32.mrb[0].mxu0
        %v1880 = vadd.f32 0.0, %v1879
        %v1881 = vpop.f32.mrb[0].mxu0
        %1882 = vmatprep.mubr.bf16.mxu0 0
        %1883 = vmatmul.mubr.bf16.gmra.mrb[0].mxu0 %v1821
        %v1884 = vpop.f32.mrb[0].mxu0
        %v1885 = vadd.f32 0.0, %v1884
        %v1886 = vpop.f32.mrb[0].mxu0
        %v1887 = vpop.f32.mrb[0].mxu0
        %v1888 = vadd.f32 0.0, %v1887
        %v1889 = vpop.f32.mrb[0].mxu0
        %1890 = vmatprep.mubr.bf16.mxu0 0
        %1891 = vmatmul.mubr.bf16.gmra.mrb[0].mxu0 %v1822
        %v1892 = vpop.f32.mrb[0].mxu0
        %v1893 = vadd.f32 0.0, %v1892
        %v1894 = vpop.f32.mrb[0].mxu0
        %v1895 = vpop.f32.mrb[0].mxu0
        %v1896 = vadd.f32 0.0, %v1895
        %v1897 = vpop.f32.mrb[0].mxu0
        %1898 = vmatprep.mubr.bf16.mxu0 0
        %1899 = vmatmul.mubr.bf16.gmra.mrb[0].mxu0 %v1823
        %v1900 = vpop.f32.mrb[0].mxu0
        %v1901 = vadd.f32 0.0, %v1900
        %v1902 = vpop.f32.mrb[0].mxu0
        %v1903 = vpop.f32.mrb[0].mxu0
        %v1904 = vadd.f32 0.0, %v1903
        %v1905 = vpop.f32.mrb[0].mxu0
        %1906 = vmatprep.mubr.bf16.mxu0 0
        %1907 = vmatmul.mubr.bf16.gmra.mrb[0].mxu0 %v1824
        %v1908 = vpop.f32.mrb[0].mxu0
        %v1909 = vadd.f32 0.0, %v1908
        %v1910 = vpop.f32.mrb[0].mxu0
        %v1911 = vpop.f32.mrb[0].mxu0
        %v1912 = vadd.f32 0.0, %v1911
        %v1913 = vpop.f32.mrb[0].mxu0
        %1914 = vmatprep.mubr.bf16.mxu0 0
        %1915 = vmatmul.mubr.bf16.gmra.mrb[0].mxu0 %v1825
        %v1916 = vpop.f32.mrb[0].mxu0
        %v1917 = vadd.f32 0.0, %v1916
        %v1918 = vpop.f32.mrb[0].mxu0
        %v1919 = vpop.f32.mrb[0].mxu0
        %v1920 = vadd.f32 0.0, %v1919
        %v1921 = vpop.f32.mrb[0].mxu0
        %1922 = vdwg.mxu0
        %v1923 = vpack.c.bf16 %v1864, %v1861
        %v1924 = vpack.c.bf16 %v1872, %v1869
        %v1925 = vpack.c.bf16 %v1880, %v1877
        %v1926 = vpack.c.bf16 %v1888, %v1885
        %v1927 = vpack.c.bf16 %v1896, %v1893
        %v1928 = vpack.c.bf16 %v1904, %v1901
        %v1929 = vpack.c.bf16 %v1912, %v1909
        %v1930 = vpack.c.bf16 %v1920, %v1917
        %v1931 = vld [vmem:[%s514 + $0x10] sm:$0xf]
        %v1932 = vld [vmem:[%s514 + $0x14] sm:$0xf]
        %v1933 = vld [vmem:[%s514 + $0x18] sm:$0xf]
        %v1934 = vld [vmem:[%s514 + $0x1c] sm:$0xf]
        %v1939 = vunpack.c.l.b16 %v1931
        %v1940 = vunpack.c.l.b16 %v1932
        %v1941 = vunpack.c.l.b16 %v1933
        %v1942 = vunpack.c.l.b16 %v1934
        %v1943 = vpack.c.b16 %v1940, %v1939
        %v1944 = vpack.c.b16 %v1942, %v1941
        %v1948 = vsel %vm1146, %v1923, 0
        %v1951 = vsel %vm1146, %v1924, 0
        %v1954 = vsel %vm1146, %v1925, 0
        %v1957 = vsel %vm1146, %v1926, 0
        %v1960 = vsel %vm1146, %v1927, 0
        %v1963 = vsel %vm1146, %v1928, 0
        %v1966 = vsel %vm1146, %v1929, 0
        %v1969 = vsel %vm1146, %v1930, 0
        %1971 = vmatprep.subr.bf16.mxu0 0
        %1972 = vmatpush1.bf16.msra.mxu0 %v1943
        %1973 = vmatprep.subr.bf16.mxu0 0
        %1974 = vmatpush1.bf16.msra.mxu0 %v1944
        %1975 = vmatprep.subr.bf16.mxu0 0
        %1976 = vmatpush1.bf16.msra.mxu0 0
        %1977 = vmatprep.subr.bf16.mxu0 0
        %1978 = vmatpush1.bf16.msra.mxu0 0
        %1979 = vmatprep.subr.bf16.mxu0 0
        %1980 = vmatpush1.bf16.msra.mxu0 0
        %1981 = vmatprep.subr.bf16.mxu0 0
        %1982 = vmatpush1.bf16.msra.mxu0 0
        %1983 = vmatprep.subr.bf16.mxu0 0
        %1984 = vmatpush1.bf16.msra.mxu0 0
        %1985 = vmatprep.subr.bf16.mxu0 0
        %1986 = vmatpush1.bf16.msra.mxu0 0
        %1987 = vmatprep.subr.bf16.mxu0 0
        %1988 = vmatpush1.bf16.msra.mxu0 0
        %1989 = vmatprep.subr.bf16.mxu0 0
        %1990 = vmatpush1.bf16.msra.mxu0 0
        %1991 = vmatprep.subr.bf16.mxu0 0
        %1992 = vmatpush1.bf16.msra.mxu0 0
        %1993 = vmatprep.subr.bf16.mxu0 0
        %1994 = vmatpush1.bf16.msra.mxu0 0
        %1995 = vmatprep.subr.bf16.mxu0 0
        %1996 = vmatpush1.bf16.msra.mxu0 0
        %1997 = vmatprep.subr.bf16.mxu0 0
        %1998 = vmatpush1.bf16.msra.mxu0 0
        %1999 = vmatprep.subr.bf16.mxu0 0
        %2000 = vmatpush1.bf16.msra.mxu0 0
        %2001 = vmatprep.subr.bf16.mxu0 0
        %2002 = vmatpush1.bf16.msra.mxu0 0
        %2003 = vmatprep.mubr.bf16.mxu0 0
        %2004 = vmatmul.mubr.bf16.gmra.mrb[0].mxu0 %v1948
        %v2005 = vpop.f32.mrb[0].mxu0
        %v2006 = vadd.f32 0.0, %v2005
        %v2007 = vpop.f32.mrb[0].mxu0
        %v2008 = vpop.f32.mrb[0].mxu0
        %v2009 = vadd.f32 0.0, %v2008
        %v2010 = vpop.f32.mrb[0].mxu0
        %2011 = vmatprep.mubr.bf16.mxu0 0
        %2012 = vmatmul.mubr.bf16.gmra.mrb[0].mxu0 %v1951
        %v2013 = vpop.f32.mrb[0].mxu0
        %v2014 = vadd.f32 0.0, %v2013
        %v2015 = vpop.f32.mrb[0].mxu0
        %v2016 = vpop.f32.mrb[0].mxu0
        %v2017 = vadd.f32 0.0, %v2016
        %v2018 = vpop.f32.mrb[0].mxu0
        %2019 = vmatprep.mubr.bf16.mxu0 0
        %2020 = vmatmul.mubr.bf16.gmra.mrb[0].mxu0 %v1954
        %v2021 = vpop.f32.mrb[0].mxu0
        %v2022 = vadd.f32 0.0, %v2021
        %v2023 = vpop.f32.mrb[0].mxu0
        %v2024 = vpop.f32.mrb[0].mxu0
        %v2025 = vadd.f32 0.0, %v2024
        %v2026 = vpop.f32.mrb[0].mxu0
        %2027 = vmatprep.mubr.bf16.mxu0 0
        %2028 = vmatmul.mubr.bf16.gmra.mrb[0].mxu0 %v1957
        %v2029 = vpop.f32.mrb[0].mxu0
        %v2030 = vadd.f32 0.0, %v2029
        %v2031 = vpop.f32.mrb[0].mxu0
        %v2032 = vpop.f32.mrb[0].mxu0
        %v2033 = vadd.f32 0.0, %v2032
        %v2034 = vpop.f32.mrb[0].mxu0
        %2035 = vmatprep.mubr.bf16.mxu0 0
        %2036 = vmatmul.mubr.bf16.gmra.mrb[0].mxu0 %v1960
        %v2037 = vpop.f32.mrb[0].mxu0
        %v2038 = vadd.f32 0.0, %v2037
        %v2039 = vpop.f32.mrb[0].mxu0
        %v2040 = vpop.f32.mrb[0].mxu0
        %v2041 = vadd.f32 0.0, %v2040
        %v2042 = vpop.f32.mrb[0].mxu0
        %2043 = vmatprep.mubr.bf16.mxu0 0
        %2044 = vmatmul.mubr.bf16.gmra.mrb[0].mxu0 %v1963
        %v2045 = vpop.f32.mrb[0].mxu0
        %v2046 = vadd.f32 0.0, %v2045
        %v2047 = vpop.f32.mrb[0].mxu0
        %v2048 = vpop.f32.mrb[0].mxu0
        %v2049 = vadd.f32 0.0, %v2048
        %v2050 = vpop.f32.mrb[0].mxu0
        %2051 = vmatprep.mubr.bf16.mxu0 0
        %2052 = vmatmul.mubr.bf16.gmra.mrb[0].mxu0 %v1966
        %v2053 = vpop.f32.mrb[0].mxu0
        %v2054 = vadd.f32 0.0, %v2053
        %v2055 = vpop.f32.mrb[0].mxu0
        %v2056 = vpop.f32.mrb[0].mxu0
        %v2057 = vadd.f32 0.0, %v2056
        %v2058 = vpop.f32.mrb[0].mxu0
        %2059 = vmatprep.mubr.bf16.mxu0 0
        %2060 = vmatmul.mubr.bf16.gmra.mrb[0].mxu0 %v1969
        %v2061 = vpop.f32.mrb[0].mxu0
        %v2062 = vadd.f32 0.0, %v2061
        %v2063 = vpop.f32.mrb[0].mxu0
        %v2064 = vpop.f32.mrb[0].mxu0
        %v2065 = vadd.f32 0.0, %v2064
        %v2066 = vpop.f32.mrb[0].mxu0
        %2067 = vdwg.mxu0
        %v2072 = vunpack.c.l.b16 %v1525
        %v2073 = vunpack.c.l.b16 %v1526
        %v2074 = vunpack.c.l.b16 %v1527
        %v2075 = vunpack.c.l.b16 %v1528
        %v2076 = vpack.c.b16 %v2073, %v2072
        %v2077 = vpack.c.b16 %v2075, %v2074
        %v2081 = vsel %vm1146, %v1517, 0
        %v2084 = vsel %vm1146, %v1518, 0
        %v2087 = vsel %vm1146, %v1519, 0
        %v2090 = vsel %vm1146, %v1520, 0
        %v2093 = vsel %vm1146, %v1521, 0
        %v2096 = vsel %vm1146, %v1522, 0
        %v2099 = vsel %vm1146, %v1523, 0
        %v2102 = vsel %vm1146, %v1524, 0
        %2104 = vmatprep.subr.bf16.mxu0 0
        %2105 = vmatpush1.bf16.msra.mxu0 %v2076
        %2106 = vmatprep.subr.bf16.mxu0 0
        %2107 = vmatpush1.bf16.msra.mxu0 %v2077
        %2108 = vmatprep.subr.bf16.mxu0 0
        %2109 = vmatpush1.bf16.msra.mxu0 0
        %2110 = vmatprep.subr.bf16.mxu0 0
        %2111 = vmatpush1.bf16.msra.mxu0 0
        %2112 = vmatprep.subr.bf16.mxu0 0
        %2113 = vmatpush1.bf16.msra.mxu0 0
        %2114 = vmatprep.subr.bf16.mxu0 0
        %2115 = vmatpush1.bf16.msra.mxu0 0
        %2116 = vmatprep.subr.bf16.mxu0 0
        %2117 = vmatpush1.bf16.msra.mxu0 0
        %2118 = vmatprep.subr.bf16.mxu0 0
        %2119 = vmatpush1.bf16.msra.mxu0 0
        %2120 = vmatprep.subr.bf16.mxu0 0
        %2121 = vmatpush1.bf16.msra.mxu0 0
        %2122 = vmatprep.subr.bf16.mxu0 0
        %2123 = vmatpush1.bf16.msra.mxu0 0
        %2124 = vmatprep.subr.bf16.mxu0 0
        %2125 = vmatpush1.bf16.msra.mxu0 0
        %2126 = vmatprep.subr.bf16.mxu0 0
        %2127 = vmatpush1.bf16.msra.mxu0 0
        %2128 = vmatprep.subr.bf16.mxu0 0
        %2129 = vmatpush1.bf16.msra.mxu0 0
        %2130 = vmatprep.subr.bf16.mxu0 0
        %2131 = vmatpush1.bf16.msra.mxu0 0
        %2132 = vmatprep.subr.bf16.mxu0 0
        %2133 = vmatpush1.bf16.msra.mxu0 0
        %2134 = vmatprep.subr.bf16.mxu0 0
        %2135 = vmatpush1.bf16.msra.mxu0 0
        %2136 = vmatprep.mubr.bf16.mxu0 0
        %2137 = vmatmul.mubr.bf16.gmra.mrb[0].mxu0 %v2081
        %v2138 = vpop.f32.mrb[0].mxu0
        %v2139 = vadd.f32 %v2006, %v2138
        %v2140 = vpop.f32.mrb[0].mxu0
        %v2141 = vpop.f32.mrb[0].mxu0
        %v2142 = vadd.f32 %v2009, %v2141
        %v2143 = vpop.f32.mrb[0].mxu0
        %2144 = vmatprep.mubr.bf16.mxu0 0
        %2145 = vmatmul.mubr.bf16.gmra.mrb[0].mxu0 %v2084
        %v2146 = vpop.f32.mrb[0].mxu0
        %v2147 = vadd.f32 %v2014, %v2146
        %v2148 = vpop.f32.mrb[0].mxu0
        %v2149 = vpop.f32.mrb[0].mxu0
        %v2150 = vadd.f32 %v2017, %v2149
        %v2151 = vpop.f32.mrb[0].mxu0
        %2152 = vmatprep.mubr.bf16.mxu0 0
        %2153 = vmatmul.mubr.bf16.gmra.mrb[0].mxu0 %v2087
        %v2154 = vpop.f32.mrb[0].mxu0
        %v2155 = vadd.f32 %v2022, %v2154
        %v2156 = vpop.f32.mrb[0].mxu0
        %v2157 = vpop.f32.mrb[0].mxu0
        %v2158 = vadd.f32 %v2025, %v2157
        %v2159 = vpop.f32.mrb[0].mxu0
        %2160 = vmatprep.mubr.bf16.mxu0 0
        %2161 = vmatmul.mubr.bf16.gmra.mrb[0].mxu0 %v2090
        %v2162 = vpop.f32.mrb[0].mxu0
        %v2163 = vadd.f32 %v2030, %v2162
        %v2164 = vpop.f32.mrb[0].mxu0
        %v2165 = vpop.f32.mrb[0].mxu0
        %v2166 = vadd.f32 %v2033, %v2165
        %v2167 = vpop.f32.mrb[0].mxu0
        %2168 = vmatprep.mubr.bf16.mxu0 0
        %2169 = vmatmul.mubr.bf16.gmra.mrb[0].mxu0 %v2093
        %v2170 = vpop.f32.mrb[0].mxu0
        %v2171 = vadd.f32 %v2038, %v2170
        %v2172 = vpop.f32.mrb[0].mxu0
        %v2173 = vpop.f32.mrb[0].mxu0
        %v2174 = vadd.f32 %v2041, %v2173
        %v2175 = vpop.f32.mrb[0].mxu0
        %2176 = vmatprep.mubr.bf16.mxu0 0
        %2177 = vmatmul.mubr.bf16.gmra.mrb[0].mxu0 %v2096
        %v2178 = vpop.f32.mrb[0].mxu0
        %v2179 = vadd.f32 %v2046, %v2178
        %v2180 = vpop.f32.mrb[0].mxu0
        %v2181 = vpop.f32.mrb[0].mxu0
        %v2182 = vadd.f32 %v2049, %v2181
        %v2183 = vpop.f32.mrb[0].mxu0
        %2184 = vmatprep.mubr.bf16.mxu0 0
        %2185 = vmatmul.mubr.bf16.gmra.mrb[0].mxu0 %v2099
        %v2186 = vpop.f32.mrb[0].mxu0
        %v2187 = vadd.f32 %v2054, %v2186
        %v2188 = vpop.f32.mrb[0].mxu0
        %v2189 = vpop.f32.mrb[0].mxu0
        %v2190 = vadd.f32 %v2057, %v2189
        %v2191 = vpop.f32.mrb[0].mxu0
        %2192 = vmatprep.mubr.bf16.mxu0 0
        %2193 = vmatmul.mubr.bf16.gmra.mrb[0].mxu0 %v2102
        %v2194 = vpop.f32.mrb[0].mxu0
        %v2195 = vadd.f32 %v2062, %v2194
        %v2196 = vpop.f32.mrb[0].mxu0
        %v2197 = vpop.f32.mrb[0].mxu0
        %v2198 = vadd.f32 %v2065, %v2197
        %v2199 = vpop.f32.mrb[0].mxu0
        %2200 = vdwg.mxu0
        %2201 = vrot.lane.b32.xlu0 %v1058, 64
        %v2202 = vpop.permute.xlu0 %2201
        %2203 = vrot.lane.b32.xlu0 %v1059, 64
        %v2204 = vpop.permute.xlu0 %2203
        %2205 = vrot.lane.b32.xlu0 %v1060, 64
        %v2206 = vpop.permute.xlu0 %2205
        %2207 = vrot.lane.b32.xlu0 %v1061, 64
        %v2208 = vpop.permute.xlu0 %2207
        %2209 = vrot.lane.b32.xlu0 %v1062, 64
        %v2210 = vpop.permute.xlu0 %2209
        %2211 = vrot.lane.b32.xlu0 %v1063, 64
        %v2212 = vpop.permute.xlu0 %2211
        %2213 = vrot.lane.b32.xlu0 %v1064, 64
        %v2214 = vpop.permute.xlu0 %2213
        %2215 = vrot.lane.b32.xlu0 %v1065, 64
        %v2216 = vpop.permute.xlu0 %2215
        %v2218 = vsel %vm1146, %v2202, 0
        %v2221 = vsel %vm1146, %v2204, 0
        %v2224 = vsel %vm1146, %v2206, 0
        %v2227 = vsel %vm1146, %v2208, 0
        %v2230 = vsel %vm1146, %v2210, 0
        %v2233 = vsel %vm1146, %v2212, 0
        %v2236 = vsel %vm1146, %v2214, 0
        %v2239 = vsel %vm1146, %v2216, 0
        %2241 = vmatprep.subr.bf16.mxu0 0
        %2242 = vmatpush1.bf16.msra.mxu0 %v1134
        %2243 = vmatprep.subr.bf16.mxu0 0
        %2244 = vmatpush1.bf16.msra.mxu0 %v1135
        %2245 = vmatprep.subr.bf16.mxu0 0
        %2246 = vmatpush1.bf16.msra.mxu0 0
        %2247 = vmatprep.subr.bf16.mxu0 0
        %2248 = vmatpush1.bf16.msra.mxu0 0
        %2249 = vmatprep.subr.bf16.mxu0 0
        %2250 = vmatpush1.bf16.msra.mxu0 0
        %2251 = vmatprep.subr.bf16.mxu0 0
        %2252 = vmatpush1.bf16.msra.mxu0 0
        %2253 = vmatprep.subr.bf16.mxu0 0
        %2254 = vmatpush1.bf16.msra.mxu0 0
        %2255 = vmatprep.subr.bf16.mxu0 0
        %2256 = vmatpush1.bf16.msra.mxu0 0
        %2257 = vmatprep.subr.bf16.mxu0 0
        %2258 = vmatpush1.bf16.msra.mxu0 0
        %2259 = vmatprep.subr.bf16.mxu0 0
        %2260 = vmatpush1.bf16.msra.mxu0 0
        %2261 = vmatprep.subr.bf16.mxu0 0
        %2262 = vmatpush1.bf16.msra.mxu0 0
        %2263 = vmatprep.subr.bf16.mxu0 0
        %2264 = vmatpush1.bf16.msra.mxu0 0
        %2265 = vmatprep.subr.bf16.mxu0 0
        %2266 = vmatpush1.bf16.msra.mxu0 0
        %2267 = vmatprep.subr.bf16.mxu0 0
        %2268 = vmatpush1.bf16.msra.mxu0 0
        %2269 = vmatprep.subr.bf16.mxu0 0
        %2270 = vmatpush1.bf16.msra.mxu0 0
        %2271 = vmatprep.subr.bf16.mxu0 0
        %2272 = vmatpush1.bf16.msra.mxu0 0
        %2273 = vmatprep.mubr.bf16.mxu0 0
        %2274 = vmatmul.mubr.bf16.gmra.mrb[0].mxu0 %v2218
        %v2275 = vpop.f32.mrb[0].mxu0
        %v2276 = vadd.f32 0.0, %v2275
        %v2277 = vpop.f32.mrb[0].mxu0
        %v2278 = vpop.f32.mrb[0].mxu0
        %v2279 = vadd.f32 0.0, %v2278
        %v2280 = vpop.f32.mrb[0].mxu0
        %2281 = vmatprep.mubr.bf16.mxu0 0
        %2282 = vmatmul.mubr.bf16.gmra.mrb[0].mxu0 %v2221
        %v2283 = vpop.f32.mrb[0].mxu0
        %v2284 = vadd.f32 0.0, %v2283
        %v2285 = vpop.f32.mrb[0].mxu0
        %v2286 = vpop.f32.mrb[0].mxu0
        %v2287 = vadd.f32 0.0, %v2286
        %v2288 = vpop.f32.mrb[0].mxu0
        %2289 = vmatprep.mubr.bf16.mxu0 0
        %2290 = vmatmul.mubr.bf16.gmra.mrb[0].mxu0 %v2224
        %v2291 = vpop.f32.mrb[0].mxu0
        %v2292 = vadd.f32 0.0, %v2291
        %v2293 = vpop.f32.mrb[0].mxu0
        %v2294 = vpop.f32.mrb[0].mxu0
        %v2295 = vadd.f32 0.0, %v2294
        %v2296 = vpop.f32.mrb[0].mxu0
        %2297 = vmatprep.mubr.bf16.mxu0 0
        %2298 = vmatmul.mubr.bf16.gmra.mrb[0].mxu0 %v2227
        %v2299 = vpop.f32.mrb[0].mxu0
        %v2300 = vadd.f32 0.0, %v2299
        %v2301 = vpop.f32.mrb[0].mxu0
        %v2302 = vpop.f32.mrb[0].mxu0
        %v2303 = vadd.f32 0.0, %v2302
        %v2304 = vpop.f32.mrb[0].mxu0
        %2305 = vmatprep.mubr.bf16.mxu0 0
        %2306 = vmatmul.mubr.bf16.gmra.mrb[0].mxu0 %v2230
        %v2307 = vpop.f32.mrb[0].mxu0
        %v2308 = vadd.f32 0.0, %v2307
        %v2309 = vpop.f32.mrb[0].mxu0
        %v2310 = vpop.f32.mrb[0].mxu0
        %v2311 = vadd.f32 0.0, %v2310
        %v2312 = vpop.f32.mrb[0].mxu0
        %2313 = vmatprep.mubr.bf16.mxu0 0
        %2314 = vmatmul.mubr.bf16.gmra.mrb[0].mxu0 %v2233
        %v2315 = vpop.f32.mrb[0].mxu0
        %v2316 = vadd.f32 0.0, %v2315
        %v2317 = vpop.f32.mrb[0].mxu0
        %v2318 = vpop.f32.mrb[0].mxu0
        %v2319 = vadd.f32 0.0, %v2318
        %v2320 = vpop.f32.mrb[0].mxu0
        %2321 = vmatprep.mubr.bf16.mxu0 0
        %2322 = vmatmul.mubr.bf16.gmra.mrb[0].mxu0 %v2236
        %v2323 = vpop.f32.mrb[0].mxu0
        %v2324 = vadd.f32 0.0, %v2323
        %v2325 = vpop.f32.mrb[0].mxu0
        %v2326 = vpop.f32.mrb[0].mxu0
        %v2327 = vadd.f32 0.0, %v2326
        %v2328 = vpop.f32.mrb[0].mxu0
        %2329 = vmatprep.mubr.bf16.mxu0 0
        %2330 = vmatmul.mubr.bf16.gmra.mrb[0].mxu0 %v2239
        %v2331 = vpop.f32.mrb[0].mxu0
        %v2332 = vadd.f32 0.0, %v2331
        %v2333 = vpop.f32.mrb[0].mxu0
        %v2334 = vpop.f32.mrb[0].mxu0
        %v2335 = vadd.f32 0.0, %v2334
        %v2336 = vpop.f32.mrb[0].mxu0
        %2337 = vdwg.mxu0
        %2338 = vmax.xlane.f32.xlu0 %v2276
        %v2339 = vpop.xlane.xlu0 %2338
        %2340 = vmax.xlane.f32.xlu0 %v2279
        %v2341 = vpop.xlane.xlu0 %2340
        %2342 = vmax.xlane.f32.xlu0 %v2284
        %v2343 = vpop.xlane.xlu0 %2342
        %2344 = vmax.xlane.f32.xlu0 %v2287
        %v2345 = vpop.xlane.xlu0 %2344
        %2346 = vmax.xlane.f32.xlu0 %v2292
        %v2347 = vpop.xlane.xlu0 %2346
        %2348 = vmax.xlane.f32.xlu0 %v2295
        %v2349 = vpop.xlane.xlu0 %2348
        %2350 = vmax.xlane.f32.xlu0 %v2300
        %v2351 = vpop.xlane.xlu0 %2350
        %2352 = vmax.xlane.f32.xlu0 %v2303
        %v2353 = vpop.xlane.xlu0 %2352
        %2354 = vmax.xlane.f32.xlu0 %v2308
        %v2355 = vpop.xlane.xlu0 %2354
        %2356 = vmax.xlane.f32.xlu0 %v2311
        %v2357 = vpop.xlane.xlu0 %2356
        %2358 = vmax.xlane.f32.xlu0 %v2316
        %v2359 = vpop.xlane.xlu0 %2358
        %2360 = vmax.xlane.f32.xlu0 %v2319
        %v2361 = vpop.xlane.xlu0 %2360
        %2362 = vmax.xlane.f32.xlu0 %v2324
        %v2363 = vpop.xlane.xlu0 %2362
        %2364 = vmax.xlane.f32.xlu0 %v2327
        %v2365 = vpop.xlane.xlu0 %2364
        %2366 = vmax.xlane.f32.xlu0 %v2332
        %v2367 = vpop.xlane.xlu0 %2366
        %2368 = vmax.xlane.f32.xlu0 %v2335
        %v2369 = vpop.xlane.xlu0 %2368
        %v2370 = vsub.f32 %v2276, %v2339
        %v2371 = vsub.f32 %v2279, %v2341
        %v2372 = vsub.f32 %v2284, %v2343
        %v2373 = vsub.f32 %v2287, %v2345
        %v2374 = vsub.f32 %v2292, %v2347
        %v2375 = vsub.f32 %v2295, %v2349
        %v2376 = vsub.f32 %v2300, %v2351
        %v2377 = vsub.f32 %v2303, %v2353
        %v2378 = vsub.f32 %v2308, %v2355
        %v2379 = vsub.f32 %v2311, %v2357
        %v2380 = vsub.f32 %v2316, %v2359
        %v2381 = vsub.f32 %v2319, %v2361
        %v2382 = vsub.f32 %v2324, %v2363
        %v2383 = vsub.f32 %v2327, %v2365
        %v2384 = vsub.f32 %v2332, %v2367
        %v2385 = vsub.f32 %v2335, %v2369
        %v2386 = vmul.f32 %v2370, 1.442695
        %v2387 = vpow.pop %v2386
        %v2388 = vmul.f32 %v2371, 1.442695
        %v2389 = vpow.pop %v2388
        %v2390 = vmul.f32 %v2372, 1.442695
        %v2391 = vpow.pop %v2390
        %v2392 = vmul.f32 %v2373, 1.442695
        %v2393 = vpow.pop %v2392
        %v2394 = vmul.f32 %v2374, 1.442695
        %v2395 = vpow.pop %v2394
        %v2396 = vmul.f32 %v2375, 1.442695
        %v2397 = vpow.pop %v2396
        %v2398 = vmul.f32 %v2376, 1.442695
        %v2399 = vpow.pop %v2398
        %v2400 = vmul.f32 %v2377, 1.442695
        %v2401 = vpow.pop %v2400
        %v2402 = vmul.f32 %v2378, 1.442695
        %v2403 = vpow.pop %v2402
        %v2404 = vmul.f32 %v2379, 1.442695
        %v2405 = vpow.pop %v2404
        %v2406 = vmul.f32 %v2380, 1.442695
        %v2407 = vpow.pop %v2406
        %v2408 = vmul.f32 %v2381, 1.442695
        %v2409 = vpow.pop %v2408
        %v2410 = vmul.f32 %v2382, 1.442695
        %v2411 = vpow.pop %v2410
        %v2412 = vmul.f32 %v2383, 1.442695
        %v2413 = vpow.pop %v2412
        %v2414 = vmul.f32 %v2384, 1.442695
        %v2415 = vpow.pop %v2414
        %v2416 = vmul.f32 %v2385, 1.442695
        %v2417 = vpow.pop %v2416
        %2418 = vadd.xlane.f32.xlu0 %v2387
        %v2419 = vpop.xlane.xlu0 %2418
        %2420 = vadd.xlane.f32.xlu0 %v2389
        %v2421 = vpop.xlane.xlu0 %2420
        %2422 = vadd.xlane.f32.xlu0 %v2391
        %v2423 = vpop.xlane.xlu0 %2422
        %2424 = vadd.xlane.f32.xlu0 %v2393
        %v2425 = vpop.xlane.xlu0 %2424
        %2426 = vadd.xlane.f32.xlu0 %v2395
        %v2427 = vpop.xlane.xlu0 %2426
        %2428 = vadd.xlane.f32.xlu0 %v2397
        %v2429 = vpop.xlane.xlu0 %2428
        %2430 = vadd.xlane.f32.xlu0 %v2399
        %v2431 = vpop.xlane.xlu0 %2430
        %2432 = vadd.xlane.f32.xlu0 %v2401
        %v2433 = vpop.xlane.xlu0 %2432
        %2434 = vadd.xlane.f32.xlu0 %v2403
        %v2435 = vpop.xlane.xlu0 %2434
        %2436 = vadd.xlane.f32.xlu0 %v2405
        %v2437 = vpop.xlane.xlu0 %2436
        %2438 = vadd.xlane.f32.xlu0 %v2407
        %v2439 = vpop.xlane.xlu0 %2438
        %2440 = vadd.xlane.f32.xlu0 %v2409
        %v2441 = vpop.xlane.xlu0 %2440
        %2442 = vadd.xlane.f32.xlu0 %v2411
        %v2443 = vpop.xlane.xlu0 %2442
        %2444 = vadd.xlane.f32.xlu0 %v2413
        %v2445 = vpop.xlane.xlu0 %2444
        %2446 = vadd.xlane.f32.xlu0 %v2415
        %v2447 = vpop.xlane.xlu0 %2446
        %2448 = vadd.xlane.f32.xlu0 %v2417
        %v2449 = vpop.xlane.xlu0 %2448
        %v2450 = vrcp.pop %v2419
        %v2451 = vrcp.pop %v2421
        %v2452 = vrcp.pop %v2423
        %v2453 = vrcp.pop %v2425
        %v2454 = vrcp.pop %v2427
        %v2455 = vrcp.pop %v2429
        %v2456 = vrcp.pop %v2431
        %v2457 = vrcp.pop %v2433
        %v2458 = vrcp.pop %v2435
        %v2459 = vrcp.pop %v2437
        %v2460 = vrcp.pop %v2439
        %v2461 = vrcp.pop %v2441
        %v2462 = vrcp.pop %v2443
        %v2463 = vrcp.pop %v2445
        %v2464 = vrcp.pop %v2447
        %v2465 = vrcp.pop %v2449
        %v2466 = vmul.f32 %v2387, %v2450
        %v2467 = vmul.f32 %v2389, %v2451
        %v2468 = vmul.f32 %v2391, %v2452
        %v2469 = vmul.f32 %v2393, %v2453
        %v2470 = vmul.f32 %v2395, %v2454
        %v2471 = vmul.f32 %v2397, %v2455
        %v2472 = vmul.f32 %v2399, %v2456
        %v2473 = vmul.f32 %v2401, %v2457
        %v2474 = vmul.f32 %v2403, %v2458
        %v2475 = vmul.f32 %v2405, %v2459
        %v2476 = vmul.f32 %v2407, %v2460
        %v2477 = vmul.f32 %v2409, %v2461
        %v2478 = vmul.f32 %v2411, %v2462
        %v2479 = vmul.f32 %v2413, %v2463
        %v2480 = vmul.f32 %v2415, %v2464
        %v2481 = vmul.f32 %v2417, %v2465
        %v2482 = vpack.c.bf16 %v2467, %v2466
        %v2483 = vpack.c.bf16 %v2469, %v2468
        %v2484 = vpack.c.bf16 %v2471, %v2470
        %v2485 = vpack.c.bf16 %v2473, %v2472
        %v2486 = vpack.c.bf16 %v2475, %v2474
        %v2487 = vpack.c.bf16 %v2477, %v2476
        %v2488 = vpack.c.bf16 %v2479, %v2478
        %v2489 = vpack.c.bf16 %v2481, %v2480
        %2490 = vmatprep.subr.bf16.mxu0 0
        %2491 = vmatpush1.bf16.xpose.msra.mxu0 %v1142
        %2492 = vmatprep.subr.bf16.mxu0 0
        %2493 = vmatpush1.bf16.xpose.msra.mxu0 %v1143
        %2494 = vmatprep.subr.bf16.mxu0 0
        %2495 = vmatpush1.bf16.xpose.msra.mxu0 0
        %2496 = vmatprep.subr.bf16.mxu0 0
        %2497 = vmatpush1.bf16.xpose.msra.mxu0 0
        %2498 = vmatprep.subr.bf16.mxu0 0
        %2499 = vmatpush1.bf16.xpose.msra.mxu0 0
        %2500 = vmatprep.subr.bf16.mxu0 0
        %2501 = vmatpush1.bf16.xpose.msra.mxu0 0
        %2502 = vmatprep.subr.bf16.mxu0 0
        %2503 = vmatpush1.bf16.xpose.msra.mxu0 0
        %2504 = vmatprep.subr.bf16.mxu0 0
        %2505 = vmatpush1.bf16.xpose.msra.mxu0 0
        %2506 = vmatprep.subr.bf16.mxu0 0
        %2507 = vmatpush1.bf16.xpose.msra.mxu0 0
        %2508 = vmatprep.subr.bf16.mxu0 0
        %2509 = vmatpush1.bf16.xpose.msra.mxu0 0
        %2510 = vmatprep.subr.bf16.mxu0 0
        %2511 = vmatpush1.bf16.xpose.msra.mxu0 0
        %2512 = vmatprep.subr.bf16.mxu0 0
        %2513 = vmatpush1.bf16.xpose.msra.mxu0 0
        %2514 = vmatprep.subr.bf16.mxu0 0
        %2515 = vmatpush1.bf16.xpose.msra.mxu0 0
        %2516 = vmatprep.subr.bf16.mxu0 0
        %2517 = vmatpush1.bf16.xpose.msra.mxu0 0
        %2518 = vmatprep.subr.bf16.mxu0 0
        %2519 = vmatpush1.bf16.xpose.msra.mxu0 0
        %2520 = vmatprep.subr.bf16.mxu0 0
        %2521 = vmatpush1.bf16.xpose.msra.mxu0 0
        %2522 = vmatprep.mubr.bf16.mxu0 0
        %2523 = vmatmul.mubr.bf16.gmra.mrb[0].mxu0 %v2482
        %v2524 = vpop.f32.mrb[0].mxu0
        %v2525 = vadd.f32 0.0, %v2524
        %v2526 = vpop.f32.mrb[0].mxu0
        %v2527 = vpop.f32.mrb[0].mxu0
        %v2528 = vadd.f32 0.0, %v2527
        %v2529 = vpop.f32.mrb[0].mxu0
        %2530 = vmatprep.mubr.bf16.mxu0 0
        %2531 = vmatmul.mubr.bf16.gmra.mrb[0].mxu0 %v2483
        %v2532 = vpop.f32.mrb[0].mxu0
        %v2533 = vadd.f32 0.0, %v2532
        %v2534 = vpop.f32.mrb[0].mxu0
        %v2535 = vpop.f32.mrb[0].mxu0
        %v2536 = vadd.f32 0.0, %v2535
        %v2537 = vpop.f32.mrb[0].mxu0
        %2538 = vmatprep.mubr.bf16.mxu0 0
        %2539 = vmatmul.mubr.bf16.gmra.mrb[0].mxu0 %v2484
        %v2540 = vpop.f32.mrb[0].mxu0
        %v2541 = vadd.f32 0.0, %v2540
        %v2542 = vpop.f32.mrb[0].mxu0
        %v2543 = vpop.f32.mrb[0].mxu0
        %v2544 = vadd.f32 0.0, %v2543
        %v2545 = vpop.f32.mrb[0].mxu0
        %2546 = vmatprep.mubr.bf16.mxu0 0
        %2547 = vmatmul.mubr.bf16.gmra.mrb[0].mxu0 %v2485
        %v2548 = vpop.f32.mrb[0].mxu0
        %v2549 = vadd.f32 0.0, %v2548
        %v2550 = vpop.f32.mrb[0].mxu0
        %v2551 = vpop.f32.mrb[0].mxu0
        %v2552 = vadd.f32 0.0, %v2551
        %v2553 = vpop.f32.mrb[0].mxu0
        %2554 = vmatprep.mubr.bf16.mxu0 0
        %2555 = vmatmul.mubr.bf16.gmra.mrb[0].mxu0 %v2486
        %v2556 = vpop.f32.mrb[0].mxu0
        %v2557 = vadd.f32 0.0, %v2556
        %v2558 = vpop.f32.mrb[0].mxu0
        %v2559 = vpop.f32.mrb[0].mxu0
        %v2560 = vadd.f32 0.0, %v2559
        %v2561 = vpop.f32.mrb[0].mxu0
        %2562 = vmatprep.mubr.bf16.mxu0 0
        %2563 = vmatmul.mubr.bf16.gmra.mrb[0].mxu0 %v2487
        %v2564 = vpop.f32.mrb[0].mxu0
        %v2565 = vadd.f32 0.0, %v2564
        %v2566 = vpop.f32.mrb[0].mxu0
        %v2567 = vpop.f32.mrb[0].mxu0
        %v2568 = vadd.f32 0.0, %v2567
        %v2569 = vpop.f32.mrb[0].mxu0
        %2570 = vmatprep.mubr.bf16.mxu0 0
        %2571 = vmatmul.mubr.bf16.gmra.mrb[0].mxu0 %v2488
        %v2572 = vpop.f32.mrb[0].mxu0
        %v2573 = vadd.f32 0.0, %v2572
        %v2574 = vpop.f32.mrb[0].mxu0
        %v2575 = vpop.f32.mrb[0].mxu0
        %v2576 = vadd.f32 0.0, %v2575
        %v2577 = vpop.f32.mrb[0].mxu0
        %2578 = vmatprep.mubr.bf16.mxu0 0
        %2579 = vmatmul.mubr.bf16.gmra.mrb[0].mxu0 %v2489
        %v2580 = vpop.f32.mrb[0].mxu0
        %v2581 = vadd.f32 0.0, %v2580
        %v2582 = vpop.f32.mrb[0].mxu0
        %v2583 = vpop.f32.mrb[0].mxu0
        %v2584 = vadd.f32 0.0, %v2583
        %v2585 = vpop.f32.mrb[0].mxu0
        %2586 = vdwg.mxu0
        %v2587 = vpack.c.bf16 %v2528, %v2525
        %v2588 = vpack.c.bf16 %v2536, %v2533
        %v2589 = vpack.c.bf16 %v2544, %v2541
        %v2590 = vpack.c.bf16 %v2552, %v2549
        %v2591 = vpack.c.bf16 %v2560, %v2557
        %v2592 = vpack.c.bf16 %v2568, %v2565
        %v2593 = vpack.c.bf16 %v2576, %v2573
        %v2594 = vpack.c.bf16 %v2584, %v2581
        %v2595 = vld [vmem:[%s514 + $0x20] sm:$0xf]
        %v2596 = vld [vmem:[%s514 + $0x24] sm:$0xf]
        %v2597 = vld [vmem:[%s514 + $0x28] sm:$0xf]
        %v2598 = vld [vmem:[%s514 + $0x2c] sm:$0xf]
        %v2603 = vunpack.c.l.b16 %v2595
        %v2604 = vunpack.c.l.b16 %v2596
        %v2605 = vunpack.c.l.b16 %v2597
        %v2606 = vunpack.c.l.b16 %v2598
        %v2607 = vpack.c.b16 %v2604, %v2603
        %v2608 = vpack.c.b16 %v2606, %v2605
        %v2612 = vsel %vm1146, %v2587, 0
        %v2615 = vsel %vm1146, %v2588, 0
        %v2618 = vsel %vm1146, %v2589, 0
        %v2621 = vsel %vm1146, %v2590, 0
        %v2624 = vsel %vm1146, %v2591, 0
        %v2627 = vsel %vm1146, %v2592, 0
        %v2630 = vsel %vm1146, %v2593, 0
        %v2633 = vsel %vm1146, %v2594, 0
        %2635 = vmatprep.subr.bf16.mxu0 0
        %2636 = vmatpush1.bf16.msra.mxu0 %v2607
        %2637 = vmatprep.subr.bf16.mxu0 0
        %2638 = vmatpush1.bf16.msra.mxu0 %v2608
        %2639 = vmatprep.subr.bf16.mxu0 0
        %2640 = vmatpush1.bf16.msra.mxu0 0
        %2641 = vmatprep.subr.bf16.mxu0 0
        %2642 = vmatpush1.bf16.msra.mxu0 0
        %2643 = vmatprep.subr.bf16.mxu0 0
        %2644 = vmatpush1.bf16.msra.mxu0 0
        %2645 = vmatprep.subr.bf16.mxu0 0
        %2646 = vmatpush1.bf16.msra.mxu0 0
        %2647 = vmatprep.subr.bf16.mxu0 0
        %2648 = vmatpush1.bf16.msra.mxu0 0
        %2649 = vmatprep.subr.bf16.mxu0 0
        %2650 = vmatpush1.bf16.msra.mxu0 0
        %2651 = vmatprep.subr.bf16.mxu0 0
        %2652 = vmatpush1.bf16.msra.mxu0 0
        %2653 = vmatprep.subr.bf16.mxu0 0
        %2654 = vmatpush1.bf16.msra.mxu0 0
        %2655 = vmatprep.subr.bf16.mxu0 0
        %2656 = vmatpush1.bf16.msra.mxu0 0
        %2657 = vmatprep.subr.bf16.mxu0 0
        %2658 = vmatpush1.bf16.msra.mxu0 0
        %2659 = vmatprep.subr.bf16.mxu0 0
        %2660 = vmatpush1.bf16.msra.mxu0 0
        %2661 = vmatprep.subr.bf16.mxu0 0
        %2662 = vmatpush1.bf16.msra.mxu0 0
        %2663 = vmatprep.subr.bf16.mxu0 0
        %2664 = vmatpush1.bf16.msra.mxu0 0
        %2665 = vmatprep.subr.bf16.mxu0 0
        %2666 = vmatpush1.bf16.msra.mxu0 0
        %2667 = vmatprep.mubr.bf16.mxu0 0
        %2668 = vmatmul.mubr.bf16.gmra.mrb[0].mxu0 %v2612
        %v2669 = vpop.f32.mrb[0].mxu0
        %v2670 = vadd.f32 0.0, %v2669
        %v2671 = vpop.f32.mrb[0].mxu0
        %v2672 = vpop.f32.mrb[0].mxu0
        %v2673 = vadd.f32 0.0, %v2672
        %v2674 = vpop.f32.mrb[0].mxu0
        %2675 = vmatprep.mubr.bf16.mxu0 0
        %2676 = vmatmul.mubr.bf16.gmra.mrb[0].mxu0 %v2615
        %v2677 = vpop.f32.mrb[0].mxu0
        %v2678 = vadd.f32 0.0, %v2677
        %v2679 = vpop.f32.mrb[0].mxu0
        %v2680 = vpop.f32.mrb[0].mxu0
        %v2681 = vadd.f32 0.0, %v2680
        %v2682 = vpop.f32.mrb[0].mxu0
        %2683 = vmatprep.mubr.bf16.mxu0 0
        %2684 = vmatmul.mubr.bf16.gmra.mrb[0].mxu0 %v2618
        %v2685 = vpop.f32.mrb[0].mxu0
        %v2686 = vadd.f32 0.0, %v2685
        %v2687 = vpop.f32.mrb[0].mxu0
        %v2688 = vpop.f32.mrb[0].mxu0
        %v2689 = vadd.f32 0.0, %v2688
        %v2690 = vpop.f32.mrb[0].mxu0
        %2691 = vmatprep.mubr.bf16.mxu0 0
        %2692 = vmatmul.mubr.bf16.gmra.mrb[0].mxu0 %v2621
        %v2693 = vpop.f32.mrb[0].mxu0
        %v2694 = vadd.f32 0.0, %v2693
        %v2695 = vpop.f32.mrb[0].mxu0
        %v2696 = vpop.f32.mrb[0].mxu0
        %v2697 = vadd.f32 0.0, %v2696
        %v2698 = vpop.f32.mrb[0].mxu0
        %2699 = vmatprep.mubr.bf16.mxu0 0
        %2700 = vmatmul.mubr.bf16.gmra.mrb[0].mxu0 %v2624
        %v2701 = vpop.f32.mrb[0].mxu0
        %v2702 = vadd.f32 0.0, %v2701
        %v2703 = vpop.f32.mrb[0].mxu0
        %v2704 = vpop.f32.mrb[0].mxu0
        %v2705 = vadd.f32 0.0, %v2704
        %v2706 = vpop.f32.mrb[0].mxu0
        %2707 = vmatprep.mubr.bf16.mxu0 0
        %2708 = vmatmul.mubr.bf16.gmra.mrb[0].mxu0 %v2627
        %v2709 = vpop.f32.mrb[0].mxu0
        %v2710 = vadd.f32 0.0, %v2709
        %v2711 = vpop.f32.mrb[0].mxu0
        %v2712 = vpop.f32.mrb[0].mxu0
        %v2713 = vadd.f32 0.0, %v2712
        %v2714 = vpop.f32.mrb[0].mxu0
        %2715 = vmatprep.mubr.bf16.mxu0 0
        %2716 = vmatmul.mubr.bf16.gmra.mrb[0].mxu0 %v2630
        %v2717 = vpop.f32.mrb[0].mxu0
        %v2718 = vadd.f32 0.0, %v2717
        %v2719 = vpop.f32.mrb[0].mxu0
        %v2720 = vpop.f32.mrb[0].mxu0
        %v2721 = vadd.f32 0.0, %v2720
        %v2722 = vpop.f32.mrb[0].mxu0
        %2723 = vmatprep.mubr.bf16.mxu0 0
        %2724 = vmatmul.mubr.bf16.gmra.mrb[0].mxu0 %v2633
        %v2725 = vpop.f32.mrb[0].mxu0
        %v2726 = vadd.f32 0.0, %v2725
        %v2727 = vpop.f32.mrb[0].mxu0
        %v2728 = vpop.f32.mrb[0].mxu0
        %v2729 = vadd.f32 0.0, %v2728
        %v2730 = vpop.f32.mrb[0].mxu0
        %2731 = vdwg.mxu0
        %v2732 = vadd.f32 %v2139, %v2670
        %v2733 = vadd.f32 %v2142, %v2673
        %v2734 = vadd.f32 %v2147, %v2678
        %v2735 = vadd.f32 %v2150, %v2681
        %v2736 = vadd.f32 %v2155, %v2686
        %v2737 = vadd.f32 %v2158, %v2689
        %v2738 = vadd.f32 %v2163, %v2694
        %v2739 = vadd.f32 %v2166, %v2697
        %v2740 = vadd.f32 %v2171, %v2702
        %v2741 = vadd.f32 %v2174, %v2705
        %v2742 = vadd.f32 %v2179, %v2710
        %v2743 = vadd.f32 %v2182, %v2713
        %v2744 = vadd.f32 %v2187, %v2718
        %v2745 = vadd.f32 %v2190, %v2721
        %v2746 = vadd.f32 %v2195, %v2726
        %v2747 = vadd.f32 %v2198, %v2729
        %2748 = vrot.lane.b32.xlu0 %v1058, 32
        %v2749 = vpop.permute.xlu0 %2748
        %2750 = vrot.lane.b32.xlu0 %v1059, 32
        %v2751 = vpop.permute.xlu0 %2750
        %2752 = vrot.lane.b32.xlu0 %v1060, 32
        %v2753 = vpop.permute.xlu0 %2752
        %2754 = vrot.lane.b32.xlu0 %v1061, 32
        %v2755 = vpop.permute.xlu0 %2754
        %2756 = vrot.lane.b32.xlu0 %v1062, 32
        %v2757 = vpop.permute.xlu0 %2756
        %2758 = vrot.lane.b32.xlu0 %v1063, 32
        %v2759 = vpop.permute.xlu0 %2758
        %2760 = vrot.lane.b32.xlu0 %v1064, 32
        %v2761 = vpop.permute.xlu0 %2760
        %2762 = vrot.lane.b32.xlu0 %v1065, 32
        %v2763 = vpop.permute.xlu0 %2762
        %v2765 = vsel %vm1146, %v2749, 0
        %v2768 = vsel %vm1146, %v2751, 0
        %v2771 = vsel %vm1146, %v2753, 0
        %v2774 = vsel %vm1146, %v2755, 0
        %v2777 = vsel %vm1146, %v2757, 0
        %v2780 = vsel %vm1146, %v2759, 0
        %v2783 = vsel %vm1146, %v2761, 0
        %v2786 = vsel %vm1146, %v2763, 0
        %2788 = vmatprep.subr.bf16.mxu0 0
        %2789 = vmatpush1.bf16.msra.mxu0 %v1136
        %2790 = vmatprep.subr.bf16.mxu0 0
        %2791 = vmatpush1.bf16.msra.mxu0 %v1137
        %2792 = vmatprep.subr.bf16.mxu0 0
        %2793 = vmatpush1.bf16.msra.mxu0 0
        %2794 = vmatprep.subr.bf16.mxu0 0
        %2795 = vmatpush1.bf16.msra.mxu0 0
        %2796 = vmatprep.subr.bf16.mxu0 0
        %2797 = vmatpush1.bf16.msra.mxu0 0
        %2798 = vmatprep.subr.bf16.mxu0 0
        %2799 = vmatpush1.bf16.msra.mxu0 0
        %2800 = vmatprep.subr.bf16.mxu0 0
        %2801 = vmatpush1.bf16.msra.mxu0 0
        %2802 = vmatprep.subr.bf16.mxu0 0
        %2803 = vmatpush1.bf16.msra.mxu0 0
        %2804 = vmatprep.subr.bf16.mxu0 0
        %2805 = vmatpush1.bf16.msra.mxu0 0
        %2806 = vmatprep.subr.bf16.mxu0 0
        %2807 = vmatpush1.bf16.msra.mxu0 0
        %2808 = vmatprep.subr.bf16.mxu0 0
        %2809 = vmatpush1.bf16.msra.mxu0 0
        %2810 = vmatprep.subr.bf16.mxu0 0
        %2811 = vmatpush1.bf16.msra.mxu0 0
        %2812 = vmatprep.subr.bf16.mxu0 0
        %2813 = vmatpush1.bf16.msra.mxu0 0
        %2814 = vmatprep.subr.bf16.mxu0 0
        %2815 = vmatpush1.bf16.msra.mxu0 0
        %2816 = vmatprep.subr.bf16.mxu0 0
        %2817 = vmatpush1.bf16.msra.mxu0 0
        %2818 = vmatprep.subr.bf16.mxu0 0
        %2819 = vmatpush1.bf16.msra.mxu0 0
        %2820 = vmatprep.mubr.bf16.mxu0 0
        %2821 = vmatmul.mubr.bf16.gmra.mrb[0].mxu0 %v2765
        %v2822 = vpop.f32.mrb[0].mxu0
        %v2823 = vadd.f32 0.0, %v2822
        %v2824 = vpop.f32.mrb[0].mxu0
        %v2825 = vpop.f32.mrb[0].mxu0
        %v2826 = vadd.f32 0.0, %v2825
        %v2827 = vpop.f32.mrb[0].mxu0
        %2828 = vmatprep.mubr.bf16.mxu0 0
        %2829 = vmatmul.mubr.bf16.gmra.mrb[0].mxu0 %v2768
        %v2830 = vpop.f32.mrb[0].mxu0
        %v2831 = vadd.f32 0.0, %v2830
        %v2832 = vpop.f32.mrb[0].mxu0
        %v2833 = vpop.f32.mrb[0].mxu0
        %v2834 = vadd.f32 0.0, %v2833
        %v2835 = vpop.f32.mrb[0].mxu0
        %2836 = vmatprep.mubr.bf16.mxu0 0
        %2837 = vmatmul.mubr.bf16.gmra.mrb[0].mxu0 %v2771
        %v2838 = vpop.f32.mrb[0].mxu0
        %v2839 = vadd.f32 0.0, %v2838
        %v2840 = vpop.f32.mrb[0].mxu0
        %v2841 = vpop.f32.mrb[0].mxu0
        %v2842 = vadd.f32 0.0, %v2841
        %v2843 = vpop.f32.mrb[0].mxu0
        %2844 = vmatprep.mubr.bf16.mxu0 0
        %2845 = vmatmul.mubr.bf16.gmra.mrb[0].mxu0 %v2774
        %v2846 = vpop.f32.mrb[0].mxu0
        %v2847 = vadd.f32 0.0, %v2846
        %v2848 = vpop.f32.mrb[0].mxu0
        %v2849 = vpop.f32.mrb[0].mxu0
        %v2850 = vadd.f32 0.0, %v2849
        %v2851 = vpop.f32.mrb[0].mxu0
        %2852 = vmatprep.mubr.bf16.mxu0 0
        %2853 = vmatmul.mubr.bf16.gmra.mrb[0].mxu0 %v2777
        %v2854 = vpop.f32.mrb[0].mxu0
        %v2855 = vadd.f32 0.0, %v2854
        %v2856 = vpop.f32.mrb[0].mxu0
        %v2857 = vpop.f32.mrb[0].mxu0
        %v2858 = vadd.f32 0.0, %v2857
        %v2859 = vpop.f32.mrb[0].mxu0
        %2860 = vmatprep.mubr.bf16.mxu0 0
        %2861 = vmatmul.mubr.bf16.gmra.mrb[0].mxu0 %v2780
        %v2862 = vpop.f32.mrb[0].mxu0
        %v2863 = vadd.f32 0.0, %v2862
        %v2864 = vpop.f32.mrb[0].mxu0
        %v2865 = vpop.f32.mrb[0].mxu0
        %v2866 = vadd.f32 0.0, %v2865
        %v2867 = vpop.f32.mrb[0].mxu0
        %2868 = vmatprep.mubr.bf16.mxu0 0
        %2869 = vmatmul.mubr.bf16.gmra.mrb[0].mxu0 %v2783
        %v2870 = vpop.f32.mrb[0].mxu0
        %v2871 = vadd.f32 0.0, %v2870
        %v2872 = vpop.f32.mrb[0].mxu0
        %v2873 = vpop.f32.mrb[0].mxu0
        %v2874 = vadd.f32 0.0, %v2873
        %v2875 = vpop.f32.mrb[0].mxu0
        %2876 = vmatprep.mubr.bf16.mxu0 0
        %2877 = vmatmul.mubr.bf16.gmra.mrb[0].mxu0 %v2786
        %v2878 = vpop.f32.mrb[0].mxu0
        %v2879 = vadd.f32 0.0, %v2878
        %v2880 = vpop.f32.mrb[0].mxu0
        %v2881 = vpop.f32.mrb[0].mxu0
        %v2882 = vadd.f32 0.0, %v2881
        %v2883 = vpop.f32.mrb[0].mxu0
        %2884 = vdwg.mxu0
        %2885 = vmax.xlane.f32.xlu0 %v2823
        %v2886 = vpop.xlane.xlu0 %2885
        %2887 = vmax.xlane.f32.xlu0 %v2826
        %v2888 = vpop.xlane.xlu0 %2887
        %2889 = vmax.xlane.f32.xlu0 %v2831
        %v2890 = vpop.xlane.xlu0 %2889
        %2891 = vmax.xlane.f32.xlu0 %v2834
        %v2892 = vpop.xlane.xlu0 %2891
        %2893 = vmax.xlane.f32.xlu0 %v2839
        %v2894 = vpop.xlane.xlu0 %2893
        %2895 = vmax.xlane.f32.xlu0 %v2842
        %v2896 = vpop.xlane.xlu0 %2895
        %2897 = vmax.xlane.f32.xlu0 %v2847
        %v2898 = vpop.xlane.xlu0 %2897
        %2899 = vmax.xlane.f32.xlu0 %v2850
        %v2900 = vpop.xlane.xlu0 %2899
        %2901 = vmax.xlane.f32.xlu0 %v2855
        %v2902 = vpop.xlane.xlu0 %2901
        %2903 = vmax.xlane.f32.xlu0 %v2858
        %v2904 = vpop.xlane.xlu0 %2903
        %2905 = vmax.xlane.f32.xlu0 %v2863
        %v2906 = vpop.xlane.xlu0 %2905
        %2907 = vmax.xlane.f32.xlu0 %v2866
        %v2908 = vpop.xlane.xlu0 %2907
        %2909 = vmax.xlane.f32.xlu0 %v2871
        %v2910 = vpop.xlane.xlu0 %2909
        %2911 = vmax.xlane.f32.xlu0 %v2874
        %v2912 = vpop.xlane.xlu0 %2911
        %2913 = vmax.xlane.f32.xlu0 %v2879
        %v2914 = vpop.xlane.xlu0 %2913
        %2915 = vmax.xlane.f32.xlu0 %v2882
        %v2916 = vpop.xlane.xlu0 %2915
        %v2917 = vsub.f32 %v2823, %v2886
        %v2918 = vsub.f32 %v2826, %v2888
        %v2919 = vsub.f32 %v2831, %v2890
        %v2920 = vsub.f32 %v2834, %v2892
        %v2921 = vsub.f32 %v2839, %v2894
        %v2922 = vsub.f32 %v2842, %v2896
        %v2923 = vsub.f32 %v2847, %v2898
        %v2924 = vsub.f32 %v2850, %v2900
        %v2925 = vsub.f32 %v2855, %v2902
        %v2926 = vsub.f32 %v2858, %v2904
        %v2927 = vsub.f32 %v2863, %v2906
        %v2928 = vsub.f32 %v2866, %v2908
        %v2929 = vsub.f32 %v2871, %v2910
        %v2930 = vsub.f32 %v2874, %v2912
        %v2931 = vsub.f32 %v2879, %v2914
        %v2932 = vsub.f32 %v2882, %v2916
        %v2933 = vmul.f32 %v2917, 1.442695
        %v2934 = vpow.pop %v2933
        %v2935 = vmul.f32 %v2918, 1.442695
        %v2936 = vpow.pop %v2935
        %v2937 = vmul.f32 %v2919, 1.442695
        %v2938 = vpow.pop %v2937
        %v2939 = vmul.f32 %v2920, 1.442695
        %v2940 = vpow.pop %v2939
        %v2941 = vmul.f32 %v2921, 1.442695
        %v2942 = vpow.pop %v2941
        %v2943 = vmul.f32 %v2922, 1.442695
        %v2944 = vpow.pop %v2943
        %v2945 = vmul.f32 %v2923, 1.442695
        %v2946 = vpow.pop %v2945
        %v2947 = vmul.f32 %v2924, 1.442695
        %v2948 = vpow.pop %v2947
        %v2949 = vmul.f32 %v2925, 1.442695
        %v2950 = vpow.pop %v2949
        %v2951 = vmul.f32 %v2926, 1.442695
        %v2952 = vpow.pop %v2951
        %v2953 = vmul.f32 %v2927, 1.442695
        %v2954 = vpow.pop %v2953
        %v2955 = vmul.f32 %v2928, 1.442695
        %v2956 = vpow.pop %v2955
        %v2957 = vmul.f32 %v2929, 1.442695
        %v2958 = vpow.pop %v2957
        %v2959 = vmul.f32 %v2930, 1.442695
        %v2960 = vpow.pop %v2959
        %v2961 = vmul.f32 %v2931, 1.442695
        %v2962 = vpow.pop %v2961
        %v2963 = vmul.f32 %v2932, 1.442695
        %v2964 = vpow.pop %v2963
        %2965 = vadd.xlane.f32.xlu0 %v2934
        %v2966 = vpop.xlane.xlu0 %2965
        %2967 = vadd.xlane.f32.xlu0 %v2936
        %v2968 = vpop.xlane.xlu0 %2967
        %2969 = vadd.xlane.f32.xlu0 %v2938
        %v2970 = vpop.xlane.xlu0 %2969
        %2971 = vadd.xlane.f32.xlu0 %v2940
        %v2972 = vpop.xlane.xlu0 %2971
        %2973 = vadd.xlane.f32.xlu0 %v2942
        %v2974 = vpop.xlane.xlu0 %2973
        %2975 = vadd.xlane.f32.xlu0 %v2944
        %v2976 = vpop.xlane.xlu0 %2975
        %2977 = vadd.xlane.f32.xlu0 %v2946
        %v2978 = vpop.xlane.xlu0 %2977
        %2979 = vadd.xlane.f32.xlu0 %v2948
        %v2980 = vpop.xlane.xlu0 %2979
        %2981 = vadd.xlane.f32.xlu0 %v2950
        %v2982 = vpop.xlane.xlu0 %2981
        %2983 = vadd.xlane.f32.xlu0 %v2952
        %v2984 = vpop.xlane.xlu0 %2983
        %2985 = vadd.xlane.f32.xlu0 %v2954
        %v2986 = vpop.xlane.xlu0 %2985
        %2987 = vadd.xlane.f32.xlu0 %v2956
        %v2988 = vpop.xlane.xlu0 %2987
        %2989 = vadd.xlane.f32.xlu0 %v2958
        %v2990 = vpop.xlane.xlu0 %2989
        %2991 = vadd.xlane.f32.xlu0 %v2960
        %v2992 = vpop.xlane.xlu0 %2991
        %2993 = vadd.xlane.f32.xlu0 %v2962
        %v2994 = vpop.xlane.xlu0 %2993
        %2995 = vadd.xlane.f32.xlu0 %v2964
        %v2996 = vpop.xlane.xlu0 %2995
        %v2997 = vrcp.pop %v2966
        %v2998 = vrcp.pop %v2968
        %v2999 = vrcp.pop %v2970
        %v3000 = vrcp.pop %v2972
        %v3001 = vrcp.pop %v2974
        %v3002 = vrcp.pop %v2976
        %v3003 = vrcp.pop %v2978
        %v3004 = vrcp.pop %v2980
        %v3005 = vrcp.pop %v2982
        %v3006 = vrcp.pop %v2984
        %v3007 = vrcp.pop %v2986
        %v3008 = vrcp.pop %v2988
        %v3009 = vrcp.pop %v2990
        %v3010 = vrcp.pop %v2992
        %v3011 = vrcp.pop %v2994
        %v3012 = vrcp.pop %v2996
        %v3013 = vmul.f32 %v2934, %v2997
        %v3014 = vmul.f32 %v2936, %v2998
        %v3015 = vmul.f32 %v2938, %v2999
        %v3016 = vmul.f32 %v2940, %v3000
        %v3017 = vmul.f32 %v2942, %v3001
        %v3018 = vmul.f32 %v2944, %v3002
        %v3019 = vmul.f32 %v2946, %v3003
        %v3020 = vmul.f32 %v2948, %v3004
        %v3021 = vmul.f32 %v2950, %v3005
        %v3022 = vmul.f32 %v2952, %v3006
        %v3023 = vmul.f32 %v2954, %v3007
        %v3024 = vmul.f32 %v2956, %v3008
        %v3025 = vmul.f32 %v2958, %v3009
        %v3026 = vmul.f32 %v2960, %v3010
        %v3027 = vmul.f32 %v2962, %v3011
        %v3028 = vmul.f32 %v2964, %v3012
        %v3029 = vpack.c.bf16 %v3014, %v3013
        %v3030 = vpack.c.bf16 %v3016, %v3015
        %v3031 = vpack.c.bf16 %v3018, %v3017
        %v3032 = vpack.c.bf16 %v3020, %v3019
        %v3033 = vpack.c.bf16 %v3022, %v3021
        %v3034 = vpack.c.bf16 %v3024, %v3023
        %v3035 = vpack.c.bf16 %v3026, %v3025
        %v3036 = vpack.c.bf16 %v3028, %v3027
        %3037 = vmatprep.subr.bf16.mxu0 0
        %3038 = vmatpush1.bf16.xpose.msra.mxu0 %v1144
        %3039 = vmatprep.subr.bf16.mxu0 0
        %3040 = vmatpush1.bf16.xpose.msra.mxu0 %v1145
        %3041 = vmatprep.subr.bf16.mxu0 0
        %3042 = vmatpush1.bf16.xpose.msra.mxu0 0
        %3043 = vmatprep.subr.bf16.mxu0 0
        %3044 = vmatpush1.bf16.xpose.msra.mxu0 0
        %3045 = vmatprep.subr.bf16.mxu0 0
        %3046 = vmatpush1.bf16.xpose.msra.mxu0 0
        %3047 = vmatprep.subr.bf16.mxu0 0
        %3048 = vmatpush1.bf16.xpose.msra.mxu0 0
        %3049 = vmatprep.subr.bf16.mxu0 0
        %3050 = vmatpush1.bf16.xpose.msra.mxu0 0
        %3051 = vmatprep.subr.bf16.mxu0 0
        %3052 = vmatpush1.bf16.xpose.msra.mxu0 0
        %3053 = vmatprep.subr.bf16.mxu0 0
        %3054 = vmatpush1.bf16.xpose.msra.mxu0 0
        %3055 = vmatprep.subr.bf16.mxu0 0
        %3056 = vmatpush1.bf16.xpose.msra.mxu0 0
        %3057 = vmatprep.subr.bf16.mxu0 0
        %3058 = vmatpush1.bf16.xpose.msra.mxu0 0
        %3059 = vmatprep.subr.bf16.mxu0 0
        %3060 = vmatpush1.bf16.xpose.msra.mxu0 0
        %3061 = vmatprep.subr.bf16.mxu0 0
        %3062 = vmatpush1.bf16.xpose.msra.mxu0 0
        %3063 = vmatprep.subr.bf16.mxu0 0
        %3064 = vmatpush1.bf16.xpose.msra.mxu0 0
        %3065 = vmatprep.subr.bf16.mxu0 0
        %3066 = vmatpush1.bf16.xpose.msra.mxu0 0
        %3067 = vmatprep.subr.bf16.mxu0 0
        %3068 = vmatpush1.bf16.xpose.msra.mxu0 0
        %3069 = vmatprep.mubr.bf16.mxu0 0
        %3070 = vmatmul.mubr.bf16.gmra.mrb[0].mxu0 %v3029
        %v3071 = vpop.f32.mrb[0].mxu0
        %v3072 = vadd.f32 0.0, %v3071
        %v3073 = vpop.f32.mrb[0].mxu0
        %v3074 = vpop.f32.mrb[0].mxu0
        %v3075 = vadd.f32 0.0, %v3074
        %v3076 = vpop.f32.mrb[0].mxu0
        %3077 = vmatprep.mubr.bf16.mxu0 0
        %3078 = vmatmul.mubr.bf16.gmra.mrb[0].mxu0 %v3030
        %v3079 = vpop.f32.mrb[0].mxu0
        %v3080 = vadd.f32 0.0, %v3079
        %v3081 = vpop.f32.mrb[0].mxu0
        %v3082 = vpop.f32.mrb[0].mxu0
        %v3083 = vadd.f32 0.0, %v3082
        %v3084 = vpop.f32.mrb[0].mxu0
        %3085 = vmatprep.mubr.bf16.mxu0 0
        %3086 = vmatmul.mubr.bf16.gmra.mrb[0].mxu0 %v3031
        %v3087 = vpop.f32.mrb[0].mxu0
        %v3088 = vadd.f32 0.0, %v3087
        %v3089 = vpop.f32.mrb[0].mxu0
        %v3090 = vpop.f32.mrb[0].mxu0
        %v3091 = vadd.f32 0.0, %v3090
        %v3092 = vpop.f32.mrb[0].mxu0
        %3093 = vmatprep.mubr.bf16.mxu0 0
        %3094 = vmatmul.mubr.bf16.gmra.mrb[0].mxu0 %v3032
        %v3095 = vpop.f32.mrb[0].mxu0
        %v3096 = vadd.f32 0.0, %v3095
        %v3097 = vpop.f32.mrb[0].mxu0
        %v3098 = vpop.f32.mrb[0].mxu0
        %v3099 = vadd.f32 0.0, %v3098
        %v3100 = vpop.f32.mrb[0].mxu0
        %3101 = vmatprep.mubr.bf16.mxu0 0
        %3102 = vmatmul.mubr.bf16.gmra.mrb[0].mxu0 %v3033
        %v3103 = vpop.f32.mrb[0].mxu0
        %v3104 = vadd.f32 0.0, %v3103
        %v3105 = vpop.f32.mrb[0].mxu0
        %v3106 = vpop.f32.mrb[0].mxu0
        %v3107 = vadd.f32 0.0, %v3106
        %v3108 = vpop.f32.mrb[0].mxu0
        %3109 = vmatprep.mubr.bf16.mxu0 0
        %3110 = vmatmul.mubr.bf16.gmra.mrb[0].mxu0 %v3034
        %v3111 = vpop.f32.mrb[0].mxu0
        %v3112 = vadd.f32 0.0, %v3111
        %v3113 = vpop.f32.mrb[0].mxu0
        %v3114 = vpop.f32.mrb[0].mxu0
        %v3115 = vadd.f32 0.0, %v3114
        %v3116 = vpop.f32.mrb[0].mxu0
        %3117 = vmatprep.mubr.bf16.mxu0 0
        %3118 = vmatmul.mubr.bf16.gmra.mrb[0].mxu0 %v3035
        %v3119 = vpop.f32.mrb[0].mxu0
        %v3120 = vadd.f32 0.0, %v3119
        %v3121 = vpop.f32.mrb[0].mxu0
        %v3122 = vpop.f32.mrb[0].mxu0
        %v3123 = vadd.f32 0.0, %v3122
        %v3124 = vpop.f32.mrb[0].mxu0
        %3125 = vmatprep.mubr.bf16.mxu0 0
        %3126 = vmatmul.mubr.bf16.gmra.mrb[0].mxu0 %v3036
        %v3127 = vpop.f32.mrb[0].mxu0
        %v3128 = vadd.f32 0.0, %v3127
        %v3129 = vpop.f32.mrb[0].mxu0
        %v3130 = vpop.f32.mrb[0].mxu0
        %v3131 = vadd.f32 0.0, %v3130
        %v3132 = vpop.f32.mrb[0].mxu0
        %3133 = vdwg.mxu0
        %v3134 = vpack.c.bf16 %v3075, %v3072
        %v3135 = vpack.c.bf16 %v3083, %v3080
        %v3136 = vpack.c.bf16 %v3091, %v3088
        %v3137 = vpack.c.bf16 %v3099, %v3096
        %v3138 = vpack.c.bf16 %v3107, %v3104
        %v3139 = vpack.c.bf16 %v3115, %v3112
        %v3140 = vpack.c.bf16 %v3123, %v3120
        %v3141 = vpack.c.bf16 %v3131, %v3128
        %v3142 = vld [vmem:[%s514 + $0x30] sm:$0xf]
        %v3143 = vld [vmem:[%s514 + $0x34] sm:$0xf]
        %v3144 = vld [vmem:[%s514 + $0x38] sm:$0xf]
        %v3145 = vld [vmem:[%s514 + $0x3c] sm:$0xf]
        %v3150 = vunpack.c.l.b16 %v3142
        %v3151 = vunpack.c.l.b16 %v3143
        %v3152 = vunpack.c.l.b16 %v3144
        %v3153 = vunpack.c.l.b16 %v3145
        %v3154 = vpack.c.b16 %v3151, %v3150
        %v3155 = vpack.c.b16 %v3153, %v3152
        %v3159 = vsel %vm1146, %v3134, 0
        %v3162 = vsel %vm1146, %v3135, 0
        %v3165 = vsel %vm1146, %v3136, 0
        %v3168 = vsel %vm1146, %v3137, 0
        %v3171 = vsel %vm1146, %v3138, 0
        %v3174 = vsel %vm1146, %v3139, 0
        %v3177 = vsel %vm1146, %v3140, 0
        %v3180 = vsel %vm1146, %v3141, 0
        %3182 = vmatprep.subr.bf16.mxu0 0
        %3183 = vmatpush1.bf16.msra.mxu0 %v3154
        %3184 = vmatprep.subr.bf16.mxu0 0
        %3185 = vmatpush1.bf16.msra.mxu0 %v3155
        %3186 = vmatprep.subr.bf16.mxu0 0
        %3187 = vmatpush1.bf16.msra.mxu0 0
        %3188 = vmatprep.subr.bf16.mxu0 0
        %3189 = vmatpush1.bf16.msra.mxu0 0
        %3190 = vmatprep.subr.bf16.mxu0 0
        %3191 = vmatpush1.bf16.msra.mxu0 0
        %3192 = vmatprep.subr.bf16.mxu0 0
        %3193 = vmatpush1.bf16.msra.mxu0 0
        %3194 = vmatprep.subr.bf16.mxu0 0
        %3195 = vmatpush1.bf16.msra.mxu0 0
        %3196 = vmatprep.subr.bf16.mxu0 0
        %3197 = vmatpush1.bf16.msra.mxu0 0
        %3198 = vmatprep.subr.bf16.mxu0 0
        %3199 = vmatpush1.bf16.msra.mxu0 0
        %3200 = vmatprep.subr.bf16.mxu0 0
        %3201 = vmatpush1.bf16.msra.mxu0 0
        %3202 = vmatprep.subr.bf16.mxu0 0
        %3203 = vmatpush1.bf16.msra.mxu0 0
        %3204 = vmatprep.subr.bf16.mxu0 0
        %3205 = vmatpush1.bf16.msra.mxu0 0
        %3206 = vmatprep.subr.bf16.mxu0 0
        %3207 = vmatpush1.bf16.msra.mxu0 0
        %3208 = vmatprep.subr.bf16.mxu0 0
        %3209 = vmatpush1.bf16.msra.mxu0 0
        %3210 = vmatprep.subr.bf16.mxu0 0
        %3211 = vmatpush1.bf16.msra.mxu0 0
        %3212 = vmatprep.subr.bf16.mxu0 0
        %3213 = vmatpush1.bf16.msra.mxu0 0
        %3214 = vmatprep.mubr.bf16.mxu0 0
        %3215 = vmatmul.mubr.bf16.gmra.mrb[0].mxu0 %v3159
        %v3216 = vpop.f32.mrb[0].mxu0
        %v3217 = vadd.f32 0.0, %v3216
        %v3218 = vpop.f32.mrb[0].mxu0
        %v3219 = vpop.f32.mrb[0].mxu0
        %v3220 = vadd.f32 0.0, %v3219
        %v3221 = vpop.f32.mrb[0].mxu0
        %3222 = vmatprep.mubr.bf16.mxu0 0
        %3223 = vmatmul.mubr.bf16.gmra.mrb[0].mxu0 %v3162
        %v3224 = vpop.f32.mrb[0].mxu0
        %v3225 = vadd.f32 0.0, %v3224
        %v3226 = vpop.f32.mrb[0].mxu0
        %v3227 = vpop.f32.mrb[0].mxu0
        %v3228 = vadd.f32 0.0, %v3227
        %v3229 = vpop.f32.mrb[0].mxu0
        %3230 = vmatprep.mubr.bf16.mxu0 0
        %3231 = vmatmul.mubr.bf16.gmra.mrb[0].mxu0 %v3165
        %v3232 = vpop.f32.mrb[0].mxu0
        %v3233 = vadd.f32 0.0, %v3232
        %v3234 = vpop.f32.mrb[0].mxu0
        %v3235 = vpop.f32.mrb[0].mxu0
        %v3236 = vadd.f32 0.0, %v3235
        %v3237 = vpop.f32.mrb[0].mxu0
        %3238 = vmatprep.mubr.bf16.mxu0 0
        %3239 = vmatmul.mubr.bf16.gmra.mrb[0].mxu0 %v3168
        %v3240 = vpop.f32.mrb[0].mxu0
        %v3241 = vadd.f32 0.0, %v3240
        %v3242 = vpop.f32.mrb[0].mxu0
        %v3243 = vpop.f32.mrb[0].mxu0
        %v3244 = vadd.f32 0.0, %v3243
        %v3245 = vpop.f32.mrb[0].mxu0
        %3246 = vmatprep.mubr.bf16.mxu0 0
        %3247 = vmatmul.mubr.bf16.gmra.mrb[0].mxu0 %v3171
        %v3248 = vpop.f32.mrb[0].mxu0
        %v3249 = vadd.f32 0.0, %v3248
        %v3250 = vpop.f32.mrb[0].mxu0
        %v3251 = vpop.f32.mrb[0].mxu0
        %v3252 = vadd.f32 0.0, %v3251
        %v3253 = vpop.f32.mrb[0].mxu0
        %3254 = vmatprep.mubr.bf16.mxu0 0
        %3255 = vmatmul.mubr.bf16.gmra.mrb[0].mxu0 %v3174
        %v3256 = vpop.f32.mrb[0].mxu0
        %v3257 = vadd.f32 0.0, %v3256
        %v3258 = vpop.f32.mrb[0].mxu0
        %v3259 = vpop.f32.mrb[0].mxu0
        %v3260 = vadd.f32 0.0, %v3259
        %v3261 = vpop.f32.mrb[0].mxu0
        %3262 = vmatprep.mubr.bf16.mxu0 0
        %3263 = vmatmul.mubr.bf16.gmra.mrb[0].mxu0 %v3177
        %v3264 = vpop.f32.mrb[0].mxu0
        %v3265 = vadd.f32 0.0, %v3264
        %v3266 = vpop.f32.mrb[0].mxu0
        %v3267 = vpop.f32.mrb[0].mxu0
        %v3268 = vadd.f32 0.0, %v3267
        %v3269 = vpop.f32.mrb[0].mxu0
        %3270 = vmatprep.mubr.bf16.mxu0 0
        %3271 = vmatmul.mubr.bf16.gmra.mrb[0].mxu0 %v3180
        %v3272 = vpop.f32.mrb[0].mxu0
        %v3273 = vadd.f32 0.0, %v3272
        %v3274 = vpop.f32.mrb[0].mxu0
        %v3275 = vpop.f32.mrb[0].mxu0
        %v3276 = vadd.f32 0.0, %v3275
        %v3277 = vpop.f32.mrb[0].mxu0
        %3278 = vdwg.mxu0
        %v3279 = vadd.f32 %v2732, %v3217
        %v3280 = vadd.f32 %v2733, %v3220
        %v3281 = vadd.f32 %v2734, %v3225
        %v3282 = vadd.f32 %v2735, %v3228
        %v3283 = vadd.f32 %v2736, %v3233
        %v3284 = vadd.f32 %v2737, %v3236
        %v3285 = vadd.f32 %v2738, %v3241
        %v3286 = vadd.f32 %v2739, %v3244
        %v3287 = vadd.f32 %v2740, %v3249
        %v3288 = vadd.f32 %v2741, %v3252
        %v3289 = vadd.f32 %v2742, %v3257
        %v3290 = vadd.f32 %v2743, %v3260
        %v3291 = vadd.f32 %v2744, %v3265
        %v3292 = vadd.f32 %v2745, %v3268
        %v3293 = vadd.f32 %v2746, %v3273
        %v3294 = vadd.f32 %v2747, %v3276
        %v3295 = vadd.f32 %v648, %v3279
        %v3296 = vadd.f32 %v649, %v3280
        %v3297 = vadd.f32 %v650, %v3281
        %v3298 = vadd.f32 %v651, %v3282
        %v3299 = vadd.f32 %v652, %v3283
        %v3300 = vadd.f32 %v653, %v3284
        %v3301 = vadd.f32 %v654, %v3285
        %v3302 = vadd.f32 %v655, %v3286
        %v3303 = vadd.f32 %v656, %v3287
        %v3304 = vadd.f32 %v657, %v3288
        %v3305 = vadd.f32 %v658, %v3289
        %v3306 = vadd.f32 %v659, %v3290
        %v3307 = vadd.f32 %v660, %v3291
        %v3308 = vadd.f32 %v661, %v3292
        %v3309 = vadd.f32 %v662, %v3293
        %v3310 = vadd.f32 %v663, %v3294
        %v3311 = vlaneseq
        %v3312 = vshrl.u32 %v3311, 7
        %v3313 = vsub.s32 2, %v3312
        %v3314 = vrot.slane %v672, %v3313
        %v3315 = vadd.f32 %v3295, %v3314
        %v3316 = vadd.f32 %v3296, %v3314
        %v3317 = vadd.f32 %v3297, %v3314
        %v3318 = vadd.f32 %v3298, %v3314
        %v3319 = vadd.f32 %v3299, %v3314
        %v3320 = vadd.f32 %v3300, %v3314
        %v3321 = vadd.f32 %v3301, %v3314
        %v3322 = vadd.f32 %v3302, %v3314
        %v3323 = vadd.f32 %v3303, %v3314
        %v3324 = vadd.f32 %v3304, %v3314
        %v3325 = vadd.f32 %v3305, %v3314
        %v3326 = vadd.f32 %v3306, %v3314
        %v3327 = vadd.f32 %v3307, %v3314
        %v3328 = vadd.f32 %v3308, %v3314
        %v3329 = vadd.f32 %v3309, %v3314
        %v3330 = vadd.f32 %v3310, %v3314
        %3331 = vadd.xlane.f32.xlu0 %v3315
        %v3332 = vpop.xlane.xlu0 %3331
        %3333 = vadd.xlane.f32.xlu0 %v3316
        %v3334 = vpop.xlane.xlu0 %3333
        %3335 = vadd.xlane.f32.xlu0 %v3317
        %v3336 = vpop.xlane.xlu0 %3335
        %3337 = vadd.xlane.f32.xlu0 %v3318
        %v3338 = vpop.xlane.xlu0 %3337
        %3339 = vadd.xlane.f32.xlu0 %v3319
        %v3340 = vpop.xlane.xlu0 %3339
        %3341 = vadd.xlane.f32.xlu0 %v3320
        %v3342 = vpop.xlane.xlu0 %3341
        %3343 = vadd.xlane.f32.xlu0 %v3321
        %v3344 = vpop.xlane.xlu0 %3343
        %3345 = vadd.xlane.f32.xlu0 %v3322
        %v3346 = vpop.xlane.xlu0 %3345
        %3347 = vadd.xlane.f32.xlu0 %v3323
        %v3348 = vpop.xlane.xlu0 %3347
        %3349 = vadd.xlane.f32.xlu0 %v3324
        %v3350 = vpop.xlane.xlu0 %3349
        %3351 = vadd.xlane.f32.xlu0 %v3325
        %v3352 = vpop.xlane.xlu0 %3351
        %3353 = vadd.xlane.f32.xlu0 %v3326
        %v3354 = vpop.xlane.xlu0 %3353
        %3355 = vadd.xlane.f32.xlu0 %v3327
        %v3356 = vpop.xlane.xlu0 %3355
        %3357 = vadd.xlane.f32.xlu0 %v3328
        %v3358 = vpop.xlane.xlu0 %3357
        %3359 = vadd.xlane.f32.xlu0 %v3329
        %v3360 = vpop.xlane.xlu0 %3359
        %3361 = vadd.xlane.f32.xlu0 %v3330
        %v3362 = vpop.xlane.xlu0 %3361
        %v3363 = vrcp.pop 128.0
        %v3364 = vmul.f32 %v3332, %v3363
        %v3365 = vmul.f32 %v3334, %v3363
        %v3366 = vmul.f32 %v3336, %v3363
        %v3367 = vmul.f32 %v3338, %v3363
        %v3368 = vmul.f32 %v3340, %v3363
        %v3369 = vmul.f32 %v3342, %v3363
        %v3370 = vmul.f32 %v3344, %v3363
        %v3371 = vmul.f32 %v3346, %v3363
        %v3372 = vmul.f32 %v3348, %v3363
        %v3373 = vmul.f32 %v3350, %v3363
        %v3374 = vmul.f32 %v3352, %v3363
        %v3375 = vmul.f32 %v3354, %v3363
        %v3376 = vmul.f32 %v3356, %v3363
        %v3377 = vmul.f32 %v3358, %v3363
        %v3378 = vmul.f32 %v3360, %v3363
        %v3379 = vmul.f32 %v3362, %v3363
        %v3380 = vsub.f32 %v3315, %v3364
        %v3381 = vsub.f32 %v3316, %v3365
        %v3382 = vsub.f32 %v3317, %v3366
        %v3383 = vsub.f32 %v3318, %v3367
        %v3384 = vsub.f32 %v3319, %v3368
        %v3385 = vsub.f32 %v3320, %v3369
        %v3386 = vsub.f32 %v3321, %v3370
        %v3387 = vsub.f32 %v3322, %v3371
        %v3388 = vsub.f32 %v3323, %v3372
        %v3389 = vsub.f32 %v3324, %v3373
        %v3390 = vsub.f32 %v3325, %v3374
        %v3391 = vsub.f32 %v3326, %v3375
        %v3392 = vsub.f32 %v3327, %v3376
        %v3393 = vsub.f32 %v3328, %v3377
        %v3394 = vsub.f32 %v3329, %v3378
        %v3395 = vsub.f32 %v3330, %v3379
        %v3396 = vmul.f32 %v3380, %v3380
        %v3397 = vmul.f32 %v3381, %v3381
        %v3398 = vmul.f32 %v3382, %v3382
        %v3399 = vmul.f32 %v3383, %v3383
        %v3400 = vmul.f32 %v3384, %v3384
        %v3401 = vmul.f32 %v3385, %v3385
        %v3402 = vmul.f32 %v3386, %v3386
        %v3403 = vmul.f32 %v3387, %v3387
        %v3404 = vmul.f32 %v3388, %v3388
        %v3405 = vmul.f32 %v3389, %v3389
        %v3406 = vmul.f32 %v3390, %v3390
        %v3407 = vmul.f32 %v3391, %v3391
        %v3408 = vmul.f32 %v3392, %v3392
        %v3409 = vmul.f32 %v3393, %v3393
        %v3410 = vmul.f32 %v3394, %v3394
        %v3411 = vmul.f32 %v3395, %v3395
        %3412 = vadd.xlane.f32.xlu0 %v3396
        %v3413 = vpop.xlane.xlu0 %3412
        %3414 = vadd.xlane.f32.xlu0 %v3397
        %v3415 = vpop.xlane.xlu0 %3414
        %3416 = vadd.xlane.f32.xlu0 %v3398
        %v3417 = vpop.xlane.xlu0 %3416
        %3418 = vadd.xlane.f32.xlu0 %v3399
        %v3419 = vpop.xlane.xlu0 %3418
        %3420 = vadd.xlane.f32.xlu0 %v3400
        %v3421 = vpop.xlane.xlu0 %3420
        %3422 = vadd.xlane.f32.xlu0 %v3401
        %v3423 = vpop.xlane.xlu0 %3422
        %3424 = vadd.xlane.f32.xlu0 %v3402
        %v3425 = vpop.xlane.xlu0 %3424
        %3426 = vadd.xlane.f32.xlu0 %v3403
        %v3427 = vpop.xlane.xlu0 %3426
        %3428 = vadd.xlane.f32.xlu0 %v3404
        %v3429 = vpop.xlane.xlu0 %3428
        %3430 = vadd.xlane.f32.xlu0 %v3405
        %v3431 = vpop.xlane.xlu0 %3430
        %3432 = vadd.xlane.f32.xlu0 %v3406
        %v3433 = vpop.xlane.xlu0 %3432
        %3434 = vadd.xlane.f32.xlu0 %v3407
        %v3435 = vpop.xlane.xlu0 %3434
        %3436 = vadd.xlane.f32.xlu0 %v3408
        %v3437 = vpop.xlane.xlu0 %3436
        %3438 = vadd.xlane.f32.xlu0 %v3409
        %v3439 = vpop.xlane.xlu0 %3438
        %3440 = vadd.xlane.f32.xlu0 %v3410
        %v3441 = vpop.xlane.xlu0 %3440
        %3442 = vadd.xlane.f32.xlu0 %v3411
        %v3443 = vpop.xlane.xlu0 %3442
        %v3444 = vmul.f32 %v3413, %v3363
        %v3445 = vmul.f32 %v3415, %v3363
        %v3446 = vmul.f32 %v3417, %v3363
        %v3447 = vmul.f32 %v3419, %v3363
        %v3448 = vmul.f32 %v3421, %v3363
        %v3449 = vmul.f32 %v3423, %v3363
        %v3450 = vmul.f32 %v3425, %v3363
        %v3451 = vmul.f32 %v3427, %v3363
        %v3452 = vmul.f32 %v3429, %v3363
        %v3453 = vmul.f32 %v3431, %v3363
        %v3454 = vmul.f32 %v3433, %v3363
        %v3455 = vmul.f32 %v3435, %v3363
        %v3456 = vmul.f32 %v3437, %v3363
        %v3457 = vmul.f32 %v3439, %v3363
        %v3458 = vmul.f32 %v3441, %v3363
        %v3459 = vmul.f32 %v3443, %v3363
        %v3460 = vadd.f32 %v3444, 1e-05
        %v3461 = vadd.f32 %v3445, 1e-05
        %v3462 = vadd.f32 %v3446, 1e-05
        %v3463 = vadd.f32 %v3447, 1e-05
        %v3464 = vadd.f32 %v3448, 1e-05
        %v3465 = vadd.f32 %v3449, 1e-05
        %v3466 = vadd.f32 %v3450, 1e-05
        %v3467 = vadd.f32 %v3451, 1e-05
        %v3468 = vadd.f32 %v3452, 1e-05
        %v3469 = vadd.f32 %v3453, 1e-05
        %v3470 = vadd.f32 %v3454, 1e-05
        %v3471 = vadd.f32 %v3455, 1e-05
        %v3472 = vadd.f32 %v3456, 1e-05
        %v3473 = vadd.f32 %v3457, 1e-05
        %v3474 = vadd.f32 %v3458, 1e-05
        %v3475 = vadd.f32 %v3459, 1e-05
        %v3476 = vrsqrt.pop %v3460
        %v3477 = vrsqrt.pop %v3461
        %v3478 = vrsqrt.pop %v3462
        %v3479 = vrsqrt.pop %v3463
        %v3480 = vrsqrt.pop %v3464
        %v3481 = vrsqrt.pop %v3465
        %v3482 = vrsqrt.pop %v3466
        %v3483 = vrsqrt.pop %v3467
        %v3484 = vrsqrt.pop %v3468
        %v3485 = vrsqrt.pop %v3469
        %v3486 = vrsqrt.pop %v3470
        %v3487 = vrsqrt.pop %v3471
        %v3488 = vrsqrt.pop %v3472
        %v3489 = vrsqrt.pop %v3473
        %v3490 = vrsqrt.pop %v3474
        %v3491 = vrsqrt.pop %v3475
        %v3492 = vmul.f32 %v3380, %v3476
        %v3493 = vmul.f32 %v3381, %v3477
        %v3494 = vmul.f32 %v3382, %v3478
        %v3495 = vmul.f32 %v3383, %v3479
        %v3496 = vmul.f32 %v3384, %v3480
        %v3497 = vmul.f32 %v3385, %v3481
        %v3498 = vmul.f32 %v3386, %v3482
        %v3499 = vmul.f32 %v3387, %v3483
        %v3500 = vmul.f32 %v3388, %v3484
        %v3501 = vmul.f32 %v3389, %v3485
        %v3502 = vmul.f32 %v3390, %v3486
        %v3503 = vmul.f32 %v3391, %v3487
        %v3504 = vmul.f32 %v3392, %v3488
        %v3505 = vmul.f32 %v3393, %v3489
        %v3506 = vmul.f32 %v3394, %v3490
        %v3507 = vmul.f32 %v3395, %v3491
        %v3508 = vlaneseq
        %v3509 = vshrl.u32 %v3508, 7
        %v3510 = vsub.s32 3, %v3509
        %v3511 = vrot.slane %v672, %v3510
        %v3512 = vmul.f32 %v3492, %v3511
        %v3513 = vmul.f32 %v3493, %v3511
        %v3514 = vmul.f32 %v3494, %v3511
        %v3515 = vmul.f32 %v3495, %v3511
        %v3516 = vmul.f32 %v3496, %v3511
        %v3517 = vmul.f32 %v3497, %v3511
        %v3518 = vmul.f32 %v3498, %v3511
        %v3519 = vmul.f32 %v3499, %v3511
        %v3520 = vmul.f32 %v3500, %v3511
        %v3521 = vmul.f32 %v3501, %v3511
        %v3522 = vmul.f32 %v3502, %v3511
        %v3523 = vmul.f32 %v3503, %v3511
        %v3524 = vmul.f32 %v3504, %v3511
        %v3525 = vmul.f32 %v3505, %v3511
        %v3526 = vmul.f32 %v3506, %v3511
        %v3527 = vmul.f32 %v3507, %v3511
        %v3528 = vlaneseq
        %v3529 = vshrl.u32 %v3528, 7
        %v3530 = vsub.s32 4, %v3529
        %v3531 = vrot.slane %v672, %v3530
        %v3532 = vadd.f32 %v3512, %v3531
        %v3533 = vadd.f32 %v3513, %v3531
        %v3534 = vadd.f32 %v3514, %v3531
        %v3535 = vadd.f32 %v3515, %v3531
        %v3536 = vadd.f32 %v3516, %v3531
        %v3537 = vadd.f32 %v3517, %v3531
        %v3538 = vadd.f32 %v3518, %v3531
        %v3539 = vadd.f32 %v3519, %v3531
        %v3540 = vadd.f32 %v3520, %v3531
        %v3541 = vadd.f32 %v3521, %v3531
        %v3542 = vadd.f32 %v3522, %v3531
        %v3543 = vadd.f32 %v3523, %v3531
        %v3544 = vadd.f32 %v3524, %v3531
        %v3545 = vadd.f32 %v3525, %v3531
        %v3546 = vadd.f32 %v3526, %v3531
        %v3547 = vadd.f32 %v3527, %v3531
        %v3548 = vpack.c.bf16 %v3533, %v3532
        %v3549 = vpack.c.bf16 %v3535, %v3534
        %v3550 = vpack.c.bf16 %v3537, %v3536
        %v3551 = vpack.c.bf16 %v3539, %v3538
        %v3552 = vpack.c.bf16 %v3541, %v3540
        %v3553 = vpack.c.bf16 %v3543, %v3542
        %v3554 = vpack.c.bf16 %v3545, %v3544
        %v3555 = vpack.c.bf16 %v3547, %v3546
        %v3556 = vld [vmem:[%s523] sm:$0xff]
        %v3557 = vld [vmem:[%s523 + $0x8] sm:$0xff]
        %v3558 = vld [vmem:[%s523 + $0x10] sm:$0xff]
        %v3559 = vld [vmem:[%s523 + $0x18] sm:$0xff]
        %v3560 = vld [vmem:[%s523 + $0x20] sm:$0xff]
        %v3561 = vld [vmem:[%s523 + $0x28] sm:$0xff]
        %v3562 = vld [vmem:[%s523 + $0x30] sm:$0xff]
        %v3563 = vld [vmem:[%s523 + $0x38] sm:$0xff]
        %v3564 = vld [vmem:[%s523 + $0x40] sm:$0xff]
        %v3565 = vld [vmem:[%s523 + $0x48] sm:$0xff]
        %v3566 = vld [vmem:[%s523 + $0x50] sm:$0xff]
        %v3567 = vld [vmem:[%s523 + $0x58] sm:$0xff]
        %v3568 = vld [vmem:[%s523 + $0x60] sm:$0xff]
        %v3569 = vld [vmem:[%s523 + $0x68] sm:$0xff]
        %v3570 = vld [vmem:[%s523 + $0x70] sm:$0xff]
        %v3571 = vld [vmem:[%s523 + $0x78] sm:$0xff]
        %v3572 = vld [vmem:[%s523 + $0x80] sm:$0xff]
        %v3573 = vld [vmem:[%s523 + $0x88] sm:$0xff]
        %v3574 = vld [vmem:[%s523 + $0x90] sm:$0xff]
        %v3575 = vld [vmem:[%s523 + $0x98] sm:$0xff]
        %v3576 = vld [vmem:[%s523 + $0xa0] sm:$0xff]
        %v3577 = vld [vmem:[%s523 + $0xa8] sm:$0xff]
        %v3578 = vld [vmem:[%s523 + $0xb0] sm:$0xff]
        %v3579 = vld [vmem:[%s523 + $0xb8] sm:$0xff]
        %v3580 = vld [vmem:[%s523 + $0xc0] sm:$0xff]
        %v3581 = vld [vmem:[%s523 + $0xc8] sm:$0xff]
        %v3582 = vld [vmem:[%s523 + $0xd0] sm:$0xff]
        %v3583 = vld [vmem:[%s523 + $0xd8] sm:$0xff]
        %v3584 = vld [vmem:[%s523 + $0xe0] sm:$0xff]
        %v3585 = vld [vmem:[%s523 + $0xe8] sm:$0xff]
        %v3586 = vld [vmem:[%s523 + $0xf0] sm:$0xff]
        %v3587 = vld [vmem:[%s523 + $0xf8] sm:$0xff]
        %v3588 = vlaneseq
        %v3589 = vshrl.u32 %v3588, 7
        %v3590 = vsub.s32 1, %v3589
        %v3591 = vrot.slane %v672, %v3590
        %v3592 = vlaneseq
        %v3593 = vshrl.u32 %v3592, 7
        %v3594 = vsub.s32 1, %v3593
        %v3595 = vrot.slane %v673, %v3594
        %v3596 = vlaneseq
        %v3597 = vshrl.u32 %v3596, 7
        %v3598 = vsub.s32 1, %v3597
        %v3599 = vrot.slane %v674, %v3598
        %v3600 = vlaneseq
        %v3601 = vshrl.u32 %v3600, 7
        %v3602 = vsub.s32 1, %v3601
        %v3603 = vrot.slane %v675, %v3602
        %v3636 = vunpack.c.l.b16 %v3556
        %v3637 = vunpack.c.h.b16 %v3556
        %v3638 = vunpack.c.l.b16 %v3557
        %v3639 = vunpack.c.h.b16 %v3557
        %v3640 = vunpack.c.l.b16 %v3558
        %v3641 = vunpack.c.h.b16 %v3558
        %v3642 = vunpack.c.l.b16 %v3559
        %v3643 = vunpack.c.h.b16 %v3559
        %v3644 = vunpack.c.l.b16 %v3560
        %v3645 = vunpack.c.h.b16 %v3560
        %v3646 = vunpack.c.l.b16 %v3561
        %v3647 = vunpack.c.h.b16 %v3561
        %v3648 = vunpack.c.l.b16 %v3562
        %v3649 = vunpack.c.h.b16 %v3562
        %v3650 = vunpack.c.l.b16 %v3563
        %v3651 = vunpack.c.h.b16 %v3563
        %v3652 = vunpack.c.l.b16 %v3564
        %v3653 = vunpack.c.h.b16 %v3564
        %v3654 = vunpack.c.l.b16 %v3565
        %v3655 = vunpack.c.h.b16 %v3565
        %v3656 = vunpack.c.l.b16 %v3566
        %v3657 = vunpack.c.h.b16 %v3566
        %v3658 = vunpack.c.l.b16 %v3567
        %v3659 = vunpack.c.h.b16 %v3567
        %v3660 = vunpack.c.l.b16 %v3568
        %v3661 = vunpack.c.h.b16 %v3568
        %v3662 = vunpack.c.l.b16 %v3569
        %v3663 = vunpack.c.h.b16 %v3569
        %v3664 = vunpack.c.l.b16 %v3570
        %v3665 = vunpack.c.h.b16 %v3570
        %v3666 = vunpack.c.l.b16 %v3571
        %v3667 = vunpack.c.h.b16 %v3571
        %v3668 = vunpack.c.l.b16 %v3572
        %v3669 = vunpack.c.h.b16 %v3572
        %v3670 = vunpack.c.l.b16 %v3573
        %v3671 = vunpack.c.h.b16 %v3573
        %v3672 = vunpack.c.l.b16 %v3574
        %v3673 = vunpack.c.h.b16 %v3574
        %v3674 = vunpack.c.l.b16 %v3575
        %v3675 = vunpack.c.h.b16 %v3575
        %v3676 = vunpack.c.l.b16 %v3576
        %v3677 = vunpack.c.h.b16 %v3576
        %v3678 = vunpack.c.l.b16 %v3577
        %v3679 = vunpack.c.h.b16 %v3577
        %v3680 = vunpack.c.l.b16 %v3578
        %v3681 = vunpack.c.h.b16 %v3578
        %v3682 = vunpack.c.l.b16 %v3579
        %v3683 = vunpack.c.h.b16 %v3579
        %v3684 = vunpack.c.l.b16 %v3580
        %v3685 = vunpack.c.h.b16 %v3580
        %v3686 = vunpack.c.l.b16 %v3581
        %v3687 = vunpack.c.h.b16 %v3581
        %v3688 = vunpack.c.l.b16 %v3582
        %v3689 = vunpack.c.h.b16 %v3582
        %v3690 = vunpack.c.l.b16 %v3583
        %v3691 = vunpack.c.h.b16 %v3583
        %v3692 = vunpack.c.l.b16 %v3584
        %v3693 = vunpack.c.h.b16 %v3584
        %v3694 = vunpack.c.l.b16 %v3585
        %v3695 = vunpack.c.h.b16 %v3585
        %v3696 = vunpack.c.l.b16 %v3586
        %v3697 = vunpack.c.h.b16 %v3586
        %v3698 = vunpack.c.l.b16 %v3587
        %v3699 = vunpack.c.h.b16 %v3587
        %v3700 = vpack.c.b16 %v3640, %v3636
        %v3701 = vpack.c.b16 %v3641, %v3637
        %v3702 = vpack.c.b16 %v3642, %v3638
        %v3703 = vpack.c.b16 %v3643, %v3639
        %v3704 = vpack.c.b16 %v3648, %v3644
        %v3705 = vpack.c.b16 %v3649, %v3645
        %v3706 = vpack.c.b16 %v3650, %v3646
        %v3707 = vpack.c.b16 %v3651, %v3647
        %v3708 = vpack.c.b16 %v3656, %v3652
        %v3709 = vpack.c.b16 %v3657, %v3653
        %v3710 = vpack.c.b16 %v3658, %v3654
        %v3711 = vpack.c.b16 %v3659, %v3655
        %v3712 = vpack.c.b16 %v3664, %v3660
        %v3713 = vpack.c.b16 %v3665, %v3661
        %v3714 = vpack.c.b16 %v3666, %v3662
        %v3715 = vpack.c.b16 %v3667, %v3663
        %v3716 = vpack.c.b16 %v3672, %v3668
        %v3717 = vpack.c.b16 %v3673, %v3669
        %v3718 = vpack.c.b16 %v3674, %v3670
        %v3719 = vpack.c.b16 %v3675, %v3671
        %v3720 = vpack.c.b16 %v3680, %v3676
        %v3721 = vpack.c.b16 %v3681, %v3677
        %v3722 = vpack.c.b16 %v3682, %v3678
        %v3723 = vpack.c.b16 %v3683, %v3679
        %v3724 = vpack.c.b16 %v3688, %v3684
        %v3725 = vpack.c.b16 %v3689, %v3685
        %v3726 = vpack.c.b16 %v3690, %v3686
        %v3727 = vpack.c.b16 %v3691, %v3687
        %v3728 = vpack.c.b16 %v3696, %v3692
        %v3729 = vpack.c.b16 %v3697, %v3693
        %v3730 = vpack.c.b16 %v3698, %v3694
        %v3731 = vpack.c.b16 %v3699, %v3695
        %3764 = vmatprep.subr.bf16.mxu0 %v3701
        %3765 = vmatpush1.bf16.msra.mxu0 %v3700
        %3766 = vmatprep.subr.bf16.mxu0 %v3705
        %3767 = vmatpush1.bf16.msra.mxu0 %v3704
        %3768 = vmatprep.subr.bf16.mxu0 %v3709
        %3769 = vmatpush1.bf16.msra.mxu0 %v3708
        %3770 = vmatprep.subr.bf16.mxu0 %v3713
        %3771 = vmatpush1.bf16.msra.mxu0 %v3712
        %3772 = vmatprep.subr.bf16.mxu0 %v3717
        %3773 = vmatpush1.bf16.msra.mxu0 %v3716
        %3774 = vmatprep.subr.bf16.mxu0 %v3721
        %3775 = vmatpush1.bf16.msra.mxu0 %v3720
        %3776 = vmatprep.subr.bf16.mxu0 %v3725
        %3777 = vmatpush1.bf16.msra.mxu0 %v3724
        %3778 = vmatprep.subr.bf16.mxu0 %v3729
        %3779 = vmatpush1.bf16.msra.mxu0 %v3728
        %3780 = vmatprep.subr.bf16.mxu0 0
        %3781 = vmatpush1.bf16.msra.mxu0 0
        %3782 = vmatprep.subr.bf16.mxu0 0
        %3783 = vmatpush1.bf16.msra.mxu0 0
        %3784 = vmatprep.subr.bf16.mxu0 0
        %3785 = vmatpush1.bf16.msra.mxu0 0
        %3786 = vmatprep.subr.bf16.mxu0 0
        %3787 = vmatpush1.bf16.msra.mxu0 0
        %3788 = vmatprep.subr.bf16.mxu0 0
        %3789 = vmatpush1.bf16.msra.mxu0 0
        %3790 = vmatprep.subr.bf16.mxu0 0
        %3791 = vmatpush1.bf16.msra.mxu0 0
        %3792 = vmatprep.subr.bf16.mxu0 0
        %3793 = vmatpush1.bf16.msra.mxu0 0
        %3794 = vmatprep.subr.bf16.mxu0 0
        %3795 = vmatpush1.bf16.msra.mxu0 0
        %3796 = vmatprep.mubr.bf16.mxu0 0
        %3797 = vmatmul.mubr.bf16.gmra.mrb[0].mxu0 %v3548
        %v3798 = vpop.f32.mrb[0].mxu0
        %v3799 = vadd.f32 %v3591, %v3798
        %v3800 = vpop.f32.mrb[0].mxu0
        %v3801 = vadd.f32 %v3595, %v3800
        %v3802 = vpop.f32.mrb[0].mxu0
        %v3803 = vadd.f32 %v3591, %v3802
        %v3804 = vpop.f32.mrb[0].mxu0
        %v3805 = vadd.f32 %v3595, %v3804
        %3806 = vmatprep.mubr.bf16.mxu0 0
        %3807 = vmatmul.mubr.bf16.gmra.mrb[0].mxu0 %v3549
        %v3808 = vpop.f32.mrb[0].mxu0
        %v3809 = vadd.f32 %v3591, %v3808
        %v3810 = vpop.f32.mrb[0].mxu0
        %v3811 = vadd.f32 %v3595, %v3810
        %v3812 = vpop.f32.mrb[0].mxu0
        %v3813 = vadd.f32 %v3591, %v3812
        %v3814 = vpop.f32.mrb[0].mxu0
        %v3815 = vadd.f32 %v3595, %v3814
        %3816 = vmatprep.mubr.bf16.mxu0 0
        %3817 = vmatmul.mubr.bf16.gmra.mrb[0].mxu0 %v3550
        %v3818 = vpop.f32.mrb[0].mxu0
        %v3819 = vadd.f32 %v3591, %v3818
        %v3820 = vpop.f32.mrb[0].mxu0
        %v3821 = vadd.f32 %v3595, %v3820
        %v3822 = vpop.f32.mrb[0].mxu0
        %v3823 = vadd.f32 %v3591, %v3822
        %v3824 = vpop.f32.mrb[0].mxu0
        %v3825 = vadd.f32 %v3595, %v3824
        %3826 = vmatprep.mubr.bf16.mxu0 0
        %3827 = vmatmul.mubr.bf16.gmra.mrb[0].mxu0 %v3551
        %v3828 = vpop.f32.mrb[0].mxu0
        %v3829 = vadd.f32 %v3591, %v3828
        %v3830 = vpop.f32.mrb[0].mxu0
        %v3831 = vadd.f32 %v3595, %v3830
        %v3832 = vpop.f32.mrb[0].mxu0
        %v3833 = vadd.f32 %v3591, %v3832
        %v3834 = vpop.f32.mrb[0].mxu0
        %v3835 = vadd.f32 %v3595, %v3834
        %3836 = vmatprep.mubr.bf16.mxu0 0
        %3837 = vmatmul.mubr.bf16.gmra.mrb[0].mxu0 %v3552
        %v3838 = vpop.f32.mrb[0].mxu0
        %v3839 = vadd.f32 %v3591, %v3838
        %v3840 = vpop.f32.mrb[0].mxu0
        %v3841 = vadd.f32 %v3595, %v3840
        %v3842 = vpop.f32.mrb[0].mxu0
        %v3843 = vadd.f32 %v3591, %v3842
        %v3844 = vpop.f32.mrb[0].mxu0
        %v3845 = vadd.f32 %v3595, %v3844
        %3846 = vmatprep.mubr.bf16.mxu0 0
        %3847 = vmatmul.mubr.bf16.gmra.mrb[0].mxu0 %v3553
        %v3848 = vpop.f32.mrb[0].mxu0
        %v3849 = vadd.f32 %v3591, %v3848
        %v3850 = vpop.f32.mrb[0].mxu0
        %v3851 = vadd.f32 %v3595, %v3850
        %v3852 = vpop.f32.mrb[0].mxu0
        %v3853 = vadd.f32 %v3591, %v3852
        %v3854 = vpop.f32.mrb[0].mxu0
        %v3855 = vadd.f32 %v3595, %v3854
        %3856 = vmatprep.mubr.bf16.mxu0 0
        %3857 = vmatmul.mubr.bf16.gmra.mrb[0].mxu0 %v3554
        %v3858 = vpop.f32.mrb[0].mxu0
        %v3859 = vadd.f32 %v3591, %v3858
        %v3860 = vpop.f32.mrb[0].mxu0
        %v3861 = vadd.f32 %v3595, %v3860
        %v3862 = vpop.f32.mrb[0].mxu0
        %v3863 = vadd.f32 %v3591, %v3862
        %v3864 = vpop.f32.mrb[0].mxu0
        %v3865 = vadd.f32 %v3595, %v3864
        %3866 = vmatprep.mubr.bf16.mxu0 0
        %3867 = vmatmul.mubr.bf16.gmra.mrb[0].mxu0 %v3555
        %v3868 = vpop.f32.mrb[0].mxu0
        %v3869 = vadd.f32 %v3591, %v3868
        %v3870 = vpop.f32.mrb[0].mxu0
        %v3871 = vadd.f32 %v3595, %v3870
        %v3872 = vpop.f32.mrb[0].mxu0
        %v3873 = vadd.f32 %v3591, %v3872
        %v3874 = vpop.f32.mrb[0].mxu0
        %v3875 = vadd.f32 %v3595, %v3874
        %3876 = vdwg.mxu0
        %3877 = vmatprep.subr.bf16.mxu0 %v3703
        %3878 = vmatpush1.bf16.msra.mxu0 %v3702
        %3879 = vmatprep.subr.bf16.mxu0 %v3707
        %3880 = vmatpush1.bf16.msra.mxu0 %v3706
        %3881 = vmatprep.subr.bf16.mxu0 %v3711
        %3882 = vmatpush1.bf16.msra.mxu0 %v3710
        %3883 = vmatprep.subr.bf16.mxu0 %v3715
        %3884 = vmatpush1.bf16.msra.mxu0 %v3714
        %3885 = vmatprep.subr.bf16.mxu0 %v3719
        %3886 = vmatpush1.bf16.msra.mxu0 %v3718
        %3887 = vmatprep.subr.bf16.mxu0 %v3723
        %3888 = vmatpush1.bf16.msra.mxu0 %v3722
        %3889 = vmatprep.subr.bf16.mxu0 %v3727
        %3890 = vmatpush1.bf16.msra.mxu0 %v3726
        %3891 = vmatprep.subr.bf16.mxu0 %v3731
        %3892 = vmatpush1.bf16.msra.mxu0 %v3730
        %3893 = vmatprep.subr.bf16.mxu0 0
        %3894 = vmatpush1.bf16.msra.mxu0 0
        %3895 = vmatprep.subr.bf16.mxu0 0
        %3896 = vmatpush1.bf16.msra.mxu0 0
        %3897 = vmatprep.subr.bf16.mxu0 0
        %3898 = vmatpush1.bf16.msra.mxu0 0
        %3899 = vmatprep.subr.bf16.mxu0 0
        %3900 = vmatpush1.bf16.msra.mxu0 0
        %3901 = vmatprep.subr.bf16.mxu0 0
        %3902 = vmatpush1.bf16.msra.mxu0 0
        %3903 = vmatprep.subr.bf16.mxu0 0
        %3904 = vmatpush1.bf16.msra.mxu0 0
        %3905 = vmatprep.subr.bf16.mxu0 0
        %3906 = vmatpush1.bf16.msra.mxu0 0
        %3907 = vmatprep.subr.bf16.mxu0 0
        %3908 = vmatpush1.bf16.msra.mxu0 0
        %3909 = vmatprep.mubr.bf16.mxu0 0
        %3910 = vmatmul.mubr.bf16.gmra.mrb[0].mxu0 %v3548
        %v3911 = vpop.f32.mrb[0].mxu0
        %v3912 = vadd.f32 %v3599, %v3911
        %v3913 = vpop.f32.mrb[0].mxu0
        %v3914 = vadd.f32 %v3603, %v3913
        %v3915 = vpop.f32.mrb[0].mxu0
        %v3916 = vadd.f32 %v3599, %v3915
        %v3917 = vpop.f32.mrb[0].mxu0
        %v3918 = vadd.f32 %v3603, %v3917
        %3919 = vmatprep.mubr.bf16.mxu0 0
        %3920 = vmatmul.mubr.bf16.gmra.mrb[0].mxu0 %v3549
        %v3921 = vpop.f32.mrb[0].mxu0
        %v3922 = vadd.f32 %v3599, %v3921
        %v3923 = vpop.f32.mrb[0].mxu0
        %v3924 = vadd.f32 %v3603, %v3923
        %v3925 = vpop.f32.mrb[0].mxu0
        %v3926 = vadd.f32 %v3599, %v3925
        %v3927 = vpop.f32.mrb[0].mxu0
        %v3928 = vadd.f32 %v3603, %v3927
        %3929 = vmatprep.mubr.bf16.mxu0 0
        %3930 = vmatmul.mubr.bf16.gmra.mrb[0].mxu0 %v3550
        %v3931 = vpop.f32.mrb[0].mxu0
        %v3932 = vadd.f32 %v3599, %v3931
        %v3933 = vpop.f32.mrb[0].mxu0
        %v3934 = vadd.f32 %v3603, %v3933
        %v3935 = vpop.f32.mrb[0].mxu0
        %v3936 = vadd.f32 %v3599, %v3935
        %v3937 = vpop.f32.mrb[0].mxu0
        %v3938 = vadd.f32 %v3603, %v3937
        %3939 = vmatprep.mubr.bf16.mxu0 0
        %3940 = vmatmul.mubr.bf16.gmra.mrb[0].mxu0 %v3551
        %v3941 = vpop.f32.mrb[0].mxu0
        %v3942 = vadd.f32 %v3599, %v3941
        %v3943 = vpop.f32.mrb[0].mxu0
        %v3944 = vadd.f32 %v3603, %v3943
        %v3945 = vpop.f32.mrb[0].mxu0
        %v3946 = vadd.f32 %v3599, %v3945
        %v3947 = vpop.f32.mrb[0].mxu0
        %v3948 = vadd.f32 %v3603, %v3947
        %3949 = vmatprep.mubr.bf16.mxu0 0
        %3950 = vmatmul.mubr.bf16.gmra.mrb[0].mxu0 %v3552
        %v3951 = vpop.f32.mrb[0].mxu0
        %v3952 = vadd.f32 %v3599, %v3951
        %v3953 = vpop.f32.mrb[0].mxu0
        %v3954 = vadd.f32 %v3603, %v3953
        %v3955 = vpop.f32.mrb[0].mxu0
        %v3956 = vadd.f32 %v3599, %v3955
        %v3957 = vpop.f32.mrb[0].mxu0
        %v3958 = vadd.f32 %v3603, %v3957
        %3959 = vmatprep.mubr.bf16.mxu0 0
        %3960 = vmatmul.mubr.bf16.gmra.mrb[0].mxu0 %v3553
        %v3961 = vpop.f32.mrb[0].mxu0
        %v3962 = vadd.f32 %v3599, %v3961
        %v3963 = vpop.f32.mrb[0].mxu0
        %v3964 = vadd.f32 %v3603, %v3963
        %v3965 = vpop.f32.mrb[0].mxu0
        %v3966 = vadd.f32 %v3599, %v3965
        %v3967 = vpop.f32.mrb[0].mxu0
        %v3968 = vadd.f32 %v3603, %v3967
        %3969 = vmatprep.mubr.bf16.mxu0 0
        %3970 = vmatmul.mubr.bf16.gmra.mrb[0].mxu0 %v3554
        %v3971 = vpop.f32.mrb[0].mxu0
        %v3972 = vadd.f32 %v3599, %v3971
        %v3973 = vpop.f32.mrb[0].mxu0
        %v3974 = vadd.f32 %v3603, %v3973
        %v3975 = vpop.f32.mrb[0].mxu0
        %v3976 = vadd.f32 %v3599, %v3975
        %v3977 = vpop.f32.mrb[0].mxu0
        %v3978 = vadd.f32 %v3603, %v3977
        %3979 = vmatprep.mubr.bf16.mxu0 0
        %3980 = vmatmul.mubr.bf16.gmra.mrb[0].mxu0 %v3555
        %v3981 = vpop.f32.mrb[0].mxu0
        %v3982 = vadd.f32 %v3599, %v3981
        %v3983 = vpop.f32.mrb[0].mxu0
        %v3984 = vadd.f32 %v3603, %v3983
        %v3985 = vpop.f32.mrb[0].mxu0
        %v3986 = vadd.f32 %v3599, %v3985
        %v3987 = vpop.f32.mrb[0].mxu0
        %v3988 = vadd.f32 %v3603, %v3987
        %3989 = vdwg.mxu0
        %v3990 = vmul.f32 %v3799, 0.5
        %v3991 = vmul.f32 %v3801, 0.5
        %v3992 = vmul.f32 %v3912, 0.5
        %v3993 = vmul.f32 %v3914, 0.5
        %v3994 = vmul.f32 %v3803, 0.5
        %v3995 = vmul.f32 %v3805, 0.5
        %v3996 = vmul.f32 %v3916, 0.5
        %v3997 = vmul.f32 %v3918, 0.5
        %v3998 = vmul.f32 %v3809, 0.5
        %v3999 = vmul.f32 %v3811, 0.5
        %v4000 = vmul.f32 %v3922, 0.5
        %v4001 = vmul.f32 %v3924, 0.5
        %v4002 = vmul.f32 %v3813, 0.5
        %v4003 = vmul.f32 %v3815, 0.5
        %v4004 = vmul.f32 %v3926, 0.5
        %v4005 = vmul.f32 %v3928, 0.5
        %v4006 = vmul.f32 %v3819, 0.5
        %v4007 = vmul.f32 %v3821, 0.5
        %v4008 = vmul.f32 %v3932, 0.5
        %v4009 = vmul.f32 %v3934, 0.5
        %v4010 = vmul.f32 %v3823, 0.5
        %v4011 = vmul.f32 %v3825, 0.5
        %v4012 = vmul.f32 %v3936, 0.5
        %v4013 = vmul.f32 %v3938, 0.5
        %v4014 = vmul.f32 %v3829, 0.5
        %v4015 = vmul.f32 %v3831, 0.5
        %v4016 = vmul.f32 %v3942, 0.5
        %v4017 = vmul.f32 %v3944, 0.5
        %v4018 = vmul.f32 %v3833, 0.5
        %v4019 = vmul.f32 %v3835, 0.5
        %v4020 = vmul.f32 %v3946, 0.5
        %v4021 = vmul.f32 %v3948, 0.5
        %v4022 = vmul.f32 %v3839, 0.5
        %v4023 = vmul.f32 %v3841, 0.5
        %v4024 = vmul.f32 %v3952, 0.5
        %v4025 = vmul.f32 %v3954, 0.5
        %v4026 = vmul.f32 %v3843, 0.5
        %v4027 = vmul.f32 %v3845, 0.5
        %v4028 = vmul.f32 %v3956, 0.5
        %v4029 = vmul.f32 %v3958, 0.5
        %v4030 = vmul.f32 %v3849, 0.5
        %v4031 = vmul.f32 %v3851, 0.5
        %v4032 = vmul.f32 %v3962, 0.5
        %v4033 = vmul.f32 %v3964, 0.5
        %v4034 = vmul.f32 %v3853, 0.5
        %v4035 = vmul.f32 %v3855, 0.5
        %v4036 = vmul.f32 %v3966, 0.5
        %v4037 = vmul.f32 %v3968, 0.5
        %v4038 = vmul.f32 %v3859, 0.5
        %v4039 = vmul.f32 %v3861, 0.5
        %v4040 = vmul.f32 %v3972, 0.5
        %v4041 = vmul.f32 %v3974, 0.5
        %v4042 = vmul.f32 %v3863, 0.5
        %v4043 = vmul.f32 %v3865, 0.5
        %v4044 = vmul.f32 %v3976, 0.5
        %v4045 = vmul.f32 %v3978, 0.5
        %v4046 = vmul.f32 %v3869, 0.5
        %v4047 = vmul.f32 %v3871, 0.5
        %v4048 = vmul.f32 %v3982, 0.5
        %v4049 = vmul.f32 %v3984, 0.5
        %v4050 = vmul.f32 %v3873, 0.5
        %v4051 = vmul.f32 %v3875, 0.5
        %v4052 = vmul.f32 %v3986, 0.5
        %v4053 = vmul.f32 %v3988, 0.5
        %v4054 = vmul.f32 %v3799, 0.044715
        %v4055 = vmul.f32 %v3801, 0.044715
        %v4056 = vmul.f32 %v3912, 0.044715
        %v4057 = vmul.f32 %v3914, 0.044715
        %v4058 = vmul.f32 %v3803, 0.044715
        %v4059 = vmul.f32 %v3805, 0.044715
        %v4060 = vmul.f32 %v3916, 0.044715
        %v4061 = vmul.f32 %v3918, 0.044715
        %v4062 = vmul.f32 %v3809, 0.044715
        %v4063 = vmul.f32 %v3811, 0.044715
        %v4064 = vmul.f32 %v3922, 0.044715
        %v4065 = vmul.f32 %v3924, 0.044715
        %v4066 = vmul.f32 %v3813, 0.044715
        %v4067 = vmul.f32 %v3815, 0.044715
        %v4068 = vmul.f32 %v3926, 0.044715
        %v4069 = vmul.f32 %v3928, 0.044715
        %v4070 = vmul.f32 %v3819, 0.044715
        %v4071 = vmul.f32 %v3821, 0.044715
        %v4072 = vmul.f32 %v3932, 0.044715
        %v4073 = vmul.f32 %v3934, 0.044715
        %v4074 = vmul.f32 %v3823, 0.044715
        %v4075 = vmul.f32 %v3825, 0.044715
        %v4076 = vmul.f32 %v3936, 0.044715
        %v4077 = vmul.f32 %v3938, 0.044715
        %v4078 = vmul.f32 %v3829, 0.044715
        %v4079 = vmul.f32 %v3831, 0.044715
        %v4080 = vmul.f32 %v3942, 0.044715
        %v4081 = vmul.f32 %v3944, 0.044715
        %v4082 = vmul.f32 %v3833, 0.044715
        %v4083 = vmul.f32 %v3835, 0.044715
        %v4084 = vmul.f32 %v3946, 0.044715
        %v4085 = vmul.f32 %v3948, 0.044715
        %v4086 = vmul.f32 %v3839, 0.044715
        %v4087 = vmul.f32 %v3841, 0.044715
        %v4088 = vmul.f32 %v3952, 0.044715
        %v4089 = vmul.f32 %v3954, 0.044715
        %v4090 = vmul.f32 %v3843, 0.044715
        %v4091 = vmul.f32 %v3845, 0.044715
        %v4092 = vmul.f32 %v3956, 0.044715
        %v4093 = vmul.f32 %v3958, 0.044715
        %v4094 = vmul.f32 %v3849, 0.044715
        %v4095 = vmul.f32 %v3851, 0.044715
        %v4096 = vmul.f32 %v3962, 0.044715
        %v4097 = vmul.f32 %v3964, 0.044715
        %v4098 = vmul.f32 %v3853, 0.044715
        %v4099 = vmul.f32 %v3855, 0.044715
        %v4100 = vmul.f32 %v3966, 0.044715
        %v4101 = vmul.f32 %v3968, 0.044715
        %v4102 = vmul.f32 %v3859, 0.044715
        %v4103 = vmul.f32 %v3861, 0.044715
        %v4104 = vmul.f32 %v3972, 0.044715
        %v4105 = vmul.f32 %v3974, 0.044715
        %v4106 = vmul.f32 %v3863, 0.044715
        %v4107 = vmul.f32 %v3865, 0.044715
        %v4108 = vmul.f32 %v3976, 0.044715
        %v4109 = vmul.f32 %v3978, 0.044715
        %v4110 = vmul.f32 %v3869, 0.044715
        %v4111 = vmul.f32 %v3871, 0.044715
        %v4112 = vmul.f32 %v3982, 0.044715
        %v4113 = vmul.f32 %v3984, 0.044715
        %v4114 = vmul.f32 %v3873, 0.044715
        %v4115 = vmul.f32 %v3875, 0.044715
        %v4116 = vmul.f32 %v3986, 0.044715
        %v4117 = vmul.f32 %v3988, 0.044715
        %v4118 = vmul.f32 %v4054, %v3799
        %v4119 = vmul.f32 %v4055, %v3801
        %v4120 = vmul.f32 %v4056, %v3912
        %v4121 = vmul.f32 %v4057, %v3914
        %v4122 = vmul.f32 %v4058, %v3803
        %v4123 = vmul.f32 %v4059, %v3805
        %v4124 = vmul.f32 %v4060, %v3916
        %v4125 = vmul.f32 %v4061, %v3918
        %v4126 = vmul.f32 %v4062, %v3809
        %v4127 = vmul.f32 %v4063, %v3811
        %v4128 = vmul.f32 %v4064, %v3922
        %v4129 = vmul.f32 %v4065, %v3924
        %v4130 = vmul.f32 %v4066, %v3813
        %v4131 = vmul.f32 %v4067, %v3815
        %v4132 = vmul.f32 %v4068, %v3926
        %v4133 = vmul.f32 %v4069, %v3928
        %v4134 = vmul.f32 %v4070, %v3819
        %v4135 = vmul.f32 %v4071, %v3821
        %v4136 = vmul.f32 %v4072, %v3932
        %v4137 = vmul.f32 %v4073, %v3934
        %v4138 = vmul.f32 %v4074, %v3823
        %v4139 = vmul.f32 %v4075, %v3825
        %v4140 = vmul.f32 %v4076, %v3936
        %v4141 = vmul.f32 %v4077, %v3938
        %v4142 = vmul.f32 %v4078, %v3829
        %v4143 = vmul.f32 %v4079, %v3831
        %v4144 = vmul.f32 %v4080, %v3942
        %v4145 = vmul.f32 %v4081, %v3944
        %v4146 = vmul.f32 %v4082, %v3833
        %v4147 = vmul.f32 %v4083, %v3835
        %v4148 = vmul.f32 %v4084, %v3946
        %v4149 = vmul.f32 %v4085, %v3948
        %v4150 = vmul.f32 %v4086, %v3839
        %v4151 = vmul.f32 %v4087, %v3841
        %v4152 = vmul.f32 %v4088, %v3952
        %v4153 = vmul.f32 %v4089, %v3954
        %v4154 = vmul.f32 %v4090, %v3843
        %v4155 = vmul.f32 %v4091, %v3845
        %v4156 = vmul.f32 %v4092, %v3956
        %v4157 = vmul.f32 %v4093, %v3958
        %v4158 = vmul.f32 %v4094, %v3849
        %v4159 = vmul.f32 %v4095, %v3851
        %v4160 = vmul.f32 %v4096, %v3962
        %v4161 = vmul.f32 %v4097, %v3964
        %v4162 = vmul.f32 %v4098, %v3853
        %v4163 = vmul.f32 %v4099, %v3855
        %v4164 = vmul.f32 %v4100, %v3966
        %v4165 = vmul.f32 %v4101, %v3968
        %v4166 = vmul.f32 %v4102, %v3859
        %v4167 = vmul.f32 %v4103, %v3861
        %v4168 = vmul.f32 %v4104, %v3972
        %v4169 = vmul.f32 %v4105, %v3974
        %v4170 = vmul.f32 %v4106, %v3863
        %v4171 = vmul.f32 %v4107, %v3865
        %v4172 = vmul.f32 %v4108, %v3976
        %v4173 = vmul.f32 %v4109, %v3978
        %v4174 = vmul.f32 %v4110, %v3869
        %v4175 = vmul.f32 %v4111, %v3871
        %v4176 = vmul.f32 %v4112, %v3982
        %v4177 = vmul.f32 %v4113, %v3984
        %v4178 = vmul.f32 %v4114, %v3873
        %v4179 = vmul.f32 %v4115, %v3875
        %v4180 = vmul.f32 %v4116, %v3986
        %v4181 = vmul.f32 %v4117, %v3988
        %v4182 = vmul.f32 %v4118, %v3799
        %v4183 = vmul.f32 %v4119, %v3801
        %v4184 = vmul.f32 %v4120, %v3912
        %v4185 = vmul.f32 %v4121, %v3914
        %v4186 = vmul.f32 %v4122, %v3803
        %v4187 = vmul.f32 %v4123, %v3805
        %v4188 = vmul.f32 %v4124, %v3916
        %v4189 = vmul.f32 %v4125, %v3918
        %v4190 = vmul.f32 %v4126, %v3809
        %v4191 = vmul.f32 %v4127, %v3811
        %v4192 = vmul.f32 %v4128, %v3922
        %v4193 = vmul.f32 %v4129, %v3924
        %v4194 = vmul.f32 %v4130, %v3813
        %v4195 = vmul.f32 %v4131, %v3815
        %v4196 = vmul.f32 %v4132, %v3926
        %v4197 = vmul.f32 %v4133, %v3928
        %v4198 = vmul.f32 %v4134, %v3819
        %v4199 = vmul.f32 %v4135, %v3821
        %v4200 = vmul.f32 %v4136, %v3932
        %v4201 = vmul.f32 %v4137, %v3934
        %v4202 = vmul.f32 %v4138, %v3823
        %v4203 = vmul.f32 %v4139, %v3825
        %v4204 = vmul.f32 %v4140, %v3936
        %v4205 = vmul.f32 %v4141, %v3938
        %v4206 = vmul.f32 %v4142, %v3829
        %v4207 = vmul.f32 %v4143, %v3831
        %v4208 = vmul.f32 %v4144, %v3942
        %v4209 = vmul.f32 %v4145, %v3944
        %v4210 = vmul.f32 %v4146, %v3833
        %v4211 = vmul.f32 %v4147, %v3835
        %v4212 = vmul.f32 %v4148, %v3946
        %v4213 = vmul.f32 %v4149, %v3948
        %v4214 = vmul.f32 %v4150, %v3839
        %v4215 = vmul.f32 %v4151, %v3841
        %v4216 = vmul.f32 %v4152, %v3952
        %v4217 = vmul.f32 %v4153, %v3954
        %v4218 = vmul.f32 %v4154, %v3843
        %v4219 = vmul.f32 %v4155, %v3845
        %v4220 = vmul.f32 %v4156, %v3956
        %v4221 = vmul.f32 %v4157, %v3958
        %v4222 = vmul.f32 %v4158, %v3849
        %v4223 = vmul.f32 %v4159, %v3851
        %v4224 = vmul.f32 %v4160, %v3962
        %v4225 = vmul.f32 %v4161, %v3964
        %v4226 = vmul.f32 %v4162, %v3853
        %v4227 = vmul.f32 %v4163, %v3855
        %v4228 = vmul.f32 %v4164, %v3966
        %v4229 = vmul.f32 %v4165, %v3968
        %v4230 = vmul.f32 %v4166, %v3859
        %v4231 = vmul.f32 %v4167, %v3861
        %v4232 = vmul.f32 %v4168, %v3972
        %v4233 = vmul.f32 %v4169, %v3974
        %v4234 = vmul.f32 %v4170, %v3863
        %v4235 = vmul.f32 %v4171, %v3865
        %v4236 = vmul.f32 %v4172, %v3976
        %v4237 = vmul.f32 %v4173, %v3978
        %v4238 = vmul.f32 %v4174, %v3869
        %v4239 = vmul.f32 %v4175, %v3871
        %v4240 = vmul.f32 %v4176, %v3982
        %v4241 = vmul.f32 %v4177, %v3984
        %v4242 = vmul.f32 %v4178, %v3873
        %v4243 = vmul.f32 %v4179, %v3875
        %v4244 = vmul.f32 %v4180, %v3986
        %v4245 = vmul.f32 %v4181, %v3988
        %v4246 = vadd.f32 %v3799, %v4182
        %v4247 = vadd.f32 %v3801, %v4183
        %v4248 = vadd.f32 %v3912, %v4184
        %v4249 = vadd.f32 %v3914, %v4185
        %v4250 = vadd.f32 %v3803, %v4186
        %v4251 = vadd.f32 %v3805, %v4187
        %v4252 = vadd.f32 %v3916, %v4188
        %v4253 = vadd.f32 %v3918, %v4189
        %v4254 = vadd.f32 %v3809, %v4190
        %v4255 = vadd.f32 %v3811, %v4191
        %v4256 = vadd.f32 %v3922, %v4192
        %v4257 = vadd.f32 %v3924, %v4193
        %v4258 = vadd.f32 %v3813, %v4194
        %v4259 = vadd.f32 %v3815, %v4195
        %v4260 = vadd.f32 %v3926, %v4196
        %v4261 = vadd.f32 %v3928, %v4197
        %v4262 = vadd.f32 %v3819, %v4198
        %v4263 = vadd.f32 %v3821, %v4199
        %v4264 = vadd.f32 %v3932, %v4200
        %v4265 = vadd.f32 %v3934, %v4201
        %v4266 = vadd.f32 %v3823, %v4202
        %v4267 = vadd.f32 %v3825, %v4203
        %v4268 = vadd.f32 %v3936, %v4204
        %v4269 = vadd.f32 %v3938, %v4205
        %v4270 = vadd.f32 %v3829, %v4206
        %v4271 = vadd.f32 %v3831, %v4207
        %v4272 = vadd.f32 %v3942, %v4208
        %v4273 = vadd.f32 %v3944, %v4209
        %v4274 = vadd.f32 %v3833, %v4210
        %v4275 = vadd.f32 %v3835, %v4211
        %v4276 = vadd.f32 %v3946, %v4212
        %v4277 = vadd.f32 %v3948, %v4213
        %v4278 = vadd.f32 %v3839, %v4214
        %v4279 = vadd.f32 %v3841, %v4215
        %v4280 = vadd.f32 %v3952, %v4216
        %v4281 = vadd.f32 %v3954, %v4217
        %v4282 = vadd.f32 %v3843, %v4218
        %v4283 = vadd.f32 %v3845, %v4219
        %v4284 = vadd.f32 %v3956, %v4220
        %v4285 = vadd.f32 %v3958, %v4221
        %v4286 = vadd.f32 %v3849, %v4222
        %v4287 = vadd.f32 %v3851, %v4223
        %v4288 = vadd.f32 %v3962, %v4224
        %v4289 = vadd.f32 %v3964, %v4225
        %v4290 = vadd.f32 %v3853, %v4226
        %v4291 = vadd.f32 %v3855, %v4227
        %v4292 = vadd.f32 %v3966, %v4228
        %v4293 = vadd.f32 %v3968, %v4229
        %v4294 = vadd.f32 %v3859, %v4230
        %v4295 = vadd.f32 %v3861, %v4231
        %v4296 = vadd.f32 %v3972, %v4232
        %v4297 = vadd.f32 %v3974, %v4233
        %v4298 = vadd.f32 %v3863, %v4234
        %v4299 = vadd.f32 %v3865, %v4235
        %v4300 = vadd.f32 %v3976, %v4236
        %v4301 = vadd.f32 %v3978, %v4237
        %v4302 = vadd.f32 %v3869, %v4238
        %v4303 = vadd.f32 %v3871, %v4239
        %v4304 = vadd.f32 %v3982, %v4240
        %v4305 = vadd.f32 %v3984, %v4241
        %v4306 = vadd.f32 %v3873, %v4242
        %v4307 = vadd.f32 %v3875, %v4243
        %v4308 = vadd.f32 %v3986, %v4244
        %v4309 = vadd.f32 %v3988, %v4245
        %v4310 = vmul.f32 %v4246, 0.7978846
        %v4311 = vmul.f32 %v4247, 0.7978846
        %v4312 = vmul.f32 %v4248, 0.7978846
        %v4313 = vmul.f32 %v4249, 0.7978846
        %v4314 = vmul.f32 %v4250, 0.7978846
        %v4315 = vmul.f32 %v4251, 0.7978846
        %v4316 = vmul.f32 %v4252, 0.7978846
        %v4317 = vmul.f32 %v4253, 0.7978846
        %v4318 = vmul.f32 %v4254, 0.7978846
        %v4319 = vmul.f32 %v4255, 0.7978846
        %v4320 = vmul.f32 %v4256, 0.7978846
        %v4321 = vmul.f32 %v4257, 0.7978846
        %v4322 = vmul.f32 %v4258, 0.7978846
        %v4323 = vmul.f32 %v4259, 0.7978846
        %v4324 = vmul.f32 %v4260, 0.7978846
        %v4325 = vmul.f32 %v4261, 0.7978846
        %v4326 = vmul.f32 %v4262, 0.7978846
        %v4327 = vmul.f32 %v4263, 0.7978846
        %v4328 = vmul.f32 %v4264, 0.7978846
        %v4329 = vmul.f32 %v4265, 0.7978846
        %v4330 = vmul.f32 %v4266, 0.7978846
        %v4331 = vmul.f32 %v4267, 0.7978846
        %v4332 = vmul.f32 %v4268, 0.7978846
        %v4333 = vmul.f32 %v4269, 0.7978846
        %v4334 = vmul.f32 %v4270, 0.7978846
        %v4335 = vmul.f32 %v4271, 0.7978846
        %v4336 = vmul.f32 %v4272, 0.7978846
        %v4337 = vmul.f32 %v4273, 0.7978846
        %v4338 = vmul.f32 %v4274, 0.7978846
        %v4339 = vmul.f32 %v4275, 0.7978846
        %v4340 = vmul.f32 %v4276, 0.7978846
        %v4341 = vmul.f32 %v4277, 0.7978846
        %v4342 = vmul.f32 %v4278, 0.7978846
        %v4343 = vmul.f32 %v4279, 0.7978846
        %v4344 = vmul.f32 %v4280, 0.7978846
        %v4345 = vmul.f32 %v4281, 0.7978846
        %v4346 = vmul.f32 %v4282, 0.7978846
        %v4347 = vmul.f32 %v4283, 0.7978846
        %v4348 = vmul.f32 %v4284, 0.7978846
        %v4349 = vmul.f32 %v4285, 0.7978846
        %v4350 = vmul.f32 %v4286, 0.7978846
        %v4351 = vmul.f32 %v4287, 0.7978846
        %v4352 = vmul.f32 %v4288, 0.7978846
        %v4353 = vmul.f32 %v4289, 0.7978846
        %v4354 = vmul.f32 %v4290, 0.7978846
        %v4355 = vmul.f32 %v4291, 0.7978846
        %v4356 = vmul.f32 %v4292, 0.7978846
        %v4357 = vmul.f32 %v4293, 0.7978846
        %v4358 = vmul.f32 %v4294, 0.7978846
        %v4359 = vmul.f32 %v4295, 0.7978846
        %v4360 = vmul.f32 %v4296, 0.7978846
        %v4361 = vmul.f32 %v4297, 0.7978846
        %v4362 = vmul.f32 %v4298, 0.7978846
        %v4363 = vmul.f32 %v4299, 0.7978846
        %v4364 = vmul.f32 %v4300, 0.7978846
        %v4365 = vmul.f32 %v4301, 0.7978846
        %v4366 = vmul.f32 %v4302, 0.7978846
        %v4367 = vmul.f32 %v4303, 0.7978846
        %v4368 = vmul.f32 %v4304, 0.7978846
        %v4369 = vmul.f32 %v4305, 0.7978846
        %v4370 = vmul.f32 %v4306, 0.7978846
        %v4371 = vmul.f32 %v4307, 0.7978846
        %v4372 = vmul.f32 %v4308, 0.7978846
        %v4373 = vmul.f32 %v4309, 0.7978846
        %v4374 = vtanh.pop %v4310
        %v4375 = vtanh.pop %v4311
        %v4376 = vtanh.pop %v4312
        %v4377 = vtanh.pop %v4313
        %v4378 = vtanh.pop %v4314
        %v4379 = vtanh.pop %v4315
        %v4380 = vtanh.pop %v4316
        %v4381 = vtanh.pop %v4317
        %v4382 = vtanh.pop %v4318
        %v4383 = vtanh.pop %v4319
        %v4384 = vtanh.pop %v4320
        %v4385 = vtanh.pop %v4321
        %v4386 = vtanh.pop %v4322
        %v4387 = vtanh.pop %v4323
        %v4388 = vtanh.pop %v4324
        %v4389 = vtanh.pop %v4325
        %v4390 = vtanh.pop %v4326
        %v4391 = vtanh.pop %v4327
        %v4392 = vtanh.pop %v4328
        %v4393 = vtanh.pop %v4329
        %v4394 = vtanh.pop %v4330
        %v4395 = vtanh.pop %v4331
        %v4396 = vtanh.pop %v4332
        %v4397 = vtanh.pop %v4333
        %v4398 = vtanh.pop %v4334
        %v4399 = vtanh.pop %v4335
        %v4400 = vtanh.pop %v4336
        %v4401 = vtanh.pop %v4337
        %v4402 = vtanh.pop %v4338
        %v4403 = vtanh.pop %v4339
        %v4404 = vtanh.pop %v4340
        %v4405 = vtanh.pop %v4341
        %v4406 = vtanh.pop %v4342
        %v4407 = vtanh.pop %v4343
        %v4408 = vtanh.pop %v4344
        %v4409 = vtanh.pop %v4345
        %v4410 = vtanh.pop %v4346
        %v4411 = vtanh.pop %v4347
        %v4412 = vtanh.pop %v4348
        %v4413 = vtanh.pop %v4349
        %v4414 = vtanh.pop %v4350
        %v4415 = vtanh.pop %v4351
        %v4416 = vtanh.pop %v4352
        %v4417 = vtanh.pop %v4353
        %v4418 = vtanh.pop %v4354
        %v4419 = vtanh.pop %v4355
        %v4420 = vtanh.pop %v4356
        %v4421 = vtanh.pop %v4357
        %v4422 = vtanh.pop %v4358
        %v4423 = vtanh.pop %v4359
        %v4424 = vtanh.pop %v4360
        %v4425 = vtanh.pop %v4361
        %v4426 = vtanh.pop %v4362
        %v4427 = vtanh.pop %v4363
        %v4428 = vtanh.pop %v4364
        %v4429 = vtanh.pop %v4365
        %v4430 = vtanh.pop %v4366
        %v4431 = vtanh.pop %v4367
        %v4432 = vtanh.pop %v4368
        %v4433 = vtanh.pop %v4369
        %v4434 = vtanh.pop %v4370
        %v4435 = vtanh.pop %v4371
        %v4436 = vtanh.pop %v4372
        %v4437 = vtanh.pop %v4373
        %v4438 = vadd.f32 %v4374, 1.0
        %v4439 = vadd.f32 %v4375, 1.0
        %v4440 = vadd.f32 %v4376, 1.0
        %v4441 = vadd.f32 %v4377, 1.0
        %v4442 = vadd.f32 %v4378, 1.0
        %v4443 = vadd.f32 %v4379, 1.0
        %v4444 = vadd.f32 %v4380, 1.0
        %v4445 = vadd.f32 %v4381, 1.0
        %v4446 = vadd.f32 %v4382, 1.0
        %v4447 = vadd.f32 %v4383, 1.0
        %v4448 = vadd.f32 %v4384, 1.0
        %v4449 = vadd.f32 %v4385, 1.0
        %v4450 = vadd.f32 %v4386, 1.0
        %v4451 = vadd.f32 %v4387, 1.0
        %v4452 = vadd.f32 %v4388, 1.0
        %v4453 = vadd.f32 %v4389, 1.0
        %v4454 = vadd.f32 %v4390, 1.0
        %v4455 = vadd.f32 %v4391, 1.0
        %v4456 = vadd.f32 %v4392, 1.0
        %v4457 = vadd.f32 %v4393, 1.0
        %v4458 = vadd.f32 %v4394, 1.0
        %v4459 = vadd.f32 %v4395, 1.0
        %v4460 = vadd.f32 %v4396, 1.0
        %v4461 = vadd.f32 %v4397, 1.0
        %v4462 = vadd.f32 %v4398, 1.0
        %v4463 = vadd.f32 %v4399, 1.0
        %v4464 = vadd.f32 %v4400, 1.0
        %v4465 = vadd.f32 %v4401, 1.0
        %v4466 = vadd.f32 %v4402, 1.0
        %v4467 = vadd.f32 %v4403, 1.0
        %v4468 = vadd.f32 %v4404, 1.0
        %v4469 = vadd.f32 %v4405, 1.0
        %v4470 = vadd.f32 %v4406, 1.0
        %v4471 = vadd.f32 %v4407, 1.0
        %v4472 = vadd.f32 %v4408, 1.0
        %v4473 = vadd.f32 %v4409, 1.0
        %v4474 = vadd.f32 %v4410, 1.0
        %v4475 = vadd.f32 %v4411, 1.0
        %v4476 = vadd.f32 %v4412, 1.0
        %v4477 = vadd.f32 %v4413, 1.0
        %v4478 = vadd.f32 %v4414, 1.0
        %v4479 = vadd.f32 %v4415, 1.0
        %v4480 = vadd.f32 %v4416, 1.0
        %v4481 = vadd.f32 %v4417, 1.0
        %v4482 = vadd.f32 %v4418, 1.0
        %v4483 = vadd.f32 %v4419, 1.0
        %v4484 = vadd.f32 %v4420, 1.0
        %v4485 = vadd.f32 %v4421, 1.0
        %v4486 = vadd.f32 %v4422, 1.0
        %v4487 = vadd.f32 %v4423, 1.0
        %v4488 = vadd.f32 %v4424, 1.0
        %v4489 = vadd.f32 %v4425, 1.0
        %v4490 = vadd.f32 %v4426, 1.0
        %v4491 = vadd.f32 %v4427, 1.0
        %v4492 = vadd.f32 %v4428, 1.0
        %v4493 = vadd.f32 %v4429, 1.0
        %v4494 = vadd.f32 %v4430, 1.0
        %v4495 = vadd.f32 %v4431, 1.0
        %v4496 = vadd.f32 %v4432, 1.0
        %v4497 = vadd.f32 %v4433, 1.0
        %v4498 = vadd.f32 %v4434, 1.0
        %v4499 = vadd.f32 %v4435, 1.0
        %v4500 = vadd.f32 %v4436, 1.0
        %v4501 = vadd.f32 %v4437, 1.0
        %v4502 = vmul.f32 %v3990, %v4438
        %v4503 = vmul.f32 %v3991, %v4439
        %v4504 = vmul.f32 %v3992, %v4440
        %v4505 = vmul.f32 %v3993, %v4441
        %v4506 = vmul.f32 %v3994, %v4442
        %v4507 = vmul.f32 %v3995, %v4443
        %v4508 = vmul.f32 %v3996, %v4444
        %v4509 = vmul.f32 %v3997, %v4445
        %v4510 = vmul.f32 %v3998, %v4446
        %v4511 = vmul.f32 %v3999, %v4447
        %v4512 = vmul.f32 %v4000, %v4448
        %v4513 = vmul.f32 %v4001, %v4449
        %v4514 = vmul.f32 %v4002, %v4450
        %v4515 = vmul.f32 %v4003, %v4451
        %v4516 = vmul.f32 %v4004, %v4452
        %v4517 = vmul.f32 %v4005, %v4453
        %v4518 = vmul.f32 %v4006, %v4454
        %v4519 = vmul.f32 %v4007, %v4455
        %v4520 = vmul.f32 %v4008, %v4456
        %v4521 = vmul.f32 %v4009, %v4457
        %v4522 = vmul.f32 %v4010, %v4458
        %v4523 = vmul.f32 %v4011, %v4459
        %v4524 = vmul.f32 %v4012, %v4460
        %v4525 = vmul.f32 %v4013, %v4461
        %v4526 = vmul.f32 %v4014, %v4462
        %v4527 = vmul.f32 %v4015, %v4463
        %v4528 = vmul.f32 %v4016, %v4464
        %v4529 = vmul.f32 %v4017, %v4465
        %v4530 = vmul.f32 %v4018, %v4466
        %v4531 = vmul.f32 %v4019, %v4467
        %v4532 = vmul.f32 %v4020, %v4468
        %v4533 = vmul.f32 %v4021, %v4469
        %v4534 = vmul.f32 %v4022, %v4470
        %v4535 = vmul.f32 %v4023, %v4471
        %v4536 = vmul.f32 %v4024, %v4472
        %v4537 = vmul.f32 %v4025, %v4473
        %v4538 = vmul.f32 %v4026, %v4474
        %v4539 = vmul.f32 %v4027, %v4475
        %v4540 = vmul.f32 %v4028, %v4476
        %v4541 = vmul.f32 %v4029, %v4477
        %v4542 = vmul.f32 %v4030, %v4478
        %v4543 = vmul.f32 %v4031, %v4479
        %v4544 = vmul.f32 %v4032, %v4480
        %v4545 = vmul.f32 %v4033, %v4481
        %v4546 = vmul.f32 %v4034, %v4482
        %v4547 = vmul.f32 %v4035, %v4483
        %v4548 = vmul.f32 %v4036, %v4484
        %v4549 = vmul.f32 %v4037, %v4485
        %v4550 = vmul.f32 %v4038, %v4486
        %v4551 = vmul.f32 %v4039, %v4487
        %v4552 = vmul.f32 %v4040, %v4488
        %v4553 = vmul.f32 %v4041, %v4489
        %v4554 = vmul.f32 %v4042, %v4490
        %v4555 = vmul.f32 %v4043, %v4491
        %v4556 = vmul.f32 %v4044, %v4492
        %v4557 = vmul.f32 %v4045, %v4493
        %v4558 = vmul.f32 %v4046, %v4494
        %v4559 = vmul.f32 %v4047, %v4495
        %v4560 = vmul.f32 %v4048, %v4496
        %v4561 = vmul.f32 %v4049, %v4497
        %v4562 = vmul.f32 %v4050, %v4498
        %v4563 = vmul.f32 %v4051, %v4499
        %v4564 = vmul.f32 %v4052, %v4500
        %v4565 = vmul.f32 %v4053, %v4501
        %v4566 = vpack.c.bf16 %v4506, %v4502
        %v4567 = vpack.c.bf16 %v4507, %v4503
        %v4568 = vpack.c.bf16 %v4508, %v4504
        %v4569 = vpack.c.bf16 %v4509, %v4505
        %v4570 = vpack.c.bf16 %v4514, %v4510
        %v4571 = vpack.c.bf16 %v4515, %v4511
        %v4572 = vpack.c.bf16 %v4516, %v4512
        %v4573 = vpack.c.bf16 %v4517, %v4513
        %v4574 = vpack.c.bf16 %v4522, %v4518
        %v4575 = vpack.c.bf16 %v4523, %v4519
        %v4576 = vpack.c.bf16 %v4524, %v4520
        %v4577 = vpack.c.bf16 %v4525, %v4521
        %v4578 = vpack.c.bf16 %v4530, %v4526
        %v4579 = vpack.c.bf16 %v4531, %v4527
        %v4580 = vpack.c.bf16 %v4532, %v4528
        %v4581 = vpack.c.bf16 %v4533, %v4529
        %v4582 = vpack.c.bf16 %v4538, %v4534
        %v4583 = vpack.c.bf16 %v4539, %v4535
        %v4584 = vpack.c.bf16 %v4540, %v4536
        %v4585 = vpack.c.bf16 %v4541, %v4537
        %v4586 = vpack.c.bf16 %v4546, %v4542
        %v4587 = vpack.c.bf16 %v4547, %v4543
        %v4588 = vpack.c.bf16 %v4548, %v4544
        %v4589 = vpack.c.bf16 %v4549, %v4545
        %v4590 = vpack.c.bf16 %v4554, %v4550
        %v4591 = vpack.c.bf16 %v4555, %v4551
        %v4592 = vpack.c.bf16 %v4556, %v4552
        %v4593 = vpack.c.bf16 %v4557, %v4553
        %v4594 = vpack.c.bf16 %v4562, %v4558
        %v4595 = vpack.c.bf16 %v4563, %v4559
        %v4596 = vpack.c.bf16 %v4564, %v4560
        %v4597 = vpack.c.bf16 %v4565, %v4561
        %v4598 = vld [vmem:[%s532] sm:$0xf]
        %v4599 = vld [vmem:[%s532 + $0x4] sm:$0xf]
        %v4600 = vld [vmem:[%s532 + $0x8] sm:$0xf]
        %v4601 = vld [vmem:[%s532 + $0xc] sm:$0xf]
        %v4602 = vld [vmem:[%s532 + $0x10] sm:$0xf]
        %v4603 = vld [vmem:[%s532 + $0x14] sm:$0xf]
        %v4604 = vld [vmem:[%s532 + $0x18] sm:$0xf]
        %v4605 = vld [vmem:[%s532 + $0x1c] sm:$0xf]
        %v4606 = vld [vmem:[%s532 + $0x20] sm:$0xf]
        %v4607 = vld [vmem:[%s532 + $0x24] sm:$0xf]
        %v4608 = vld [vmem:[%s532 + $0x28] sm:$0xf]
        %v4609 = vld [vmem:[%s532 + $0x2c] sm:$0xf]
        %v4610 = vld [vmem:[%s532 + $0x30] sm:$0xf]
        %v4611 = vld [vmem:[%s532 + $0x34] sm:$0xf]
        %v4612 = vld [vmem:[%s532 + $0x38] sm:$0xf]
        %v4613 = vld [vmem:[%s532 + $0x3c] sm:$0xf]
        %v4614 = vld [vmem:[%s532 + $0x40] sm:$0xf]
        %v4615 = vld [vmem:[%s532 + $0x44] sm:$0xf]
        %v4616 = vld [vmem:[%s532 + $0x48] sm:$0xf]
        %v4617 = vld [vmem:[%s532 + $0x4c] sm:$0xf]
        %v4618 = vld [vmem:[%s532 + $0x50] sm:$0xf]
        %v4619 = vld [vmem:[%s532 + $0x54] sm:$0xf]
        %v4620 = vld [vmem:[%s532 + $0x58] sm:$0xf]
        %v4621 = vld [vmem:[%s532 + $0x5c] sm:$0xf]
        %v4622 = vld [vmem:[%s532 + $0x60] sm:$0xf]
        %v4623 = vld [vmem:[%s532 + $0x64] sm:$0xf]
        %v4624 = vld [vmem:[%s532 + $0x68] sm:$0xf]
        %v4625 = vld [vmem:[%s532 + $0x6c] sm:$0xf]
        %v4626 = vld [vmem:[%s532 + $0x70] sm:$0xf]
        %v4627 = vld [vmem:[%s532 + $0x74] sm:$0xf]
        %v4628 = vld [vmem:[%s532 + $0x78] sm:$0xf]
        %v4629 = vld [vmem:[%s532 + $0x7c] sm:$0xf]
        %v4630 = vld [vmem:[%s532 + $0x80] sm:$0xf]
        %v4631 = vld [vmem:[%s532 + $0x84] sm:$0xf]
        %v4632 = vld [vmem:[%s532 + $0x88] sm:$0xf]
        %v4633 = vld [vmem:[%s532 + $0x8c] sm:$0xf]
        %v4634 = vld [vmem:[%s532 + $0x90] sm:$0xf]
        %v4635 = vld [vmem:[%s532 + $0x94] sm:$0xf]
        %v4636 = vld [vmem:[%s532 + $0x98] sm:$0xf]
        %v4637 = vld [vmem:[%s532 + $0x9c] sm:$0xf]
        %v4638 = vld [vmem:[%s532 + $0xa0] sm:$0xf]
        %v4639 = vld [vmem:[%s532 + $0xa4] sm:$0xf]
        %v4640 = vld [vmem:[%s532 + $0xa8] sm:$0xf]
        %v4641 = vld [vmem:[%s532 + $0xac] sm:$0xf]
        %v4642 = vld [vmem:[%s532 + $0xb0] sm:$0xf]
        %v4643 = vld [vmem:[%s532 + $0xb4] sm:$0xf]
        %v4644 = vld [vmem:[%s532 + $0xb8] sm:$0xf]
        %v4645 = vld [vmem:[%s532 + $0xbc] sm:$0xf]
        %v4646 = vld [vmem:[%s532 + $0xc0] sm:$0xf]
        %v4647 = vld [vmem:[%s532 + $0xc4] sm:$0xf]
        %v4648 = vld [vmem:[%s532 + $0xc8] sm:$0xf]
        %v4649 = vld [vmem:[%s532 + $0xcc] sm:$0xf]
        %v4650 = vld [vmem:[%s532 + $0xd0] sm:$0xf]
        %v4651 = vld [vmem:[%s532 + $0xd4] sm:$0xf]
        %v4652 = vld [vmem:[%s532 + $0xd8] sm:$0xf]
        %v4653 = vld [vmem:[%s532 + $0xdc] sm:$0xf]
        %v4654 = vld [vmem:[%s532 + $0xe0] sm:$0xf]
        %v4655 = vld [vmem:[%s532 + $0xe4] sm:$0xf]
        %v4656 = vld [vmem:[%s532 + $0xe8] sm:$0xf]
        %v4657 = vld [vmem:[%s532 + $0xec] sm:$0xf]
        %v4658 = vld [vmem:[%s532 + $0xf0] sm:$0xf]
        %v4659 = vld [vmem:[%s532 + $0xf4] sm:$0xf]
        %v4660 = vld [vmem:[%s532 + $0xf8] sm:$0xf]
        %v4661 = vld [vmem:[%s532 + $0xfc] sm:$0xf]
        %v4662 = vlaneseq
        %v4663 = vshrl.u32 %v4662, 7
        %v4664 = vsub.s32 5, %v4663
        %v4665 = vrot.slane %v672, %v4664
        %v4730 = vunpack.c.l.b16 %v4598
        %v4731 = vunpack.c.l.b16 %v4599
        %v4732 = vunpack.c.l.b16 %v4600
        %v4733 = vunpack.c.l.b16 %v4601
        %v4734 = vunpack.c.l.b16 %v4602
        %v4735 = vunpack.c.l.b16 %v4603
        %v4736 = vunpack.c.l.b16 %v4604
        %v4737 = vunpack.c.l.b16 %v4605
        %v4738 = vunpack.c.l.b16 %v4606
        %v4739 = vunpack.c.l.b16 %v4607
        %v4740 = vunpack.c.l.b16 %v4608
        %v4741 = vunpack.c.l.b16 %v4609
        %v4742 = vunpack.c.l.b16 %v4610
        %v4743 = vunpack.c.l.b16 %v4611
        %v4744 = vunpack.c.l.b16 %v4612
        %v4745 = vunpack.c.l.b16 %v4613
        %v4746 = vunpack.c.l.b16 %v4614
        %v4747 = vunpack.c.l.b16 %v4615
        %v4748 = vunpack.c.l.b16 %v4616
        %v4749 = vunpack.c.l.b16 %v4617
        %v4750 = vunpack.c.l.b16 %v4618
        %v4751 = vunpack.c.l.b16 %v4619
        %v4752 = vunpack.c.l.b16 %v4620
        %v4753 = vunpack.c.l.b16 %v4621
        %v4754 = vunpack.c.l.b16 %v4622
        %v4755 = vunpack.c.l.b16 %v4623
        %v4756 = vunpack.c.l.b16 %v4624
        %v4757 = vunpack.c.l.b16 %v4625
        %v4758 = vunpack.c.l.b16 %v4626
        %v4759 = vunpack.c.l.b16 %v4627
        %v4760 = vunpack.c.l.b16 %v4628
        %v4761 = vunpack.c.l.b16 %v4629
        %v4762 = vunpack.c.l.b16 %v4630
        %v4763 = vunpack.c.l.b16 %v4631
        %v4764 = vunpack.c.l.b16 %v4632
        %v4765 = vunpack.c.l.b16 %v4633
        %v4766 = vunpack.c.l.b16 %v4634
        %v4767 = vunpack.c.l.b16 %v4635
        %v4768 = vunpack.c.l.b16 %v4636
        %v4769 = vunpack.c.l.b16 %v4637
        %v4770 = vunpack.c.l.b16 %v4638
        %v4771 = vunpack.c.l.b16 %v4639
        %v4772 = vunpack.c.l.b16 %v4640
        %v4773 = vunpack.c.l.b16 %v4641
        %v4774 = vunpack.c.l.b16 %v4642
        %v4775 = vunpack.c.l.b16 %v4643
        %v4776 = vunpack.c.l.b16 %v4644
        %v4777 = vunpack.c.l.b16 %v4645
        %v4778 = vunpack.c.l.b16 %v4646
        %v4779 = vunpack.c.l.b16 %v4647
        %v4780 = vunpack.c.l.b16 %v4648
        %v4781 = vunpack.c.l.b16 %v4649
        %v4782 = vunpack.c.l.b16 %v4650
        %v4783 = vunpack.c.l.b16 %v4651
        %v4784 = vunpack.c.l.b16 %v4652
        %v4785 = vunpack.c.l.b16 %v4653
        %v4786 = vunpack.c.l.b16 %v4654
        %v4787 = vunpack.c.l.b16 %v4655
        %v4788 = vunpack.c.l.b16 %v4656
        %v4789 = vunpack.c.l.b16 %v4657
        %v4790 = vunpack.c.l.b16 %v4658
        %v4791 = vunpack.c.l.b16 %v4659
        %v4792 = vunpack.c.l.b16 %v4660
        %v4793 = vunpack.c.l.b16 %v4661
        %v4794 = vpack.c.b16 %v4731, %v4730
        %v4795 = vpack.c.b16 %v4733, %v4732
        %v4796 = vpack.c.b16 %v4735, %v4734
        %v4797 = vpack.c.b16 %v4737, %v4736
        %v4798 = vpack.c.b16 %v4739, %v4738
        %v4799 = vpack.c.b16 %v4741, %v4740
        %v4800 = vpack.c.b16 %v4743, %v4742
        %v4801 = vpack.c.b16 %v4745, %v4744
        %v4802 = vpack.c.b16 %v4747, %v4746
        %v4803 = vpack.c.b16 %v4749, %v4748
        %v4804 = vpack.c.b16 %v4751, %v4750
        %v4805 = vpack.c.b16 %v4753, %v4752
        %v4806 = vpack.c.b16 %v4755, %v4754
        %v4807 = vpack.c.b16 %v4757, %v4756
        %v4808 = vpack.c.b16 %v4759, %v4758
        %v4809 = vpack.c.b16 %v4761, %v4760
        %v4810 = vpack.c.b16 %v4763, %v4762
        %v4811 = vpack.c.b16 %v4765, %v4764
        %v4812 = vpack.c.b16 %v4767, %v4766
        %v4813 = vpack.c.b16 %v4769, %v4768
        %v4814 = vpack.c.b16 %v4771, %v4770
        %v4815 = vpack.c.b16 %v4773, %v4772
        %v4816 = vpack.c.b16 %v4775, %v4774
        %v4817 = vpack.c.b16 %v4777, %v4776
        %v4818 = vpack.c.b16 %v4779, %v4778
        %v4819 = vpack.c.b16 %v4781, %v4780
        %v4820 = vpack.c.b16 %v4783, %v4782
        %v4821 = vpack.c.b16 %v4785, %v4784
        %v4822 = vpack.c.b16 %v4787, %v4786
        %v4823 = vpack.c.b16 %v4789, %v4788
        %v4824 = vpack.c.b16 %v4791, %v4790
        %v4825 = vpack.c.b16 %v4793, %v4792
        %4858 = vmatprep.subr.bf16.mxu0 0
        %4859 = vmatpush1.bf16.msra.mxu0 %v4794
        %4860 = vmatprep.subr.bf16.mxu0 0
        %4861 = vmatpush1.bf16.msra.mxu0 %v4795
        %4862 = vmatprep.subr.bf16.mxu0 0
        %4863 = vmatpush1.bf16.msra.mxu0 %v4796
        %4864 = vmatprep.subr.bf16.mxu0 0
        %4865 = vmatpush1.bf16.msra.mxu0 %v4797
        %4866 = vmatprep.subr.bf16.mxu0 0
        %4867 = vmatpush1.bf16.msra.mxu0 %v4798
        %4868 = vmatprep.subr.bf16.mxu0 0
        %4869 = vmatpush1.bf16.msra.mxu0 %v4799
        %4870 = vmatprep.subr.bf16.mxu0 0
        %4871 = vmatpush1.bf16.msra.mxu0 %v4800
        %4872 = vmatprep.subr.bf16.mxu0 0
        %4873 = vmatpush1.bf16.msra.mxu0 %v4801
        %4874 = vmatprep.subr.bf16.mxu0 0
        %4875 = vmatpush1.bf16.msra.mxu0 %v4802
        %4876 = vmatprep.subr.bf16.mxu0 0
        %4877 = vmatpush1.bf16.msra.mxu0 %v4803
        %4878 = vmatprep.subr.bf16.mxu0 0
        %4879 = vmatpush1.bf16.msra.mxu0 %v4804
        %4880 = vmatprep.subr.bf16.mxu0 0
        %4881 = vmatpush1.bf16.msra.mxu0 %v4805
        %4882 = vmatprep.subr.bf16.mxu0 0
        %4883 = vmatpush1.bf16.msra.mxu0 %v4806
        %4884 = vmatprep.subr.bf16.mxu0 0
        %4885 = vmatpush1.bf16.msra.mxu0 %v4807
        %4886 = vmatprep.subr.bf16.mxu0 0
        %4887 = vmatpush1.bf16.msra.mxu0 %v4808
        %4888 = vmatprep.subr.bf16.mxu0 0
        %4889 = vmatpush1.bf16.msra.mxu0 %v4809
        %4890 = vmatprep.mubr.bf16.mxu0 %v4567
        %4891 = vmatmul.mubr.bf16.gmra.mrb[0].mxu0 %v4566
        %v4892 = vpop.f32.mrb[0].mxu0
        %v4893 = vadd.f32 %v4665, %v4892
        %v4894 = vpop.f32.mrb[0].mxu0
        %v4895 = vpop.f32.mrb[0].mxu0
        %v4896 = vadd.f32 %v4665, %v4895
        %v4897 = vpop.f32.mrb[0].mxu0
        %4898 = vmatprep.mubr.bf16.mxu0 %v4571
        %4899 = vmatmul.mubr.bf16.gmra.mrb[0].mxu0 %v4570
        %v4900 = vpop.f32.mrb[0].mxu0
        %v4901 = vadd.f32 %v4665, %v4900
        %v4902 = vpop.f32.mrb[0].mxu0
        %v4903 = vpop.f32.mrb[0].mxu0
        %v4904 = vadd.f32 %v4665, %v4903
        %v4905 = vpop.f32.mrb[0].mxu0
        %4906 = vmatprep.mubr.bf16.mxu0 %v4575
        %4907 = vmatmul.mubr.bf16.gmra.mrb[0].mxu0 %v4574
        %v4908 = vpop.f32.mrb[0].mxu0
        %v4909 = vadd.f32 %v4665, %v4908
        %v4910 = vpop.f32.mrb[0].mxu0
        %v4911 = vpop.f32.mrb[0].mxu0
        %v4912 = vadd.f32 %v4665, %v4911
        %v4913 = vpop.f32.mrb[0].mxu0
        %4914 = vmatprep.mubr.bf16.mxu0 %v4579
        %4915 = vmatmul.mubr.bf16.gmra.mrb[0].mxu0 %v4578
        %v4916 = vpop.f32.mrb[0].mxu0
        %v4917 = vadd.f32 %v4665, %v4916
        %v4918 = vpop.f32.mrb[0].mxu0
        %v4919 = vpop.f32.mrb[0].mxu0
        %v4920 = vadd.f32 %v4665, %v4919
        %v4921 = vpop.f32.mrb[0].mxu0
        %4922 = vmatprep.mubr.bf16.mxu0 %v4583
        %4923 = vmatmul.mubr.bf16.gmra.mrb[0].mxu0 %v4582
        %v4924 = vpop.f32.mrb[0].mxu0
        %v4925 = vadd.f32 %v4665, %v4924
        %v4926 = vpop.f32.mrb[0].mxu0
        %v4927 = vpop.f32.mrb[0].mxu0
        %v4928 = vadd.f32 %v4665, %v4927
        %v4929 = vpop.f32.mrb[0].mxu0
        %4930 = vmatprep.mubr.bf16.mxu0 %v4587
        %4931 = vmatmul.mubr.bf16.gmra.mrb[0].mxu0 %v4586
        %v4932 = vpop.f32.mrb[0].mxu0
        %v4933 = vadd.f32 %v4665, %v4932
        %v4934 = vpop.f32.mrb[0].mxu0
        %v4935 = vpop.f32.mrb[0].mxu0
        %v4936 = vadd.f32 %v4665, %v4935
        %v4937 = vpop.f32.mrb[0].mxu0
        %4938 = vmatprep.mubr.bf16.mxu0 %v4591
        %4939 = vmatmul.mubr.bf16.gmra.mrb[0].mxu0 %v4590
        %v4940 = vpop.f32.mrb[0].mxu0
        %v4941 = vadd.f32 %v4665, %v4940
        %v4942 = vpop.f32.mrb[0].mxu0
        %v4943 = vpop.f32.mrb[0].mxu0
        %v4944 = vadd.f32 %v4665, %v4943
        %v4945 = vpop.f32.mrb[0].mxu0
        %4946 = vmatprep.mubr.bf16.mxu0 %v4595
        %4947 = vmatmul.mubr.bf16.gmra.mrb[0].mxu0 %v4594
        %v4948 = vpop.f32.mrb[0].mxu0
        %v4949 = vadd.f32 %v4665, %v4948
        %v4950 = vpop.f32.mrb[0].mxu0
        %v4951 = vpop.f32.mrb[0].mxu0
        %v4952 = vadd.f32 %v4665, %v4951
        %v4953 = vpop.f32.mrb[0].mxu0
        %4954 = vdwg.mxu0
        %4955 = vmatprep.subr.bf16.mxu0 0
        %4956 = vmatpush1.bf16.msra.mxu0 %v4810
        %4957 = vmatprep.subr.bf16.mxu0 0
        %4958 = vmatpush1.bf16.msra.mxu0 %v4811
        %4959 = vmatprep.subr.bf16.mxu0 0
        %4960 = vmatpush1.bf16.msra.mxu0 %v4812
        %4961 = vmatprep.subr.bf16.mxu0 0
        %4962 = vmatpush1.bf16.msra.mxu0 %v4813
        %4963 = vmatprep.subr.bf16.mxu0 0
        %4964 = vmatpush1.bf16.msra.mxu0 %v4814
        %4965 = vmatprep.subr.bf16.mxu0 0
        %4966 = vmatpush1.bf16.msra.mxu0 %v4815
        %4967 = vmatprep.subr.bf16.mxu0 0
        %4968 = vmatpush1.bf16.msra.mxu0 %v4816
        %4969 = vmatprep.subr.bf16.mxu0 0
        %4970 = vmatpush1.bf16.msra.mxu0 %v4817
        %4971 = vmatprep.subr.bf16.mxu0 0
        %4972 = vmatpush1.bf16.msra.mxu0 %v4818
        %4973 = vmatprep.subr.bf16.mxu0 0
        %4974 = vmatpush1.bf16.msra.mxu0 %v4819
        %4975 = vmatprep.subr.bf16.mxu0 0
        %4976 = vmatpush1.bf16.msra.mxu0 %v4820
        %4977 = vmatprep.subr.bf16.mxu0 0
        %4978 = vmatpush1.bf16.msra.mxu0 %v4821
        %4979 = vmatprep.subr.bf16.mxu0 0
        %4980 = vmatpush1.bf16.msra.mxu0 %v4822
        %4981 = vmatprep.subr.bf16.mxu0 0
        %4982 = vmatpush1.bf16.msra.mxu0 %v4823
        %4983 = vmatprep.subr.bf16.mxu0 0
        %4984 = vmatpush1.bf16.msra.mxu0 %v4824
        %4985 = vmatprep.subr.bf16.mxu0 0
        %4986 = vmatpush1.bf16.msra.mxu0 %v4825
        %4987 = vmatprep.mubr.bf16.mxu0 %v4569
        %4988 = vmatmul.mubr.bf16.gmra.mrb[0].mxu0 %v4568
        %v4989 = vpop.f32.mrb[0].mxu0
        %v4990 = vadd.f32 %v4893, %v4989
        %v4991 = vpop.f32.mrb[0].mxu0
        %v4992 = vpop.f32.mrb[0].mxu0
        %v4993 = vadd.f32 %v4896, %v4992
        %v4994 = vpop.f32.mrb[0].mxu0
        %4995 = vmatprep.mubr.bf16.mxu0 %v4573
        %4996 = vmatmul.mubr.bf16.gmra.mrb[0].mxu0 %v4572
        %v4997 = vpop.f32.mrb[0].mxu0
        %v4998 = vadd.f32 %v4901, %v4997
        %v4999 = vpop.f32.mrb[0].mxu0
        %v5000 = vpop.f32.mrb[0].mxu0
        %v5001 = vadd.f32 %v4904, %v5000
        %v5002 = vpop.f32.mrb[0].mxu0
        %5003 = vmatprep.mubr.bf16.mxu0 %v4577
        %5004 = vmatmul.mubr.bf16.gmra.mrb[0].mxu0 %v4576
        %v5005 = vpop.f32.mrb[0].mxu0
        %v5006 = vadd.f32 %v4909, %v5005
        %v5007 = vpop.f32.mrb[0].mxu0
        %v5008 = vpop.f32.mrb[0].mxu0
        %v5009 = vadd.f32 %v4912, %v5008
        %v5010 = vpop.f32.mrb[0].mxu0
        %5011 = vmatprep.mubr.bf16.mxu0 %v4581
        %5012 = vmatmul.mubr.bf16.gmra.mrb[0].mxu0 %v4580
        %v5013 = vpop.f32.mrb[0].mxu0
        %v5014 = vadd.f32 %v4917, %v5013
        %v5015 = vpop.f32.mrb[0].mxu0
        %v5016 = vpop.f32.mrb[0].mxu0
        %v5017 = vadd.f32 %v4920, %v5016
        %v5018 = vpop.f32.mrb[0].mxu0
        %5019 = vmatprep.mubr.bf16.mxu0 %v4585
        %5020 = vmatmul.mubr.bf16.gmra.mrb[0].mxu0 %v4584
        %v5021 = vpop.f32.mrb[0].mxu0
        %v5022 = vadd.f32 %v4925, %v5021
        %v5023 = vpop.f32.mrb[0].mxu0
        %v5024 = vpop.f32.mrb[0].mxu0
        %v5025 = vadd.f32 %v4928, %v5024
        %v5026 = vpop.f32.mrb[0].mxu0
        %5027 = vmatprep.mubr.bf16.mxu0 %v4589
        %5028 = vmatmul.mubr.bf16.gmra.mrb[0].mxu0 %v4588
        %v5029 = vpop.f32.mrb[0].mxu0
        %v5030 = vadd.f32 %v4933, %v5029
        %v5031 = vpop.f32.mrb[0].mxu0
        %v5032 = vpop.f32.mrb[0].mxu0
        %v5033 = vadd.f32 %v4936, %v5032
        %v5034 = vpop.f32.mrb[0].mxu0
        %5035 = vmatprep.mubr.bf16.mxu0 %v4593
        %5036 = vmatmul.mubr.bf16.gmra.mrb[0].mxu0 %v4592
        %v5037 = vpop.f32.mrb[0].mxu0
        %v5038 = vadd.f32 %v4941, %v5037
        %v5039 = vpop.f32.mrb[0].mxu0
        %v5040 = vpop.f32.mrb[0].mxu0
        %v5041 = vadd.f32 %v4944, %v5040
        %v5042 = vpop.f32.mrb[0].mxu0
        %5043 = vmatprep.mubr.bf16.mxu0 %v4597
        %5044 = vmatmul.mubr.bf16.gmra.mrb[0].mxu0 %v4596
        %v5045 = vpop.f32.mrb[0].mxu0
        %v5046 = vadd.f32 %v4949, %v5045
        %v5047 = vpop.f32.mrb[0].mxu0
        %v5048 = vpop.f32.mrb[0].mxu0
        %v5049 = vadd.f32 %v4952, %v5048
        %v5050 = vpop.f32.mrb[0].mxu0
        %5051 = vdwg.mxu0
        %v5052 = vadd.f32 %v3532, %v4990
        %v5053 = vadd.f32 %v3533, %v4993
        %v5054 = vadd.f32 %v3534, %v4998
        %v5055 = vadd.f32 %v3535, %v5001
        %v5056 = vadd.f32 %v3536, %v5006
        %v5057 = vadd.f32 %v3537, %v5009
        %v5058 = vadd.f32 %v3538, %v5014
        %v5059 = vadd.f32 %v3539, %v5017
        %v5060 = vadd.f32 %v3540, %v5022
        %v5061 = vadd.f32 %v3541, %v5025
        %v5062 = vadd.f32 %v3542, %v5030
        %v5063 = vadd.f32 %v3543, %v5033
        %v5064 = vadd.f32 %v3544, %v5038
        %v5065 = vadd.f32 %v3545, %v5041
        %v5066 = vadd.f32 %v3546, %v5046
        %v5067 = vadd.f32 %v3547, %v5049
        %5068 = vadd.xlane.f32.xlu0 %v5052
        %v5069 = vpop.xlane.xlu0 %5068
        %5070 = vadd.xlane.f32.xlu0 %v5053
        %v5071 = vpop.xlane.xlu0 %5070
        %5072 = vadd.xlane.f32.xlu0 %v5054
        %v5073 = vpop.xlane.xlu0 %5072
        %5074 = vadd.xlane.f32.xlu0 %v5055
        %v5075 = vpop.xlane.xlu0 %5074
        %5076 = vadd.xlane.f32.xlu0 %v5056
        %v5077 = vpop.xlane.xlu0 %5076
        %5078 = vadd.xlane.f32.xlu0 %v5057
        %v5079 = vpop.xlane.xlu0 %5078
        %5080 = vadd.xlane.f32.xlu0 %v5058
        %v5081 = vpop.xlane.xlu0 %5080
        %5082 = vadd.xlane.f32.xlu0 %v5059
        %v5083 = vpop.xlane.xlu0 %5082
        %5084 = vadd.xlane.f32.xlu0 %v5060
        %v5085 = vpop.xlane.xlu0 %5084
        %5086 = vadd.xlane.f32.xlu0 %v5061
        %v5087 = vpop.xlane.xlu0 %5086
        %5088 = vadd.xlane.f32.xlu0 %v5062
        %v5089 = vpop.xlane.xlu0 %5088
        %5090 = vadd.xlane.f32.xlu0 %v5063
        %v5091 = vpop.xlane.xlu0 %5090
        %5092 = vadd.xlane.f32.xlu0 %v5064
        %v5093 = vpop.xlane.xlu0 %5092
        %5094 = vadd.xlane.f32.xlu0 %v5065
        %v5095 = vpop.xlane.xlu0 %5094
        %5096 = vadd.xlane.f32.xlu0 %v5066
        %v5097 = vpop.xlane.xlu0 %5096
        %5098 = vadd.xlane.f32.xlu0 %v5067
        %v5099 = vpop.xlane.xlu0 %5098
        %v5100 = vmul.f32 %v5069, %v3363
        %v5101 = vmul.f32 %v5071, %v3363
        %v5102 = vmul.f32 %v5073, %v3363
        %v5103 = vmul.f32 %v5075, %v3363
        %v5104 = vmul.f32 %v5077, %v3363
        %v5105 = vmul.f32 %v5079, %v3363
        %v5106 = vmul.f32 %v5081, %v3363
        %v5107 = vmul.f32 %v5083, %v3363
        %v5108 = vmul.f32 %v5085, %v3363
        %v5109 = vmul.f32 %v5087, %v3363
        %v5110 = vmul.f32 %v5089, %v3363
        %v5111 = vmul.f32 %v5091, %v3363
        %v5112 = vmul.f32 %v5093, %v3363
        %v5113 = vmul.f32 %v5095, %v3363
        %v5114 = vmul.f32 %v5097, %v3363
        %v5115 = vmul.f32 %v5099, %v3363
        %v5116 = vsub.f32 %v5052, %v5100
        %v5117 = vsub.f32 %v5053, %v5101
        %v5118 = vsub.f32 %v5054, %v5102
        %v5119 = vsub.f32 %v5055, %v5103
        %v5120 = vsub.f32 %v5056, %v5104
        %v5121 = vsub.f32 %v5057, %v5105
        %v5122 = vsub.f32 %v5058, %v5106
        %v5123 = vsub.f32 %v5059, %v5107
        %v5124 = vsub.f32 %v5060, %v5108
        %v5125 = vsub.f32 %v5061, %v5109
        %v5126 = vsub.f32 %v5062, %v5110
        %v5127 = vsub.f32 %v5063, %v5111
        %v5128 = vsub.f32 %v5064, %v5112
        %v5129 = vsub.f32 %v5065, %v5113
        %v5130 = vsub.f32 %v5066, %v5114
        %v5131 = vsub.f32 %v5067, %v5115
        %v5132 = vmul.f32 %v5116, %v5116
        %v5133 = vmul.f32 %v5117, %v5117
        %v5134 = vmul.f32 %v5118, %v5118
        %v5135 = vmul.f32 %v5119, %v5119
        %v5136 = vmul.f32 %v5120, %v5120
        %v5137 = vmul.f32 %v5121, %v5121
        %v5138 = vmul.f32 %v5122, %v5122
        %v5139 = vmul.f32 %v5123, %v5123
        %v5140 = vmul.f32 %v5124, %v5124
        %v5141 = vmul.f32 %v5125, %v5125
        %v5142 = vmul.f32 %v5126, %v5126
        %v5143 = vmul.f32 %v5127, %v5127
        %v5144 = vmul.f32 %v5128, %v5128
        %v5145 = vmul.f32 %v5129, %v5129
        %v5146 = vmul.f32 %v5130, %v5130
        %v5147 = vmul.f32 %v5131, %v5131
        %5148 = vadd.xlane.f32.xlu0 %v5132
        %v5149 = vpop.xlane.xlu0 %5148
        %5150 = vadd.xlane.f32.xlu0 %v5133
        %v5151 = vpop.xlane.xlu0 %5150
        %5152 = vadd.xlane.f32.xlu0 %v5134
        %v5153 = vpop.xlane.xlu0 %5152
        %5154 = vadd.xlane.f32.xlu0 %v5135
        %v5155 = vpop.xlane.xlu0 %5154
        %5156 = vadd.xlane.f32.xlu0 %v5136
        %v5157 = vpop.xlane.xlu0 %5156
        %5158 = vadd.xlane.f32.xlu0 %v5137
        %v5159 = vpop.xlane.xlu0 %5158
        %5160 = vadd.xlane.f32.xlu0 %v5138
        %v5161 = vpop.xlane.xlu0 %5160
        %5162 = vadd.xlane.f32.xlu0 %v5139
        %v5163 = vpop.xlane.xlu0 %5162
        %5164 = vadd.xlane.f32.xlu0 %v5140
        %v5165 = vpop.xlane.xlu0 %5164
        %5166 = vadd.xlane.f32.xlu0 %v5141
        %v5167 = vpop.xlane.xlu0 %5166
        %5168 = vadd.xlane.f32.xlu0 %v5142
        %v5169 = vpop.xlane.xlu0 %5168
        %5170 = vadd.xlane.f32.xlu0 %v5143
        %v5171 = vpop.xlane.xlu0 %5170
        %5172 = vadd.xlane.f32.xlu0 %v5144
        %v5173 = vpop.xlane.xlu0 %5172
        %5174 = vadd.xlane.f32.xlu0 %v5145
        %v5175 = vpop.xlane.xlu0 %5174
        %5176 = vadd.xlane.f32.xlu0 %v5146
        %v5177 = vpop.xlane.xlu0 %5176
        %5178 = vadd.xlane.f32.xlu0 %v5147
        %v5179 = vpop.xlane.xlu0 %5178
        %v5180 = vmul.f32 %v5149, %v3363
        %v5181 = vmul.f32 %v5151, %v3363
        %v5182 = vmul.f32 %v5153, %v3363
        %v5183 = vmul.f32 %v5155, %v3363
        %v5184 = vmul.f32 %v5157, %v3363
        %v5185 = vmul.f32 %v5159, %v3363
        %v5186 = vmul.f32 %v5161, %v3363
        %v5187 = vmul.f32 %v5163, %v3363
        %v5188 = vmul.f32 %v5165, %v3363
        %v5189 = vmul.f32 %v5167, %v3363
        %v5190 = vmul.f32 %v5169, %v3363
        %v5191 = vmul.f32 %v5171, %v3363
        %v5192 = vmul.f32 %v5173, %v3363
        %v5193 = vmul.f32 %v5175, %v3363
        %v5194 = vmul.f32 %v5177, %v3363
        %v5195 = vmul.f32 %v5179, %v3363
        %v5196 = vadd.f32 %v5180, 1e-05
        %v5197 = vadd.f32 %v5181, 1e-05
        %v5198 = vadd.f32 %v5182, 1e-05
        %v5199 = vadd.f32 %v5183, 1e-05
        %v5200 = vadd.f32 %v5184, 1e-05
        %v5201 = vadd.f32 %v5185, 1e-05
        %v5202 = vadd.f32 %v5186, 1e-05
        %v5203 = vadd.f32 %v5187, 1e-05
        %v5204 = vadd.f32 %v5188, 1e-05
        %v5205 = vadd.f32 %v5189, 1e-05
        %v5206 = vadd.f32 %v5190, 1e-05
        %v5207 = vadd.f32 %v5191, 1e-05
        %v5208 = vadd.f32 %v5192, 1e-05
        %v5209 = vadd.f32 %v5193, 1e-05
        %v5210 = vadd.f32 %v5194, 1e-05
        %v5211 = vadd.f32 %v5195, 1e-05
        %v5212 = vrsqrt.pop %v5196
        %v5213 = vrsqrt.pop %v5197
        %v5214 = vrsqrt.pop %v5198
        %v5215 = vrsqrt.pop %v5199
        %v5216 = vrsqrt.pop %v5200
        %v5217 = vrsqrt.pop %v5201
        %v5218 = vrsqrt.pop %v5202
        %v5219 = vrsqrt.pop %v5203
        %v5220 = vrsqrt.pop %v5204
        %v5221 = vrsqrt.pop %v5205
        %v5222 = vrsqrt.pop %v5206
        %v5223 = vrsqrt.pop %v5207
        %v5224 = vrsqrt.pop %v5208
        %v5225 = vrsqrt.pop %v5209
        %v5226 = vrsqrt.pop %v5210
        %v5227 = vrsqrt.pop %v5211
        %v5228 = vmul.f32 %v5116, %v5212
        %v5229 = vmul.f32 %v5117, %v5213
        %v5230 = vmul.f32 %v5118, %v5214
        %v5231 = vmul.f32 %v5119, %v5215
        %v5232 = vmul.f32 %v5120, %v5216
        %v5233 = vmul.f32 %v5121, %v5217
        %v5234 = vmul.f32 %v5122, %v5218
        %v5235 = vmul.f32 %v5123, %v5219
        %v5236 = vmul.f32 %v5124, %v5220
        %v5237 = vmul.f32 %v5125, %v5221
        %v5238 = vmul.f32 %v5126, %v5222
        %v5239 = vmul.f32 %v5127, %v5223
        %v5240 = vmul.f32 %v5128, %v5224
        %v5241 = vmul.f32 %v5129, %v5225
        %v5242 = vmul.f32 %v5130, %v5226
        %v5243 = vmul.f32 %v5131, %v5227
        %v5244 = vlaneseq
        %v5245 = vshrl.u32 %v5244, 7
        %v5246 = vsub.s32 6, %v5245
        %v5247 = vrot.slane %v672, %v5246
        %v5248 = vmul.f32 %v5228, %v5247
        %v5249 = vmul.f32 %v5229, %v5247
        %v5250 = vmul.f32 %v5230, %v5247
        %v5251 = vmul.f32 %v5231, %v5247
        %v5252 = vmul.f32 %v5232, %v5247
        %v5253 = vmul.f32 %v5233, %v5247
        %v5254 = vmul.f32 %v5234, %v5247
        %v5255 = vmul.f32 %v5235, %v5247
        %v5256 = vmul.f32 %v5236, %v5247
        %v5257 = vmul.f32 %v5237, %v5247
        %v5258 = vmul.f32 %v5238, %v5247
        %v5259 = vmul.f32 %v5239, %v5247
        %v5260 = vmul.f32 %v5240, %v5247
        %v5261 = vmul.f32 %v5241, %v5247
        %v5262 = vmul.f32 %v5242, %v5247
        %v5263 = vmul.f32 %v5243, %v5247
        %v5264 = vlaneseq
        %v5265 = vshrl.u32 %v5264, 7
        %v5266 = vsub.s32 7, %v5265
        %v5267 = vrot.slane %v672, %v5266
        %v5268 = vadd.f32 %v5248, %v5267
        %v5269 = vadd.f32 %v5249, %v5267
        %v5270 = vadd.f32 %v5250, %v5267
        %v5271 = vadd.f32 %v5251, %v5267
        %v5272 = vadd.f32 %v5252, %v5267
        %v5273 = vadd.f32 %v5253, %v5267
        %v5274 = vadd.f32 %v5254, %v5267
        %v5275 = vadd.f32 %v5255, %v5267
        %v5276 = vadd.f32 %v5256, %v5267
        %v5277 = vadd.f32 %v5257, %v5267
        %v5278 = vadd.f32 %v5258, %v5267
        %v5279 = vadd.f32 %v5259, %v5267
        %v5280 = vadd.f32 %v5260, %v5267
        %v5281 = vadd.f32 %v5261, %v5267
        %v5282 = vadd.f32 %v5262, %v5267
        %v5283 = vadd.f32 %v5263, %v5267
        %5284 = vst [vmem:[#allocation2] sm:$0xff] %v5268
        %5285 = vst [vmem:[#allocation2 + $0x8] sm:$0xff] %v5269
        %5286 = vst [vmem:[#allocation2 + $0x10] sm:$0xff] %v5270
        %5287 = vst [vmem:[#allocation2 + $0x18] sm:$0xff] %v5271
        %5288 = vst [vmem:[#allocation2 + $0x20] sm:$0xff] %v5272
        %5289 = vst [vmem:[#allocation2 + $0x28] sm:$0xff] %v5273
        %5290 = vst [vmem:[#allocation2 + $0x30] sm:$0xff] %v5274
        %5291 = vst [vmem:[#allocation2 + $0x38] sm:$0xff] %v5275
        %5292 = vst [vmem:[#allocation2 + $0x40] sm:$0xff] %v5276
        %5293 = vst [vmem:[#allocation2 + $0x48] sm:$0xff] %v5277
        %5294 = vst [vmem:[#allocation2 + $0x50] sm:$0xff] %v5278
        %5295 = vst [vmem:[#allocation2 + $0x58] sm:$0xff] %v5279
        %5296 = vst [vmem:[#allocation2 + $0x60] sm:$0xff] %v5280
        %5297 = vst [vmem:[#allocation2 + $0x68] sm:$0xff] %v5281
        %5298 = vst [vmem:[#allocation2 + $0x70] sm:$0xff] %v5282
        %5299 = vst [vmem:[#allocation2 + $0x78] sm:$0xff] %v5283
        %p5300 = scmp.eq.s32.totalorder %s42, 1
        // Predicated region
        $region97: #{tpu_custom_call.1} parent=59 // pred_check
          %p5301 = pneg %p5300
        $region98: #{tpu_custom_call.1} parent=59 // pred_check_branch
          %5303 = sbr.rel (%p5301) target = $region100
        $region99: #{tpu_custom_call.1} parent=59 // pred_region
          %v5304 = vpack.c.bf16 %v5268, %v5268
          %v5305 = vld [vmem:[#allocation14] sm:$0xff]
          %v5306 = vld [vmem:[#allocation14 + $0x8] sm:$0xff]
          %v5307 = vld [vmem:[#allocation14 + $0x10] sm:$0xff]
          %v5308 = vld [vmem:[#allocation14 + $0x18] sm:$0xff]
          %v5309 = vld [vmem:[#allocation14 + $0x20] sm:$0xff]
          %v5310 = vld [vmem:[#allocation14 + $0x28] sm:$0xff]
          %v5311 = vld [vmem:[#allocation14 + $0x30] sm:$0xff]
          %v5312 = vld [vmem:[#allocation14 + $0x38] sm:$0xff]
          %v5313 = vld [vmem:[#allocation14 + $0x40] sm:$0xff]
          %v5314 = vld [vmem:[#allocation14 + $0x48] sm:$0xff]
          %v5315 = vld [vmem:[#allocation14 + $0x50] sm:$0xff]
          %v5316 = vld [vmem:[#allocation14 + $0x58] sm:$0xff]
          %v5317 = vld [vmem:[#allocation14 + $0x60] sm:$0xff]
          %v5318 = vld [vmem:[#allocation14 + $0x68] sm:$0xff]
          %v5319 = vld [vmem:[#allocation14 + $0x70] sm:$0xff]
          %v5320 = vld [vmem:[#allocation14 + $0x78] sm:$0xff]
          %v5321 = vld [vmem:[%s7] sm:$0x3]
          %v5323 = vlaneseq
          %v5324 = vshrl.u32 %v5323, 7
          %v5325 = vsub.s32 0, %v5324
          %v5326 = vrot.slane %v5321, %v5325
          %v5327 = vlaneseq
          %v5328 = vshrl.u32 %v5327, 7
          %v5329 = vsub.s32 1, %v5328
          %v5330 = vrot.slane %v5321, %v5329
          %v5349 = vunpack.c.l.b16 %v5305
          %v5350 = vunpack.c.h.b16 %v5305
          %v5351 = vunpack.c.l.b16 %v5306
          %v5352 = vunpack.c.h.b16 %v5306
          %v5353 = vunpack.c.l.b16 %v5307
          %v5354 = vunpack.c.h.b16 %v5307
          %v5355 = vunpack.c.l.b16 %v5308
          %v5356 = vunpack.c.h.b16 %v5308
          %v5357 = vunpack.c.l.b16 %v5309
          %v5358 = vunpack.c.h.b16 %v5309
          %v5359 = vunpack.c.l.b16 %v5310
          %v5360 = vunpack.c.h.b16 %v5310
          %v5361 = vunpack.c.l.b16 %v5311
          %v5362 = vunpack.c.h.b16 %v5311
          %v5363 = vunpack.c.l.b16 %v5312
          %v5364 = vunpack.c.h.b16 %v5312
          %v5365 = vunpack.c.l.b16 %v5313
          %v5366 = vunpack.c.h.b16 %v5313
          %v5367 = vunpack.c.l.b16 %v5314
          %v5368 = vunpack.c.h.b16 %v5314
          %v5369 = vunpack.c.l.b16 %v5315
          %v5370 = vunpack.c.h.b16 %v5315
          %v5371 = vunpack.c.l.b16 %v5316
          %v5372 = vunpack.c.h.b16 %v5316
          %v5373 = vunpack.c.l.b16 %v5317
          %v5374 = vunpack.c.h.b16 %v5317
          %v5375 = vunpack.c.l.b16 %v5318
          %v5376 = vunpack.c.h.b16 %v5318
          %v5377 = vunpack.c.l.b16 %v5319
          %v5378 = vunpack.c.h.b16 %v5319
          %v5379 = vunpack.c.l.b16 %v5320
          %v5380 = vunpack.c.h.b16 %v5320
          %v5381 = vpack.c.b16 %v5351, %v5349
          %v5382 = vpack.c.b16 %v5352, %v5350
          %v5383 = vpack.c.b16 %v5355, %v5353
          %v5384 = vpack.c.b16 %v5356, %v5354
          %v5385 = vpack.c.b16 %v5359, %v5357
          %v5386 = vpack.c.b16 %v5360, %v5358
          %v5387 = vpack.c.b16 %v5363, %v5361
          %v5388 = vpack.c.b16 %v5364, %v5362
          %v5389 = vpack.c.b16 %v5367, %v5365
          %v5390 = vpack.c.b16 %v5368, %v5366
          %v5391 = vpack.c.b16 %v5371, %v5369
          %v5392 = vpack.c.b16 %v5372, %v5370
          %v5393 = vpack.c.b16 %v5375, %v5373
          %v5394 = vpack.c.b16 %v5376, %v5374
          %v5395 = vpack.c.b16 %v5379, %v5377
          %v5396 = vpack.c.b16 %v5380, %v5378
          %5413 = vmatprep.subr.bf16.mxu0 %v5382
          %5414 = vmatpush1.bf16.msra.mxu0 %v5381
          %5415 = vmatprep.subr.bf16.mxu0 %v5384
          %5416 = vmatpush1.bf16.msra.mxu0 %v5383
          %5417 = vmatprep.subr.bf16.mxu0 %v5386
          %5418 = vmatpush1.bf16.msra.mxu0 %v5385
          %5419 = vmatprep.subr.bf16.mxu0 %v5388
          %5420 = vmatpush1.bf16.msra.mxu0 %v5387
          %5421 = vmatprep.subr.bf16.mxu0 %v5390
          %5422 = vmatpush1.bf16.msra.mxu0 %v5389
          %5423 = vmatprep.subr.bf16.mxu0 %v5392
          %5424 = vmatpush1.bf16.msra.mxu0 %v5391
          %5425 = vmatprep.subr.bf16.mxu0 %v5394
          %5426 = vmatpush1.bf16.msra.mxu0 %v5393
          %5427 = vmatprep.subr.bf16.mxu0 %v5396
          %5428 = vmatpush1.bf16.msra.mxu0 %v5395
          %5429 = vmatprep.subr.bf16.mxu0 0
          %5430 = vmatpush1.bf16.msra.mxu0 0
          %5431 = vmatprep.subr.bf16.mxu0 0
          %5432 = vmatpush1.bf16.msra.mxu0 0
          %5433 = vmatprep.subr.bf16.mxu0 0
          %5434 = vmatpush1.bf16.msra.mxu0 0
          %5435 = vmatprep.subr.bf16.mxu0 0
          %5436 = vmatpush1.bf16.msra.mxu0 0
          %5437 = vmatprep.subr.bf16.mxu0 0
          %5438 = vmatpush1.bf16.msra.mxu0 0
          %5439 = vmatprep.subr.bf16.mxu0 0
          %5440 = vmatpush1.bf16.msra.mxu0 0
          %5441 = vmatprep.subr.bf16.mxu0 0
          %5442 = vmatpush1.bf16.msra.mxu0 0
          %5443 = vmatprep.subr.bf16.mxu0 0
          %5444 = vmatpush1.bf16.msra.mxu0 0
          %5445 = vmatprep.mubr.bf16.mxu0 0
          %5446 = vmatmul.mubr.bf16.gmra.mrb[0].mxu0 %v5304
          %v5447 = vpop.f32.mrb[0].mxu0
          %v5448 = vadd.f32 %v5326, %v5447
          %v5449 = vpop.f32.mrb[0].mxu0
          %v5450 = vadd.f32 %v5330, %v5449
          %v5451 = vpop.f32.mrb[0].mxu0
          %v5452 = vpop.f32.mrb[0].mxu0
          %5453 = vdwg.mxu0
          %v5454 = vpack.c.bf16 %v5448, %v5448
          %v5455 = vpack.c.bf16 %v5450, %v5450
          %v5456 = vld [vmem:[#allocation15] sm:$0xf]
          %v5457 = vld [vmem:[#allocation15 + $0x4] sm:$0xf]
          %v5458 = vld [vmem:[#allocation15 + $0x8] sm:$0xf]
          %v5459 = vld [vmem:[#allocation15 + $0xc] sm:$0xf]
          %v5460 = vld [vmem:[#allocation15 + $0x10] sm:$0xf]
          %v5461 = vld [vmem:[#allocation15 + $0x14] sm:$0xf]
          %v5462 = vld [vmem:[#allocation15 + $0x18] sm:$0xf]
          %v5463 = vld [vmem:[#allocation15 + $0x1c] sm:$0xf]
          %v5464 = vld [vmem:[#allocation15 + $0x20] sm:$0xf]
          %v5465 = vld [vmem:[#allocation15 + $0x24] sm:$0xf]
          %v5466 = vld [vmem:[#allocation15 + $0x28] sm:$0xf]
          %v5467 = vld [vmem:[#allocation15 + $0x2c] sm:$0xf]
          %v5468 = vld [vmem:[#allocation15 + $0x30] sm:$0xf]
          %v5469 = vld [vmem:[#allocation15 + $0x34] sm:$0xf]
          %v5470 = vld [vmem:[#allocation15 + $0x38] sm:$0xf]
          %v5471 = vld [vmem:[#allocation15 + $0x3c] sm:$0xf]
          %v5472 = vld [vmem:[#allocation15 + $0x40] sm:$0xf]
          %v5473 = vld [vmem:[#allocation15 + $0x44] sm:$0xf]
          %v5474 = vld [vmem:[#allocation15 + $0x48] sm:$0xf]
          %v5475 = vld [vmem:[#allocation15 + $0x4c] sm:$0xf]
          %v5476 = vld [vmem:[#allocation15 + $0x50] sm:$0xf]
          %v5477 = vld [vmem:[#allocation15 + $0x54] sm:$0xf]
          %v5478 = vld [vmem:[#allocation15 + $0x58] sm:$0xf]
          %v5479 = vld [vmem:[#allocation15 + $0x5c] sm:$0xf]
          %v5480 = vld [vmem:[#allocation15 + $0x60] sm:$0xf]
          %v5481 = vld [vmem:[#allocation15 + $0x64] sm:$0xf]
          %v5482 = vld [vmem:[#allocation15 + $0x68] sm:$0xf]
          %v5483 = vld [vmem:[#allocation15 + $0x6c] sm:$0xf]
          %v5484 = vld [vmem:[#allocation15 + $0x70] sm:$0xf]
          %v5485 = vld [vmem:[#allocation15 + $0x74] sm:$0xf]
          %v5486 = vld [vmem:[#allocation15 + $0x78] sm:$0xf]
          %v5487 = vld [vmem:[#allocation15 + $0x7c] sm:$0xf]
          %v5488 = vld [vmem:[%s9] sm:$0x1]
          %v5490 = vlaneseq
          %v5491 = vshrl.u32 %v5490, 7
          %v5492 = vsub.s32 0, %v5491
          %v5493 = vrot.slane %v5488, %v5492
          %v5527 = vunpack.c.l.b16 %v5456
          %v5528 = vunpack.c.l.b16 %v5457
          %v5529 = vunpack.c.l.b16 %v5458
          %v5530 = vunpack.c.l.b16 %v5459
          %v5531 = vunpack.c.l.b16 %v5460
          %v5532 = vunpack.c.l.b16 %v5461
          %v5533 = vunpack.c.l.b16 %v5462
          %v5534 = vunpack.c.l.b16 %v5463
          %v5535 = vunpack.c.l.b16 %v5464
          %v5536 = vunpack.c.l.b16 %v5465
          %v5537 = vunpack.c.l.b16 %v5466
          %v5538 = vunpack.c.l.b16 %v5467
          %v5539 = vunpack.c.l.b16 %v5468
          %v5540 = vunpack.c.l.b16 %v5469
          %v5541 = vunpack.c.l.b16 %v5470
          %v5542 = vunpack.c.l.b16 %v5471
          %v5543 = vunpack.c.l.b16 %v5472
          %v5544 = vunpack.c.l.b16 %v5473
          %v5545 = vunpack.c.l.b16 %v5474
          %v5546 = vunpack.c.l.b16 %v5475
          %v5547 = vunpack.c.l.b16 %v5476
          %v5548 = vunpack.c.l.b16 %v5477
          %v5549 = vunpack.c.l.b16 %v5478
          %v5550 = vunpack.c.l.b16 %v5479
          %v5551 = vunpack.c.l.b16 %v5480
          %v5552 = vunpack.c.l.b16 %v5481
          %v5553 = vunpack.c.l.b16 %v5482
          %v5554 = vunpack.c.l.b16 %v5483
          %v5555 = vunpack.c.l.b16 %v5484
          %v5556 = vunpack.c.l.b16 %v5485
          %v5557 = vunpack.c.l.b16 %v5486
          %v5558 = vunpack.c.l.b16 %v5487
          %v5559 = vpack.c.b16 %v5528, %v5527
          %v5560 = vpack.c.b16 %v5530, %v5529
          %v5561 = vpack.c.b16 %v5532, %v5531
          %v5562 = vpack.c.b16 %v5534, %v5533
          %v5563 = vpack.c.b16 %v5536, %v5535
          %v5564 = vpack.c.b16 %v5538, %v5537
          %v5565 = vpack.c.b16 %v5540, %v5539
          %v5566 = vpack.c.b16 %v5542, %v5541
          %v5567 = vpack.c.b16 %v5544, %v5543
          %v5568 = vpack.c.b16 %v5546, %v5545
          %v5569 = vpack.c.b16 %v5548, %v5547
          %v5570 = vpack.c.b16 %v5550, %v5549
          %v5571 = vpack.c.b16 %v5552, %v5551
          %v5572 = vpack.c.b16 %v5554, %v5553
          %v5573 = vpack.c.b16 %v5556, %v5555
          %v5574 = vpack.c.b16 %v5558, %v5557
          %5591 = vmatprep.subr.bf16.mxu0 0
          %5592 = vmatpush1.bf16.msra.mxu0 %v5559
          %5593 = vmatprep.subr.bf16.mxu0 0
          %5594 = vmatpush1.bf16.msra.mxu0 %v5560
          %5595 = vmatprep.subr.bf16.mxu0 0
          %5596 = vmatpush1.bf16.msra.mxu0 %v5561
          %5597 = vmatprep.subr.bf16.mxu0 0
          %5598 = vmatpush1.bf16.msra.mxu0 %v5562
          %5599 = vmatprep.subr.bf16.mxu0 0
          %5600 = vmatpush1.bf16.msra.mxu0 %v5563
          %5601 = vmatprep.subr.bf16.mxu0 0
          %5602 = vmatpush1.bf16.msra.mxu0 %v5564
          %5603 = vmatprep.subr.bf16.mxu0 0
          %5604 = vmatpush1.bf16.msra.mxu0 %v5565
          %5605 = vmatprep.subr.bf16.mxu0 0
          %5606 = vmatpush1.bf16.msra.mxu0 %v5566
          %5607 = vmatprep.subr.bf16.mxu0 0
          %5608 = vmatpush1.bf16.msra.mxu0 %v5567
          %5609 = vmatprep.subr.bf16.mxu0 0
          %5610 = vmatpush1.bf16.msra.mxu0 %v5568
          %5611 = vmatprep.subr.bf16.mxu0 0
          %5612 = vmatpush1.bf16.msra.mxu0 %v5569
          %5613 = vmatprep.subr.bf16.mxu0 0
          %5614 = vmatpush1.bf16.msra.mxu0 %v5570
          %5615 = vmatprep.subr.bf16.mxu0 0
          %5616 = vmatpush1.bf16.msra.mxu0 %v5571
          %5617 = vmatprep.subr.bf16.mxu0 0
          %5618 = vmatpush1.bf16.msra.mxu0 %v5572
          %5619 = vmatprep.subr.bf16.mxu0 0
          %5620 = vmatpush1.bf16.msra.mxu0 %v5573
          %5621 = vmatprep.subr.bf16.mxu0 0
          %5622 = vmatpush1.bf16.msra.mxu0 %v5574
          %5623 = vmatprep.mubr.bf16.mxu0 %v5455
          %5624 = vmatmul.mubr.bf16.gmra.mrb[0].mxu0 %v5454
          %v5625 = vpop.f32.mrb[0].mxu0
          %v5626 = vadd.f32 %v5493, %v5625
          %v5627 = vpop.f32.mrb[0].mxu0
          %v5628 = vpop.f32.mrb[0].mxu0
          %v5629 = vpop.f32.mrb[0].mxu0
          %5630 = vdwg.mxu0
          %5631 = vst [vmem:[%s610] sm:$0xff] %v5626
        $region100: #{tpu_custom_call.1} parent=59 // pred_fallthru
          _
        %s5632 = sand.u32 %s297, 1
        %s5633 = scalar_lea.sflag [#allocation5], %s5632
        %s5634 = sand.u32 %s297, 1
        %s5635 = smul.addr %s5634, 8
        %s5636 = scalar_lea.vmem [#allocation17], %s5635
        // Predicated region
        $region101: #{tpu_custom_call.1} parent=59 // pred_check
          %p5637 = pneg %p307
        $region102: #{tpu_custom_call.1} parent=59 // pred_check_branch
          %5639 = sbr.rel (%p5637) target = $region104
        $region103: #{tpu_custom_call.1} parent=59 // pred_region
          %s5641 = ssub.s32 128, 128
          %5642 = vsyncadd %s5633, %s5641
          %s5643 = smul.addr %s41, 128
          %s5644 = scalar_lea.hbm %s10, %s5643
          %s5646 = sshll.u32 %s5636, 4
          %s5647 = int_to_ptr.vmem [resolvable:$true] %s5646
          %5649 = dma.vmem_to_hbm [thread:$0]  %s5647, 128, %s5644, %s5633
        $region104: #{tpu_custom_call.1} parent=59 // pred_fallthru
          _
      $region60: #{tpu_custom_call.1} parent=5 // pred_fallthru
        _
      %p5650 = scmp.le.s32.totalorder 2, %s32
      // Predicated region
      $region105: #{tpu_custom_call.1} parent=5 // pred_check
        %p5651 = pneg %p5650
      $region106: #{tpu_custom_call.1} parent=5 // pred_check_branch
        %5653 = sbr.rel (%p5651) target = $region108
      $region107: #{tpu_custom_call.1} parent=5 // pred_region
        %s5654 = ssub.s32 %s32, 2
        // Predicated region
        $region109: #{tpu_custom_call.1} parent=107 // pred_check
          %p5655 = pneg %p313
        $region110: #{tpu_custom_call.1} parent=107 // pred_check_branch
          %5657 = sbr.rel (%p5655) target = $region112
        $region111: #{tpu_custom_call.1} parent=107 // pred_region
          %s5658 = sand.u32 %s298, 1
          %s5659 = scalar_lea.sflag [#allocation5], %s5658
          %s5660 = sand.u32 %s298, 1
          %s5661 = smul.addr %s5660, 8
          %s5662 = scalar_lea.vmem [#allocation17], %s5661
          %5663 = dma.done %s5659, 128
        $region112: #{tpu_custom_call.1} parent=107 // pred_fallthru
          _
      $region108: #{tpu_custom_call.1} parent=5 // pred_fallthru
        _
    $region6: #{tpu_custom_call.1} parent=1 // loop_footer
      %s36 = sadd.s32 1, %s32
    $region7: #{tpu_custom_call.1} parent=1 // loop_footer_branch
      %31 = sbr.rel target = $region3
    $region8: #{tpu_custom_call.1} parent=1 // loop_exit
      _
    %5664 = vsyncpa [#allocation4], 1
    %s5665 = scalar_lea.sflag [#allocation4], 1
    %5666 = vsyncpa %s5665, 1
    %5667 = vsyncpa [#allocation7], 1
    %s5668 = scalar_lea.sflag [#allocation7], 1
    %5669 = vsyncpa %s5668, 1
    %5670 = vsyncpa [#allocation10], 1
    %s5671 = scalar_lea.sflag [#allocation10], 1
    %5672 = vsyncpa %s5671, 1
    %5673 = vsyncpa [#allocation13], 1
    %s5674 = scalar_lea.sflag [#allocation13], 1
    %5675 = vsyncpa %s5674, 1
    %5676 = vsyncpa [#allocation16], 1
    %5677 = vsyncpa [#allocation5], 1
    %s5678 = scalar_lea.sflag [#allocation5], 1
    %5679 = vsyncpa %s5678, 1

</llo_original>
